<compile_context>
chip_gen: v6e
topology: v6e:2x2x1
jax: 0.10.0
libtpu: 0.0.40
codegen_flags: <defaults>
</compile_context>

<pallas_src>
import math
import numpy as np

import jax
import jax.numpy as jnp
from jax.experimental import pallas as pl
from jax.experimental.pallas import tpu as pltpu

LANES = 128      # TPU lane width
T_BLOCK = 4096   # policy steps computed per kernel launch (dense-packed)


def _build_time_policy_fn(n_rows: int):
    """Returns jitted fn: params(8,128) f32 -> (n_rows,128) f32 dense-packed actions.

    params rows: 0 = arg0  (w*t0 + phase + w*dt*(lane//out), mod 2*pi, f64->f32)
                 1 = w*dt*REP (phase increment per output row)
                 2 = amp
                 3 = offset
    Lane l of row r carries action dim (l % out) for policy step k = REP*r + l//out.
    """

    def kernel(params_ref, act_ref):
        arg0 = params_ref[0:1, :]
        wdtr = params_ref[1:2, :]
        amp = params_ref[2:3, :]
        off = params_ref[3:4, :]
        row = jax.lax.broadcasted_iota(jnp.int32, (n_rows, LANES), 0).astype(jnp.float32)
        act_ref[...] = amp * jnp.sin(arg0 + wdtr * row) + off

    pallas_fn = pl.pallas_call(
        kernel,
        out_shape=jax.ShapeDtypeStruct((n_rows, LANES), jnp.float32),
        in_specs=[pl.BlockSpec(memory_space=pltpu.MemorySpace.VMEM)],
        out_specs=pl.BlockSpec(memory_space=pltpu.MemorySpace.VMEM),
    )
    return jax.jit(pallas_fn)


class TraceableTimePolicyPallas:
    """Pallas re-implementation of Pyrado's TraceableTimePolicy.

    forward(obs) ignores obs, returns fcn_of_time(current_time) as float64 and
    advances current_time by dt.  Actions for T_BLOCK consecutive steps are
    produced by one Pallas launch, copied to host once, and served from numpy.
    """

    name: str = "trtime"

    def __init__(self, input_size: int, output_size: int, dt: float, key,
                 t_block: int = T_BLOCK):
        self.input_size = int(input_size)
        self.output_size = int(output_size)
        self.dt = float(dt)
        self._step = 0  # current_time = _step * dt (no accumulated += drift)

        if self.output_size > LANES:
            # TODO(synk): output_size > 128 would need multiple lane rows per step.
            raise NotImplementedError("output_size > 128 not supported")

        rep = LANES // self.output_size            # time steps packed per lane row
        self._rep = rep
        self._lanes_used = rep * self.output_size  # == 128 when output_size | 128
        rows = -(-int(t_block) // rep)
        rows = ((rows + 7) // 8) * 8               # keep sublane-aligned rows
        self._rows = rows
        self._t_block = rows * rep

        # Deterministic "fcn_of_time" parameters (synthetic, not a checkpoint).
        k1, k2, k3, k4 = jax.random.split(key, 4)
        amp = np.asarray(jax.random.uniform(k1, (output_size,), jnp.float32, 0.5, 1.5), np.float64)
        freq = np.asarray(jax.random.uniform(k2, (output_size,), jnp.float32, 0.1, 2.0), np.float64)
        phase = np.asarray(jax.random.uniform(k3, (output_size,), jnp.float32, 0.0, 2.0 * math.pi), np.float64)
        off = np.asarray(jax.random.uniform(k4, (output_size,), jnp.float32, -0.5, 0.5), np.float64)
        self._amp64, self._freq64, self._phase64, self._off64 = amp, freq, phase, off
        w = 2.0 * np.pi * freq

        # Per-lane (f64, host-side) views for the phase pre-reduction.
        lane = np.arange(self._lanes_used)
        dim = lane % self.output_size
        kofs = (lane // self.output_size).astype(np.float64)
        self._w_lane = w[dim]
        self._phase_lane = phase[dim]
        self._kofs = kofs

        # Static rows of the single (8,128) params tile (row 0 = arg0 filled per block).
        params = np.zeros((8, LANES), np.float32)
        params[1, :self._lanes_used] = (self._w_lane * self.dt * rep).astype(np.float32)
        params[2, :self._lanes_used] = amp[dim].astype(np.float32)
        params[3, :self._lanes_used] = off[dim].astype(np.float32)
        self._params_static = params

        self._run = _build_time_policy_fn(rows)

        self._cache = None                   # host numpy (t_block, output_size) f64
        self._cache_idx = self._t_block      # force refill on first call

    @property
    def current_time(self) -> float:
        return self._step * self.dt

    # mirrors the python-callable the torch module wraps (pure f64 reference)
    def fcn_of_time(self, t: float):
        return [
            float(self._amp64[i] * math.sin(2.0 * math.pi * self._freq64[i] * t + self._phase64[i])
                  + self._off64[i])
            for i in range(self.output_size)
        ]

    def reset(self):
        self._step = 0
        self._cache = None
        self._cache_idx = self._t_block

    def _refill_cache(self):
        t0 = self._step * self.dt
        # f64 phase pre-reduction on host: arg0 = (w*(t0 + dt*kofs) + phase) mod 2*pi
        arg0 = (self._w_lane * (t0 + self.dt * self._kofs) + self._phase_lane) % (2.0 * np.pi)
        params = self._params_static.copy()
        params[0, :self._lanes_used] = arg0.astype(np.float32)

        acts = self._run(jnp.asarray(params))          # one kernel launch
        acts = np.asarray(jax.device_get(acts))        # one D2H per t_block steps
        acts = acts[:, :self._lanes_used].reshape(self._t_block, self.output_size)
        self._cache = acts.astype(np.float64)          # torch.double parity (host cast)
        self._cache_idx = 0

    def __call__(self, obs_ignore):
        del obs_ignore  # observation is ignored, exactly like the torch module
        if self._cache is None or self._cache_idx >= self._t_block:
            self._refill_cache()
        act = self._cache[self._cache_idx]              # pure numpy row, no dispatch
        self._cache_idx += 1
        self._step += 1
        return act


if __name__ == "__main__":
    key = jax.random.PRNGKey(0)
    kp, ko = jax.random.split(key)

    input_size = 16   # spec.obs_space.flat_dim
    output_size = 8   # spec.act_space.flat_dim
    dt = 0.01

    policy = TraceableTimePolicyPallas(input_size, output_size, dt, kp)
    obs = jax.random.normal(ko, (input_size,), jnp.float32)  # ignored by forward

    ok = True

    # Run a few steps (state advances by dt each call), check against f64 reference.
    for _ in range(5):
        t_before = policy.current_time
        ref = np.asarray(policy.fcn_of_time(t_before), np.float64)
        act = policy(obs)
        ok &= act.shape == (output_size,)
        ok &= act.dtype == np.float64
        ok &= bool(np.allclose(act, ref, atol=1e-4, rtol=1e-4))
        ok &= abs(policy.current_time - (t_before + dt)) < 1e-9

    # reset() must restart time at 0 and invalidate the cache.
    policy.reset()
    ok &= policy.current_time == 0.0
    for _ in range(2):
        t_before = policy.current_time
        ref = np.asarray(policy.fcn_of_time(t_before), np.float64)
        act = policy(obs)
        ok &= bool(np.allclose(act, ref, atol=1e-4, rtol=1e-4))

    # Explicitly run the kernel once more and block on the device result.
    dev_out = policy._run(jnp.asarray(policy._params_static))
    jax.block_until_ready(dev_out)

    print("KERNEL_OK" if ok else "KERNEL_MISMATCH")
</pallas_src>

<mosaic_0001>
module attributes {stable_mosaic.version = 11 : i64} {
  func.func @kernel(%arg0: memref<8x128xf32, #tpu.memory_space<vmem>>, %arg1: memref<256x128xf32, #tpu.memory_space<vmem>>) attributes {dimension_semantics = [], scalar_prefetch = 0 : i64, scratch_operands = 0 : i64, tpu.core_type = #tpu.core_type<tc>} {
    %c0 = arith.constant 0 : index
    %c0_0 = arith.constant 0 : index
    %0 = vector.load %arg0[%c0, %c0_0] : memref<8x128xf32, #tpu.memory_space<vmem>>, vector<1x128xf32>
    %c1 = arith.constant 1 : index
    %c0_1 = arith.constant 0 : index
    %1 = vector.load %arg0[%c1, %c0_1] : memref<8x128xf32, #tpu.memory_space<vmem>>, vector<1x128xf32>
    %c2 = arith.constant 2 : index
    %c0_2 = arith.constant 0 : index
    %2 = vector.load %arg0[%c2, %c0_2] : memref<8x128xf32, #tpu.memory_space<vmem>>, vector<1x128xf32>
    %c3 = arith.constant 3 : index
    %c0_3 = arith.constant 0 : index
    %3 = vector.load %arg0[%c3, %c0_3] : memref<8x128xf32, #tpu.memory_space<vmem>>, vector<1x128xf32>
    %4 = tpu.iota {dimensions = array<i32: 0>} : vector<256x128xi32>
    %5 = arith.sitofp %4 : vector<256x128xi32> to vector<256x128xf32>
    %6 = vector.broadcast %1 : vector<1x128xf32> to vector<256x128xf32>
    %7 = arith.mulf %6, %5 : vector<256x128xf32>
    %8 = vector.broadcast %0 : vector<1x128xf32> to vector<256x128xf32>
    %9 = arith.addf %8, %7 : vector<256x128xf32>
    %10 = math.sin %9 : vector<256x128xf32>
    %11 = vector.broadcast %2 : vector<1x128xf32> to vector<256x128xf32>
    %12 = arith.mulf %11, %10 : vector<256x128xf32>
    %13 = vector.broadcast %3 : vector<1x128xf32> to vector<256x128xf32>
    %14 = arith.addf %12, %13 : vector<256x128xf32>
    %c0_4 = arith.constant 0 : index
    %c0_5 = arith.constant 0 : index
    %15 = vector.load %arg1[%c0_4, %c0_5] : memref<256x128xf32, #tpu.memory_space<vmem>>, vector<256x128xf32>
    tpu.vector_store %arg1[%c0_4, %c0_5], %14 {strides = array<i32>} : memref<256x128xf32, #tpu.memory_space<vmem>>, vector<256x128xf32>,
    return
  }
}

</mosaic_0001>

<llo_original>
// kernel: tpu_custom_call.1
$region0: #{tpu_custom_call.1}
  #allocation0 [shape = 'u32[]', space=smem, size = 0x4, offset = 0x4, fixed_abs, tag = 'smem constant byte address 0x4 - core index']
  #allocation1 [shape = 'u32[144,128]{1,0:T(1,128)}', space=vmem, size = 0x12000, scoped, tag = 'internal scratch']
  %s0 = inlined_call_operand.hbm [shape: f32[8,128], index: 0, kind: input, shape index: {}]
  %s1 = inlined_call_operand.hbm [shape: f32[256,128], index: 1, kind: output, shape index: {}]
  %s2 = sld [smem:[#allocation0]]
  $region18: #{tpu_custom_call.1} parent=0
    _
  %s4 = ssub.s32 1, %s2
  %s5 = scalar_select 0, %s4, %s2
  $region1: #{tpu_custom_call.1} parent=0
    #allocation2 [shape = 'u8[4096]{0}', space=vmem, size = 0x1000, scoped, tag = 'input window, operand 0, single buffered']
    #allocation3 [shape = 's32[1]{0}', space=sflag, size = 0x4, scoped, tag = 'scoped memory for tpu_custom_call.1']
    #allocation4 [shape = 's32[1]{0}', space=sflag, size = 0x4, scoped, tag = 'scoped memory for tpu_custom_call.1']
    #allocation5 [shape = 'u8[131072]{0}', space=vmem, size = 0x20000, scoped, tag = 'output window, operand 0, single buffered']
    %6 = vsyncpa [#allocation3], 0
    %7 = vsyncpa [#allocation4], 0
    // Predicated region
    $region2: #{tpu_custom_call.1} parent=1 // pred_check
      _
    $region3: #{tpu_custom_call.1} parent=1 // pred_check_branch
      %9 = sbr.rel (0) target = $region5
    $region4: #{tpu_custom_call.1} parent=1 // pred_region
      %s11 = ssub.s32 128, 128
      %12 = vsyncadd [#allocation3], %s11
      %s14 = sshll.u32 [#allocation2], 4
      %s15 = int_to_ptr.vmem [resolvable:$true] %s14
      %17 = dma.hbm_to_vmem [thread:$0]  %s0, 128, %s15, [#allocation3]
    $region5: #{tpu_custom_call.1} parent=1 // pred_fallthru
      _
    // Predicated region
    $region6: #{tpu_custom_call.1} parent=1 // pred_check
      _
    $region7: #{tpu_custom_call.1} parent=1 // pred_check_branch
      %19 = sbr.rel (0) target = $region9
    $region8: #{tpu_custom_call.1} parent=1 // pred_region
      %20 = dma.done [#allocation3], 128
    $region9: #{tpu_custom_call.1} parent=1 // pred_fallthru
      _
    %v21 = vld [vmem:[#allocation2] sm:$0x1]
    %v22 = vld [vmem:[#allocation2 + $0x1] sm:$0x1]
    %v23 = vld [vmem:[#allocation2 + $0x2] sm:$0x1]
    %v24 = vld [vmem:[#allocation2 + $0x3] sm:$0x1]
    %v25 = vlaneseq
    %v26 = vshrl.u32 %v25, 7
    %v27 = vadd.s32 %v26, 8
    %v28 = vadd.s32 %v26, 16
    %v29 = vadd.s32 %v26, 24
    %v30 = vadd.s32 %v26, 32
    %v31 = vadd.s32 %v26, 40
    %v32 = vadd.s32 %v26, 48
    %v33 = vadd.s32 %v26, 56
    %v34 = vadd.s32 %v26, 64
    %v35 = vadd.s32 %v26, 72
    %v36 = vadd.s32 %v26, 80
    %v37 = vadd.s32 %v26, 88
    %v38 = vadd.s32 %v26, 96
    %v39 = vadd.s32 %v26, 104
    %v40 = vadd.s32 %v26, 112
    %v41 = vadd.s32 %v26, 120
    %v42 = vadd.s32 %v26, 128
    %v43 = vadd.s32 %v26, 136
    %v44 = vadd.s32 %v26, 144
    %v45 = vadd.s32 %v26, 152
    %v46 = vadd.s32 %v26, 160
    %v47 = vadd.s32 %v26, 168
    %v48 = vadd.s32 %v26, 176
    %v49 = vadd.s32 %v26, 184
    %v50 = vadd.s32 %v26, 192
    %v51 = vadd.s32 %v26, 200
    %v52 = vadd.s32 %v26, 208
    %v53 = vadd.s32 %v26, 216
    %v54 = vadd.s32 %v26, 224
    %v55 = vadd.s32 %v26, 232
    %v56 = vadd.s32 %v26, 240
    %v57 = vadd.s32 %v26, 248
    %v58 = vcvt.s32.f32 %v26
    %v59 = vcvt.s32.f32 %v27
    %v60 = vcvt.s32.f32 %v28
    %v61 = vcvt.s32.f32 %v29
    %v62 = vcvt.s32.f32 %v30
    %v63 = vcvt.s32.f32 %v31
    %v64 = vcvt.s32.f32 %v32
    %v65 = vcvt.s32.f32 %v33
    %v66 = vcvt.s32.f32 %v34
    %v67 = vcvt.s32.f32 %v35
    %v68 = vcvt.s32.f32 %v36
    %v69 = vcvt.s32.f32 %v37
    %v70 = vcvt.s32.f32 %v38
    %v71 = vcvt.s32.f32 %v39
    %v72 = vcvt.s32.f32 %v40
    %v73 = vcvt.s32.f32 %v41
    %v74 = vcvt.s32.f32 %v42
    %v75 = vcvt.s32.f32 %v43
    %v76 = vcvt.s32.f32 %v44
    %v77 = vcvt.s32.f32 %v45
    %v78 = vcvt.s32.f32 %v46
    %v79 = vcvt.s32.f32 %v47
    %v80 = vcvt.s32.f32 %v48
    %v81 = vcvt.s32.f32 %v49
    %v82 = vcvt.s32.f32 %v50
    %v83 = vcvt.s32.f32 %v51
    %v84 = vcvt.s32.f32 %v52
    %v85 = vcvt.s32.f32 %v53
    %v86 = vcvt.s32.f32 %v54
    %v87 = vcvt.s32.f32 %v55
    %v88 = vcvt.s32.f32 %v56
    %v89 = vcvt.s32.f32 %v57
    %v90 = vlaneseq
    %v91 = vshrl.u32 %v90, 7
    %v92 = vsub.s32 0, %v91
    %v93 = vrot.slane %v22, %v92
    %v94 = vmul.f32 %v93, %v58
    %v95 = vmul.f32 %v93, %v59
    %v96 = vmul.f32 %v93, %v60
    %v97 = vmul.f32 %v93, %v61
    %v98 = vmul.f32 %v93, %v62
    %v99 = vmul.f32 %v93, %v63
    %v100 = vmul.f32 %v93, %v64
    %v101 = vmul.f32 %v93, %v65
    %v102 = vmul.f32 %v93, %v66
    %v103 = vmul.f32 %v93, %v67
    %v104 = vmul.f32 %v93, %v68
    %v105 = vmul.f32 %v93, %v69
    %v106 = vmul.f32 %v93, %v70
    %v107 = vmul.f32 %v93, %v71
    %v108 = vmul.f32 %v93, %v72
    %v109 = vmul.f32 %v93, %v73
    %v110 = vmul.f32 %v93, %v74
    %v111 = vmul.f32 %v93, %v75
    %v112 = vmul.f32 %v93, %v76
    %v113 = vmul.f32 %v93, %v77
    %v114 = vmul.f32 %v93, %v78
    %v115 = vmul.f32 %v93, %v79
    %v116 = vmul.f32 %v93, %v80
    %v117 = vmul.f32 %v93, %v81
    %v118 = vmul.f32 %v93, %v82
    %v119 = vmul.f32 %v93, %v83
    %v120 = vmul.f32 %v93, %v84
    %v121 = vmul.f32 %v93, %v85
    %v122 = vmul.f32 %v93, %v86
    %v123 = vmul.f32 %v93, %v87
    %v124 = vmul.f32 %v93, %v88
    %v125 = vmul.f32 %v93, %v89
    %v126 = vlaneseq
    %v127 = vshrl.u32 %v126, 7
    %v128 = vsub.s32 0, %v127
    %v129 = vrot.slane %v21, %v128
    %v130 = vadd.f32 %v129, %v94
    %v131 = vadd.f32 %v129, %v95
    %v132 = vadd.f32 %v129, %v96
    %v133 = vadd.f32 %v129, %v97
    %v134 = vadd.f32 %v129, %v98
    %v135 = vadd.f32 %v129, %v99
    %v136 = vadd.f32 %v129, %v100
    %v137 = vadd.f32 %v129, %v101
    %v138 = vadd.f32 %v129, %v102
    %v139 = vadd.f32 %v129, %v103
    %v140 = vadd.f32 %v129, %v104
    %v141 = vadd.f32 %v129, %v105
    %v142 = vadd.f32 %v129, %v106
    %v143 = vadd.f32 %v129, %v107
    %v144 = vadd.f32 %v129, %v108
    %v145 = vadd.f32 %v129, %v109
    %v146 = vadd.f32 %v129, %v110
    %v147 = vadd.f32 %v129, %v111
    %v148 = vadd.f32 %v129, %v112
    %v149 = vadd.f32 %v129, %v113
    %v150 = vadd.f32 %v129, %v114
    %v151 = vadd.f32 %v129, %v115
    %v152 = vadd.f32 %v129, %v116
    %v153 = vadd.f32 %v129, %v117
    %v154 = vadd.f32 %v129, %v118
    %v155 = vadd.f32 %v129, %v119
    %v156 = vadd.f32 %v129, %v120
    %v157 = vadd.f32 %v129, %v121
    %v158 = vadd.f32 %v129, %v122
    %v159 = vadd.f32 %v129, %v123
    %v160 = vadd.f32 %v129, %v124
    %v161 = vadd.f32 %v129, %v125
    %v162 = vand.u32 2147483647, %v130
    %vm163 = vcmp.le.f32.partialorder %v162, 0.7853982
    %vm164 = vcmp.lt.s32.totalorder %v130, 0
    %v165 = vand.u32 %v130, 2139095040
    %v166 = vshrl.u32 %v165, 23
    %v167 = vsub.s32 %v166, 127
    %v168 = vand.u32 2147483647, %v130
    %v169 = vand.u32 %v168, 8388607
    %v170 = vor.u32 %v169, 8388608
    %v171 = vsub.s32 0, %v170
    %v172 = vadd.s32 %v167, 1
    %vm173 = vcmp.gt.s32.totalorder %v172, 0
    %v174 = vsel %vm173, %v172, 0
    %v175 = vshrl.u32 %v174, 5
    %v176 = vand.u32 %v174, 31
    %v177 = vsub.s32 32, %v176
    %v178 = vshrl.u32 683565275, %v177
    %v179 = vshll.u32 683565275, %v176
    %v180 = vshrl.u32 2475754826, %v177
    %v181 = vor.u32 %v179, %v180
    %v182 = vshll.u32 2475754826, %v176
    %v183 = vshrl.u32 2131351028, %v177
    %v184 = vor.u32 %v182, %v183
    %v185 = vshll.u32 2131351028, %v176
    %v186 = vshrl.u32 2102212464, %v177
    %v187 = vor.u32 %v185, %v186
    %v188 = vshll.u32 2102212464, %v176
    %v189 = vshrl.u32 920167782, %v177
    %v190 = vor.u32 %v188, %v189
    %v191 = vshll.u32 920167782, %v176
    %v192 = vshrl.u32 1326507024, %v177
    %v193 = vor.u32 %v191, %v192
    %vm194 = vcmp.lt.s32.totalorder %v175, 1
    %vm195 = vcmp.lt.s32.totalorder %v175, 2
    %vm196 = vcmp.lt.s32.totalorder %v175, 3
    %vm197 = vcmp.lt.s32.totalorder %v175, 4
    %v198 = vsel %vm194, %v178, %v181
    %v199 = vsel %vm197, %v187, 2102212464
    %v200 = vsel %vm196, %v184, %v199
    %v201 = vsel %vm195, %v198, %v200
    %v202 = vsel %vm194, %v181, %v184
    %v203 = vsel %vm197, %v190, 920167782
    %v204 = vsel %vm196, %v187, %v203
    %v205 = vsel %vm195, %v202, %v204
    %v206 = vsel %vm194, %v184, %v187
    %v207 = vsel %vm197, %v193, 1326507024
    %v208 = vsel %vm196, %v190, %v207
    %v209 = vsel %vm195, %v206, %v208
    %v210 = vshll.u32 %v170, 8
    %v211 = vmul.u32.u64.compose %v210, %v209
    %v212 = vextract.low.u32 %v211
    %v213 = vextract.high.u32 %v211
    %v214 = vmul.u32.u64.compose %v210, %v205
    %v215 = vextract.low.u32 %v214
    %v216 = vextract.high.u32 %v214
    %v217 = vmul.u32 %v210, %v201
    %v218 = vadd.s32 %v213, %v215
    %vm219 = vc.u32 %v213, %v215
    %v220 = vadd.s32 %v216, 1
    %v221 = vsel %vm219, %v220, %v216
    %v222 = vadd.s32 %v217, %v221
    %v223 = vadd.s32 %v222, 536870912
    %v224 = vshrl.u32 %v223, 30
    %v225 = vshll.u32 %v224, 30
    %v226 = vsub.s32 %v222, %v225
    %vm227 = vcmp.lt.s32.totalorder %v226, 0
    %v228 = vsub.s32 0, %v226
    %v229 = vsel %vm227, %v228, %v226
    %v230 = vclz %v229
    %v231 = vsub.s32 %v230, 2
    %vm232 = vcmp.gt.s32.totalorder 0, %v231
    %v233 = vsel %vm232, 0, %v231
    %v234 = vsub.s32 32, %v233
    %v235 = vshll.u32 %v226, %v233
    %v236 = vshrl.u32 %v218, %v234
    %v237 = vor.u32 %v235, %v236
    %v238 = vsub.s32 4294967266, %v233
    %v239 = vadd.s32 %v238, 127
    %v240 = vshll.u32 %v239, 23
    %v241 = vor.u32 4788187, %v240
    %v242 = vand.u32 2147483647, %v241
    %v244 = vcvt.s32.f32 %v237
    %v245 = vmul.f32 %v244, %v242
    %v246 = vxor.u32 %v245, 2147483648
    %v247 = vsel %vm164, %v246, %v245
    %v248 = vsub.s32 4, %v224
    %v249 = vsel %vm164, %v248, %v224
    %v250 = vsel %vm163, %v130, %v247
    %v251 = vsel %vm163, 0, %v249
    %v252 = vcosq.f32.pop %v250
    %v253 = vsinq.f32.pop %v250
    %vm254 = vweird.f32 %v130
    %v255 = vadd.s32 %v251, 3
    %v256 = vand.u32 %v255, 3
    %vm257 = vcmp.lt.s32.totalorder %v256, 2
    %vm258 = vcmp.eq.s32.totalorder %v256, 0
    %v259 = vxor.u32 %v253, 2147483648
    %v260 = vsel %vm258, %v252, %v259
    %vm261 = vcmp.eq.s32.totalorder %v256, 2
    %v262 = vxor.u32 %v252, 2147483648
    %v263 = vsel %vm261, %v262, %v253
    %v264 = vsel %vm257, %v260, %v263
    %v265 = vsel %vm254, nan, %v264
    %v266 = vand.u32 2147483647, %v131
    %vm267 = vcmp.le.f32.partialorder %v266, 0.7853982
    %vm268 = vcmp.lt.s32.totalorder %v131, 0
    %v269 = vand.u32 %v131, 2139095040
    %v270 = vshrl.u32 %v269, 23
    %v271 = vsub.s32 %v270, 127
    %v272 = vand.u32 2147483647, %v131
    %v273 = vand.u32 %v272, 8388607
    %v274 = vor.u32 %v273, 8388608
    %v275 = vsub.s32 0, %v274
    %v276 = vadd.s32 %v271, 1
    %vm277 = vcmp.gt.s32.totalorder %v276, 0
    %v278 = vsel %vm277, %v276, 0
    %v279 = vshrl.u32 %v278, 5
    %v280 = vand.u32 %v278, 31
    %v281 = vsub.s32 32, %v280
    %v282 = vshrl.u32 683565275, %v281
    %v283 = vshll.u32 683565275, %v280
    %v284 = vshrl.u32 2475754826, %v281
    %v285 = vor.u32 %v283, %v284
    %v286 = vshll.u32 2475754826, %v280
    %v287 = vshrl.u32 2131351028, %v281
    %v288 = vor.u32 %v286, %v287
    %v289 = vshll.u32 2131351028, %v280
    %v290 = vshrl.u32 2102212464, %v281
    %v291 = vor.u32 %v289, %v290
    %v292 = vshll.u32 2102212464, %v280
    %v293 = vshrl.u32 920167782, %v281
    %v294 = vor.u32 %v292, %v293
    %v295 = vshll.u32 920167782, %v280
    %v296 = vshrl.u32 1326507024, %v281
    %v297 = vor.u32 %v295, %v296
    %vm298 = vcmp.lt.s32.totalorder %v279, 1
    %vm299 = vcmp.lt.s32.totalorder %v279, 2
    %vm300 = vcmp.lt.s32.totalorder %v279, 3
    %vm301 = vcmp.lt.s32.totalorder %v279, 4
    %v302 = vsel %vm298, %v282, %v285
    %v303 = vsel %vm301, %v291, 2102212464
    %v304 = vsel %vm300, %v288, %v303
    %v305 = vsel %vm299, %v302, %v304
    %v306 = vsel %vm298, %v285, %v288
    %v307 = vsel %vm301, %v294, 920167782
    %v308 = vsel %vm300, %v291, %v307
    %v309 = vsel %vm299, %v306, %v308
    %v310 = vsel %vm298, %v288, %v291
    %v311 = vsel %vm301, %v297, 1326507024
    %v312 = vsel %vm300, %v294, %v311
    %v313 = vsel %vm299, %v310, %v312
    %v314 = vshll.u32 %v274, 8
    %v315 = vmul.u32.u64.compose %v314, %v313
    %v316 = vextract.low.u32 %v315
    %v317 = vextract.high.u32 %v315
    %v318 = vmul.u32.u64.compose %v314, %v309
    %v319 = vextract.low.u32 %v318
    %v320 = vextract.high.u32 %v318
    %v321 = vmul.u32 %v314, %v305
    %v322 = vadd.s32 %v317, %v319
    %vm323 = vc.u32 %v317, %v319
    %v324 = vadd.s32 %v320, 1
    %v325 = vsel %vm323, %v324, %v320
    %v326 = vadd.s32 %v321, %v325
    %v327 = vadd.s32 %v326, 536870912
    %v328 = vshrl.u32 %v327, 30
    %v329 = vshll.u32 %v328, 30
    %v330 = vsub.s32 %v326, %v329
    %vm331 = vcmp.lt.s32.totalorder %v330, 0
    %v332 = vsub.s32 0, %v330
    %v333 = vsel %vm331, %v332, %v330
    %v334 = vclz %v333
    %v335 = vsub.s32 %v334, 2
    %vm336 = vcmp.gt.s32.totalorder 0, %v335
    %v337 = vsel %vm336, 0, %v335
    %v338 = vsub.s32 32, %v337
    %v339 = vshll.u32 %v330, %v337
    %v340 = vshrl.u32 %v322, %v338
    %v341 = vor.u32 %v339, %v340
    %v342 = vsub.s32 4294967266, %v337
    %v343 = vadd.s32 %v342, 127
    %v344 = vshll.u32 %v343, 23
    %v345 = vor.u32 4788187, %v344
    %v346 = vand.u32 2147483647, %v345
    %v348 = vcvt.s32.f32 %v341
    %v349 = vmul.f32 %v348, %v346
    %v350 = vxor.u32 %v349, 2147483648
    %v351 = vsel %vm268, %v350, %v349
    %v352 = vsub.s32 4, %v328
    %v353 = vsel %vm268, %v352, %v328
    %v354 = vsel %vm267, %v131, %v351
    %v355 = vsel %vm267, 0, %v353
    %v356 = vcosq.f32.pop %v354
    %v357 = vsinq.f32.pop %v354
    %vm358 = vweird.f32 %v131
    %v359 = vadd.s32 %v355, 3
    %v360 = vand.u32 %v359, 3
    %vm361 = vcmp.lt.s32.totalorder %v360, 2
    %vm362 = vcmp.eq.s32.totalorder %v360, 0
    %v363 = vxor.u32 %v357, 2147483648
    %v364 = vsel %vm362, %v356, %v363
    %vm365 = vcmp.eq.s32.totalorder %v360, 2
    %v366 = vxor.u32 %v356, 2147483648
    %v367 = vsel %vm365, %v366, %v357
    %v368 = vsel %vm361, %v364, %v367
    %v369 = vsel %vm358, nan, %v368
    %v370 = vand.u32 2147483647, %v132
    %vm371 = vcmp.le.f32.partialorder %v370, 0.7853982
    %vm372 = vcmp.lt.s32.totalorder %v132, 0
    %v373 = vand.u32 %v132, 2139095040
    %v374 = vshrl.u32 %v373, 23
    %v375 = vsub.s32 %v374, 127
    %v376 = vand.u32 2147483647, %v132
    %v377 = vand.u32 %v376, 8388607
    %v378 = vor.u32 %v377, 8388608
    %v379 = vsub.s32 0, %v378
    %v380 = vadd.s32 %v375, 1
    %vm381 = vcmp.gt.s32.totalorder %v380, 0
    %v382 = vsel %vm381, %v380, 0
    %v383 = vshrl.u32 %v382, 5
    %v384 = vand.u32 %v382, 31
    %v385 = vsub.s32 32, %v384
    %v386 = vshrl.u32 683565275, %v385
    %v387 = vshll.u32 683565275, %v384
    %v388 = vshrl.u32 2475754826, %v385
    %v389 = vor.u32 %v387, %v388
    %v390 = vshll.u32 2475754826, %v384
    %v391 = vshrl.u32 2131351028, %v385
    %v392 = vor.u32 %v390, %v391
    %v393 = vshll.u32 2131351028, %v384
    %v394 = vshrl.u32 2102212464, %v385
    %v395 = vor.u32 %v393, %v394
    %v396 = vshll.u32 2102212464, %v384
    %v397 = vshrl.u32 920167782, %v385
    %v398 = vor.u32 %v396, %v397
    %v399 = vshll.u32 920167782, %v384
    %v400 = vshrl.u32 1326507024, %v385
    %v401 = vor.u32 %v399, %v400
    %vm402 = vcmp.lt.s32.totalorder %v383, 1
    %vm403 = vcmp.lt.s32.totalorder %v383, 2
    %vm404 = vcmp.lt.s32.totalorder %v383, 3
    %vm405 = vcmp.lt.s32.totalorder %v383, 4
    %v406 = vsel %vm402, %v386, %v389
    %v407 = vsel %vm405, %v395, 2102212464
    %v408 = vsel %vm404, %v392, %v407
    %v409 = vsel %vm403, %v406, %v408
    %v410 = vsel %vm402, %v389, %v392
    %v411 = vsel %vm405, %v398, 920167782
    %v412 = vsel %vm404, %v395, %v411
    %v413 = vsel %vm403, %v410, %v412
    %v414 = vsel %vm402, %v392, %v395
    %v415 = vsel %vm405, %v401, 1326507024
    %v416 = vsel %vm404, %v398, %v415
    %v417 = vsel %vm403, %v414, %v416
    %v418 = vshll.u32 %v378, 8
    %v419 = vmul.u32.u64.compose %v418, %v417
    %v420 = vextract.low.u32 %v419
    %v421 = vextract.high.u32 %v419
    %v422 = vmul.u32.u64.compose %v418, %v413
    %v423 = vextract.low.u32 %v422
    %v424 = vextract.high.u32 %v422
    %v425 = vmul.u32 %v418, %v409
    %v426 = vadd.s32 %v421, %v423
    %vm427 = vc.u32 %v421, %v423
    %v428 = vadd.s32 %v424, 1
    %v429 = vsel %vm427, %v428, %v424
    %v430 = vadd.s32 %v425, %v429
    %v431 = vadd.s32 %v430, 536870912
    %v432 = vshrl.u32 %v431, 30
    %v433 = vshll.u32 %v432, 30
    %v434 = vsub.s32 %v430, %v433
    %vm435 = vcmp.lt.s32.totalorder %v434, 0
    %v436 = vsub.s32 0, %v434
    %v437 = vsel %vm435, %v436, %v434
    %v438 = vclz %v437
    %v439 = vsub.s32 %v438, 2
    %vm440 = vcmp.gt.s32.totalorder 0, %v439
    %v441 = vsel %vm440, 0, %v439
    %v442 = vsub.s32 32, %v441
    %v443 = vshll.u32 %v434, %v441
    %v444 = vshrl.u32 %v426, %v442
    %v445 = vor.u32 %v443, %v444
    %v446 = vsub.s32 4294967266, %v441
    %v447 = vadd.s32 %v446, 127
    %v448 = vshll.u32 %v447, 23
    %v449 = vor.u32 4788187, %v448
    %v450 = vand.u32 2147483647, %v449
    %v452 = vcvt.s32.f32 %v445
    %v453 = vmul.f32 %v452, %v450
    %v454 = vxor.u32 %v453, 2147483648
    %v455 = vsel %vm372, %v454, %v453
    %v456 = vsub.s32 4, %v432
    %v457 = vsel %vm372, %v456, %v432
    %v458 = vsel %vm371, %v132, %v455
    %v459 = vsel %vm371, 0, %v457
    %v460 = vcosq.f32.pop %v458
    %v461 = vsinq.f32.pop %v458
    %vm462 = vweird.f32 %v132
    %v463 = vadd.s32 %v459, 3
    %v464 = vand.u32 %v463, 3
    %vm465 = vcmp.lt.s32.totalorder %v464, 2
    %vm466 = vcmp.eq.s32.totalorder %v464, 0
    %v467 = vxor.u32 %v461, 2147483648
    %v468 = vsel %vm466, %v460, %v467
    %vm469 = vcmp.eq.s32.totalorder %v464, 2
    %v470 = vxor.u32 %v460, 2147483648
    %v471 = vsel %vm469, %v470, %v461
    %v472 = vsel %vm465, %v468, %v471
    %v473 = vsel %vm462, nan, %v472
    %v474 = vand.u32 2147483647, %v133
    %vm475 = vcmp.le.f32.partialorder %v474, 0.7853982
    %vm476 = vcmp.lt.s32.totalorder %v133, 0
    %v477 = vand.u32 %v133, 2139095040
    %v478 = vshrl.u32 %v477, 23
    %v479 = vsub.s32 %v478, 127
    %v480 = vand.u32 2147483647, %v133
    %v481 = vand.u32 %v480, 8388607
    %v482 = vor.u32 %v481, 8388608
    %v483 = vsub.s32 0, %v482
    %v484 = vadd.s32 %v479, 1
    %vm485 = vcmp.gt.s32.totalorder %v484, 0
    %v486 = vsel %vm485, %v484, 0
    %v487 = vshrl.u32 %v486, 5
    %v488 = vand.u32 %v486, 31
    %v489 = vsub.s32 32, %v488
    %v490 = vshrl.u32 683565275, %v489
    %v491 = vshll.u32 683565275, %v488
    %v492 = vshrl.u32 2475754826, %v489
    %v493 = vor.u32 %v491, %v492
    %v494 = vshll.u32 2475754826, %v488
    %v495 = vshrl.u32 2131351028, %v489
    %v496 = vor.u32 %v494, %v495
    %v497 = vshll.u32 2131351028, %v488
    %v498 = vshrl.u32 2102212464, %v489
    %v499 = vor.u32 %v497, %v498
    %v500 = vshll.u32 2102212464, %v488
    %v501 = vshrl.u32 920167782, %v489
    %v502 = vor.u32 %v500, %v501
    %v503 = vshll.u32 920167782, %v488
    %v504 = vshrl.u32 1326507024, %v489
    %v505 = vor.u32 %v503, %v504
    %vm506 = vcmp.lt.s32.totalorder %v487, 1
    %vm507 = vcmp.lt.s32.totalorder %v487, 2
    %vm508 = vcmp.lt.s32.totalorder %v487, 3
    %vm509 = vcmp.lt.s32.totalorder %v487, 4
    %v510 = vsel %vm506, %v490, %v493
    %v511 = vsel %vm509, %v499, 2102212464
    %v512 = vsel %vm508, %v496, %v511
    %v513 = vsel %vm507, %v510, %v512
    %v514 = vsel %vm506, %v493, %v496
    %v515 = vsel %vm509, %v502, 920167782
    %v516 = vsel %vm508, %v499, %v515
    %v517 = vsel %vm507, %v514, %v516
    %v518 = vsel %vm506, %v496, %v499
    %v519 = vsel %vm509, %v505, 1326507024
    %v520 = vsel %vm508, %v502, %v519
    %v521 = vsel %vm507, %v518, %v520
    %v522 = vshll.u32 %v482, 8
    %v523 = vmul.u32.u64.compose %v522, %v521
    %v524 = vextract.low.u32 %v523
    %v525 = vextract.high.u32 %v523
    %v526 = vmul.u32.u64.compose %v522, %v517
    %v527 = vextract.low.u32 %v526
    %v528 = vextract.high.u32 %v526
    %v529 = vmul.u32 %v522, %v513
    %v530 = vadd.s32 %v525, %v527
    %vm531 = vc.u32 %v525, %v527
    %v532 = vadd.s32 %v528, 1
    %v533 = vsel %vm531, %v532, %v528
    %v534 = vadd.s32 %v529, %v533
    %v535 = vadd.s32 %v534, 536870912
    %v536 = vshrl.u32 %v535, 30
    %v537 = vshll.u32 %v536, 30
    %v538 = vsub.s32 %v534, %v537
    %vm539 = vcmp.lt.s32.totalorder %v538, 0
    %v540 = vsub.s32 0, %v538
    %v541 = vsel %vm539, %v540, %v538
    %v542 = vclz %v541
    %v543 = vsub.s32 %v542, 2
    %vm544 = vcmp.gt.s32.totalorder 0, %v543
    %v545 = vsel %vm544, 0, %v543
    %v546 = vsub.s32 32, %v545
    %v547 = vshll.u32 %v538, %v545
    %v548 = vshrl.u32 %v530, %v546
    %v549 = vor.u32 %v547, %v548
    %v550 = vsub.s32 4294967266, %v545
    %v551 = vadd.s32 %v550, 127
    %v552 = vshll.u32 %v551, 23
    %v553 = vor.u32 4788187, %v552
    %v554 = vand.u32 2147483647, %v553
    %v556 = vcvt.s32.f32 %v549
    %v557 = vmul.f32 %v556, %v554
    %v558 = vxor.u32 %v557, 2147483648
    %v559 = vsel %vm476, %v558, %v557
    %v560 = vsub.s32 4, %v536
    %v561 = vsel %vm476, %v560, %v536
    %v562 = vsel %vm475, %v133, %v559
    %v563 = vsel %vm475, 0, %v561
    %v564 = vcosq.f32.pop %v562
    %v565 = vsinq.f32.pop %v562
    %vm566 = vweird.f32 %v133
    %v567 = vadd.s32 %v563, 3
    %v568 = vand.u32 %v567, 3
    %vm569 = vcmp.lt.s32.totalorder %v568, 2
    %vm570 = vcmp.eq.s32.totalorder %v568, 0
    %v571 = vxor.u32 %v565, 2147483648
    %v572 = vsel %vm570, %v564, %v571
    %vm573 = vcmp.eq.s32.totalorder %v568, 2
    %v574 = vxor.u32 %v564, 2147483648
    %v575 = vsel %vm573, %v574, %v565
    %v576 = vsel %vm569, %v572, %v575
    %v577 = vsel %vm566, nan, %v576
    %v578 = vand.u32 2147483647, %v134
    %vm579 = vcmp.le.f32.partialorder %v578, 0.7853982
    %vm580 = vcmp.lt.s32.totalorder %v134, 0
    %v581 = vand.u32 %v134, 2139095040
    %v582 = vshrl.u32 %v581, 23
    %v583 = vsub.s32 %v582, 127
    %v584 = vand.u32 2147483647, %v134
    %v585 = vand.u32 %v584, 8388607
    %v586 = vor.u32 %v585, 8388608
    %v587 = vsub.s32 0, %v586
    %v588 = vadd.s32 %v583, 1
    %vm589 = vcmp.gt.s32.totalorder %v588, 0
    %v590 = vsel %vm589, %v588, 0
    %v591 = vshrl.u32 %v590, 5
    %v592 = vand.u32 %v590, 31
    %v593 = vsub.s32 32, %v592
    %v594 = vshrl.u32 683565275, %v593
    %v595 = vshll.u32 683565275, %v592
    %v596 = vshrl.u32 2475754826, %v593
    %v597 = vor.u32 %v595, %v596
    %v598 = vshll.u32 2475754826, %v592
    %v599 = vshrl.u32 2131351028, %v593
    %v600 = vor.u32 %v598, %v599
    %v601 = vshll.u32 2131351028, %v592
    %v602 = vshrl.u32 2102212464, %v593
    %v603 = vor.u32 %v601, %v602
    %v604 = vshll.u32 2102212464, %v592
    %v605 = vshrl.u32 920167782, %v593
    %v606 = vor.u32 %v604, %v605
    %v607 = vshll.u32 920167782, %v592
    %v608 = vshrl.u32 1326507024, %v593
    %v609 = vor.u32 %v607, %v608
    %vm610 = vcmp.lt.s32.totalorder %v591, 1
    %vm611 = vcmp.lt.s32.totalorder %v591, 2
    %vm612 = vcmp.lt.s32.totalorder %v591, 3
    %vm613 = vcmp.lt.s32.totalorder %v591, 4
    %v614 = vsel %vm610, %v594, %v597
    %v615 = vsel %vm613, %v603, 2102212464
    %v616 = vsel %vm612, %v600, %v615
    %v617 = vsel %vm611, %v614, %v616
    %v618 = vsel %vm610, %v597, %v600
    %v619 = vsel %vm613, %v606, 920167782
    %v620 = vsel %vm612, %v603, %v619
    %v621 = vsel %vm611, %v618, %v620
    %v622 = vsel %vm610, %v600, %v603
    %v623 = vsel %vm613, %v609, 1326507024
    %v624 = vsel %vm612, %v606, %v623
    %v625 = vsel %vm611, %v622, %v624
    %v626 = vshll.u32 %v586, 8
    %v627 = vmul.u32.u64.compose %v626, %v625
    %v628 = vextract.low.u32 %v627
    %v629 = vextract.high.u32 %v627
    %v630 = vmul.u32.u64.compose %v626, %v621
    %v631 = vextract.low.u32 %v630
    %v632 = vextract.high.u32 %v630
    %v633 = vmul.u32 %v626, %v617
    %v634 = vadd.s32 %v629, %v631
    %vm635 = vc.u32 %v629, %v631
    %v636 = vadd.s32 %v632, 1
    %v637 = vsel %vm635, %v636, %v632
    %v638 = vadd.s32 %v633, %v637
    %v639 = vadd.s32 %v638, 536870912
    %v640 = vshrl.u32 %v639, 30
    %v641 = vshll.u32 %v640, 30
    %v642 = vsub.s32 %v638, %v641
    %vm643 = vcmp.lt.s32.totalorder %v642, 0
    %v644 = vsub.s32 0, %v642
    %v645 = vsel %vm643, %v644, %v642
    %v646 = vclz %v645
    %v647 = vsub.s32 %v646, 2
    %vm648 = vcmp.gt.s32.totalorder 0, %v647
    %v649 = vsel %vm648, 0, %v647
    %v650 = vsub.s32 32, %v649
    %v651 = vshll.u32 %v642, %v649
    %v652 = vshrl.u32 %v634, %v650
    %v653 = vor.u32 %v651, %v652
    %v654 = vsub.s32 4294967266, %v649
    %v655 = vadd.s32 %v654, 127
    %v656 = vshll.u32 %v655, 23
    %v657 = vor.u32 4788187, %v656
    %v658 = vand.u32 2147483647, %v657
    %v660 = vcvt.s32.f32 %v653
    %v661 = vmul.f32 %v660, %v658
    %v662 = vxor.u32 %v661, 2147483648
    %v663 = vsel %vm580, %v662, %v661
    %v664 = vsub.s32 4, %v640
    %v665 = vsel %vm580, %v664, %v640
    %v666 = vsel %vm579, %v134, %v663
    %v667 = vsel %vm579, 0, %v665
    %v668 = vcosq.f32.pop %v666
    %v669 = vsinq.f32.pop %v666
    %vm670 = vweird.f32 %v134
    %v671 = vadd.s32 %v667, 3
    %v672 = vand.u32 %v671, 3
    %vm673 = vcmp.lt.s32.totalorder %v672, 2
    %vm674 = vcmp.eq.s32.totalorder %v672, 0
    %v675 = vxor.u32 %v669, 2147483648
    %v676 = vsel %vm674, %v668, %v675
    %vm677 = vcmp.eq.s32.totalorder %v672, 2
    %v678 = vxor.u32 %v668, 2147483648
    %v679 = vsel %vm677, %v678, %v669
    %v680 = vsel %vm673, %v676, %v679
    %v681 = vsel %vm670, nan, %v680
    %v682 = vand.u32 2147483647, %v135
    %vm683 = vcmp.le.f32.partialorder %v682, 0.7853982
    %vm684 = vcmp.lt.s32.totalorder %v135, 0
    %v685 = vand.u32 %v135, 2139095040
    %v686 = vshrl.u32 %v685, 23
    %v687 = vsub.s32 %v686, 127
    %v688 = vand.u32 2147483647, %v135
    %v689 = vand.u32 %v688, 8388607
    %v690 = vor.u32 %v689, 8388608
    %v691 = vsub.s32 0, %v690
    %v692 = vadd.s32 %v687, 1
    %vm693 = vcmp.gt.s32.totalorder %v692, 0
    %v694 = vsel %vm693, %v692, 0
    %v695 = vshrl.u32 %v694, 5
    %v696 = vand.u32 %v694, 31
    %v697 = vsub.s32 32, %v696
    %v698 = vshrl.u32 683565275, %v697
    %v699 = vshll.u32 683565275, %v696
    %v700 = vshrl.u32 2475754826, %v697
    %v701 = vor.u32 %v699, %v700
    %v702 = vshll.u32 2475754826, %v696
    %v703 = vshrl.u32 2131351028, %v697
    %v704 = vor.u32 %v702, %v703
    %v705 = vshll.u32 2131351028, %v696
    %v706 = vshrl.u32 2102212464, %v697
    %v707 = vor.u32 %v705, %v706
    %v708 = vshll.u32 2102212464, %v696
    %v709 = vshrl.u32 920167782, %v697
    %v710 = vor.u32 %v708, %v709
    %v711 = vshll.u32 920167782, %v696
    %v712 = vshrl.u32 1326507024, %v697
    %v713 = vor.u32 %v711, %v712
    %vm714 = vcmp.lt.s32.totalorder %v695, 1
    %vm715 = vcmp.lt.s32.totalorder %v695, 2
    %vm716 = vcmp.lt.s32.totalorder %v695, 3
    %vm717 = vcmp.lt.s32.totalorder %v695, 4
    %v718 = vsel %vm714, %v698, %v701
    %v719 = vsel %vm717, %v707, 2102212464
    %v720 = vsel %vm716, %v704, %v719
    %v721 = vsel %vm715, %v718, %v720
    %v722 = vsel %vm714, %v701, %v704
    %v723 = vsel %vm717, %v710, 920167782
    %v724 = vsel %vm716, %v707, %v723
    %v725 = vsel %vm715, %v722, %v724
    %v726 = vsel %vm714, %v704, %v707
    %v727 = vsel %vm717, %v713, 1326507024
    %v728 = vsel %vm716, %v710, %v727
    %v729 = vsel %vm715, %v726, %v728
    %v730 = vshll.u32 %v690, 8
    %v731 = vmul.u32.u64.compose %v730, %v729
    %v732 = vextract.low.u32 %v731
    %v733 = vextract.high.u32 %v731
    %v734 = vmul.u32.u64.compose %v730, %v725
    %v735 = vextract.low.u32 %v734
    %v736 = vextract.high.u32 %v734
    %v737 = vmul.u32 %v730, %v721
    %v738 = vadd.s32 %v733, %v735
    %vm739 = vc.u32 %v733, %v735
    %v740 = vadd.s32 %v736, 1
    %v741 = vsel %vm739, %v740, %v736
    %v742 = vadd.s32 %v737, %v741
    %v743 = vadd.s32 %v742, 536870912
    %v744 = vshrl.u32 %v743, 30
    %v745 = vshll.u32 %v744, 30
    %v746 = vsub.s32 %v742, %v745
    %vm747 = vcmp.lt.s32.totalorder %v746, 0
    %v748 = vsub.s32 0, %v746
    %v749 = vsel %vm747, %v748, %v746
    %v750 = vclz %v749
    %v751 = vsub.s32 %v750, 2
    %vm752 = vcmp.gt.s32.totalorder 0, %v751
    %v753 = vsel %vm752, 0, %v751
    %v754 = vsub.s32 32, %v753
    %v755 = vshll.u32 %v746, %v753
    %v756 = vshrl.u32 %v738, %v754
    %v757 = vor.u32 %v755, %v756
    %v758 = vsub.s32 4294967266, %v753
    %v759 = vadd.s32 %v758, 127
    %v760 = vshll.u32 %v759, 23
    %v761 = vor.u32 4788187, %v760
    %v762 = vand.u32 2147483647, %v761
    %v764 = vcvt.s32.f32 %v757
    %v765 = vmul.f32 %v764, %v762
    %v766 = vxor.u32 %v765, 2147483648
    %v767 = vsel %vm684, %v766, %v765
    %v768 = vsub.s32 4, %v744
    %v769 = vsel %vm684, %v768, %v744
    %v770 = vsel %vm683, %v135, %v767
    %v771 = vsel %vm683, 0, %v769
    %v772 = vcosq.f32.pop %v770
    %v773 = vsinq.f32.pop %v770
    %vm774 = vweird.f32 %v135
    %v775 = vadd.s32 %v771, 3
    %v776 = vand.u32 %v775, 3
    %vm777 = vcmp.lt.s32.totalorder %v776, 2
    %vm778 = vcmp.eq.s32.totalorder %v776, 0
    %v779 = vxor.u32 %v773, 2147483648
    %v780 = vsel %vm778, %v772, %v779
    %vm781 = vcmp.eq.s32.totalorder %v776, 2
    %v782 = vxor.u32 %v772, 2147483648
    %v783 = vsel %vm781, %v782, %v773
    %v784 = vsel %vm777, %v780, %v783
    %v785 = vsel %vm774, nan, %v784
    %v786 = vand.u32 2147483647, %v136
    %vm787 = vcmp.le.f32.partialorder %v786, 0.7853982
    %vm788 = vcmp.lt.s32.totalorder %v136, 0
    %v789 = vand.u32 %v136, 2139095040
    %v790 = vshrl.u32 %v789, 23
    %v791 = vsub.s32 %v790, 127
    %v792 = vand.u32 2147483647, %v136
    %v793 = vand.u32 %v792, 8388607
    %v794 = vor.u32 %v793, 8388608
    %v795 = vsub.s32 0, %v794
    %v796 = vadd.s32 %v791, 1
    %vm797 = vcmp.gt.s32.totalorder %v796, 0
    %v798 = vsel %vm797, %v796, 0
    %v799 = vshrl.u32 %v798, 5
    %v800 = vand.u32 %v798, 31
    %v801 = vsub.s32 32, %v800
    %v802 = vshrl.u32 683565275, %v801
    %v803 = vshll.u32 683565275, %v800
    %v804 = vshrl.u32 2475754826, %v801
    %v805 = vor.u32 %v803, %v804
    %v806 = vshll.u32 2475754826, %v800
    %v807 = vshrl.u32 2131351028, %v801
    %v808 = vor.u32 %v806, %v807
    %v809 = vshll.u32 2131351028, %v800
    %v810 = vshrl.u32 2102212464, %v801
    %v811 = vor.u32 %v809, %v810
    %v812 = vshll.u32 2102212464, %v800
    %v813 = vshrl.u32 920167782, %v801
    %v814 = vor.u32 %v812, %v813
    %v815 = vshll.u32 920167782, %v800
    %v816 = vshrl.u32 1326507024, %v801
    %v817 = vor.u32 %v815, %v816
    %vm818 = vcmp.lt.s32.totalorder %v799, 1
    %vm819 = vcmp.lt.s32.totalorder %v799, 2
    %vm820 = vcmp.lt.s32.totalorder %v799, 3
    %vm821 = vcmp.lt.s32.totalorder %v799, 4
    %v822 = vsel %vm818, %v802, %v805
    %v823 = vsel %vm821, %v811, 2102212464
    %v824 = vsel %vm820, %v808, %v823
    %v825 = vsel %vm819, %v822, %v824
    %v826 = vsel %vm818, %v805, %v808
    %v827 = vsel %vm821, %v814, 920167782
    %v828 = vsel %vm820, %v811, %v827
    %v829 = vsel %vm819, %v826, %v828
    %v830 = vsel %vm818, %v808, %v811
    %v831 = vsel %vm821, %v817, 1326507024
    %v832 = vsel %vm820, %v814, %v831
    %v833 = vsel %vm819, %v830, %v832
    %v834 = vshll.u32 %v794, 8
    %v835 = vmul.u32.u64.compose %v834, %v833
    %v836 = vextract.low.u32 %v835
    %v837 = vextract.high.u32 %v835
    %v838 = vmul.u32.u64.compose %v834, %v829
    %v839 = vextract.low.u32 %v838
    %v840 = vextract.high.u32 %v838
    %v841 = vmul.u32 %v834, %v825
    %v842 = vadd.s32 %v837, %v839
    %vm843 = vc.u32 %v837, %v839
    %v844 = vadd.s32 %v840, 1
    %v845 = vsel %vm843, %v844, %v840
    %v846 = vadd.s32 %v841, %v845
    %v847 = vadd.s32 %v846, 536870912
    %v848 = vshrl.u32 %v847, 30
    %v849 = vshll.u32 %v848, 30
    %v850 = vsub.s32 %v846, %v849
    %vm851 = vcmp.lt.s32.totalorder %v850, 0
    %v852 = vsub.s32 0, %v850
    %v853 = vsel %vm851, %v852, %v850
    %v854 = vclz %v853
    %v855 = vsub.s32 %v854, 2
    %vm856 = vcmp.gt.s32.totalorder 0, %v855
    %v857 = vsel %vm856, 0, %v855
    %v858 = vsub.s32 32, %v857
    %v859 = vshll.u32 %v850, %v857
    %v860 = vshrl.u32 %v842, %v858
    %v861 = vor.u32 %v859, %v860
    %v862 = vsub.s32 4294967266, %v857
    %v863 = vadd.s32 %v862, 127
    %v864 = vshll.u32 %v863, 23
    %v865 = vor.u32 4788187, %v864
    %v866 = vand.u32 2147483647, %v865
    %v868 = vcvt.s32.f32 %v861
    %v869 = vmul.f32 %v868, %v866
    %v870 = vxor.u32 %v869, 2147483648
    %v871 = vsel %vm788, %v870, %v869
    %v872 = vsub.s32 4, %v848
    %v873 = vsel %vm788, %v872, %v848
    %v874 = vsel %vm787, %v136, %v871
    %v875 = vsel %vm787, 0, %v873
    %v876 = vcosq.f32.pop %v874
    %v877 = vsinq.f32.pop %v874
    %vm878 = vweird.f32 %v136
    %v879 = vadd.s32 %v875, 3
    %v880 = vand.u32 %v879, 3
    %vm881 = vcmp.lt.s32.totalorder %v880, 2
    %vm882 = vcmp.eq.s32.totalorder %v880, 0
    %v883 = vxor.u32 %v877, 2147483648
    %v884 = vsel %vm882, %v876, %v883
    %vm885 = vcmp.eq.s32.totalorder %v880, 2
    %v886 = vxor.u32 %v876, 2147483648
    %v887 = vsel %vm885, %v886, %v877
    %v888 = vsel %vm881, %v884, %v887
    %v889 = vsel %vm878, nan, %v888
    %v890 = vand.u32 2147483647, %v137
    %vm891 = vcmp.le.f32.partialorder %v890, 0.7853982
    %vm892 = vcmp.lt.s32.totalorder %v137, 0
    %v893 = vand.u32 %v137, 2139095040
    %v894 = vshrl.u32 %v893, 23
    %v895 = vsub.s32 %v894, 127
    %v896 = vand.u32 2147483647, %v137
    %v897 = vand.u32 %v896, 8388607
    %v898 = vor.u32 %v897, 8388608
    %v899 = vsub.s32 0, %v898
    %v900 = vadd.s32 %v895, 1
    %vm901 = vcmp.gt.s32.totalorder %v900, 0
    %v902 = vsel %vm901, %v900, 0
    %v903 = vshrl.u32 %v902, 5
    %v904 = vand.u32 %v902, 31
    %v905 = vsub.s32 32, %v904
    %v906 = vshrl.u32 683565275, %v905
    %v907 = vshll.u32 683565275, %v904
    %v908 = vshrl.u32 2475754826, %v905
    %v909 = vor.u32 %v907, %v908
    %v910 = vshll.u32 2475754826, %v904
    %v911 = vshrl.u32 2131351028, %v905
    %v912 = vor.u32 %v910, %v911
    %v913 = vshll.u32 2131351028, %v904
    %v914 = vshrl.u32 2102212464, %v905
    %v915 = vor.u32 %v913, %v914
    %v916 = vshll.u32 2102212464, %v904
    %v917 = vshrl.u32 920167782, %v905
    %v918 = vor.u32 %v916, %v917
    %v919 = vshll.u32 920167782, %v904
    %v920 = vshrl.u32 1326507024, %v905
    %v921 = vor.u32 %v919, %v920
    %vm922 = vcmp.lt.s32.totalorder %v903, 1
    %vm923 = vcmp.lt.s32.totalorder %v903, 2
    %vm924 = vcmp.lt.s32.totalorder %v903, 3
    %vm925 = vcmp.lt.s32.totalorder %v903, 4
    %v926 = vsel %vm922, %v906, %v909
    %v927 = vsel %vm925, %v915, 2102212464
    %v928 = vsel %vm924, %v912, %v927
    %v929 = vsel %vm923, %v926, %v928
    %v930 = vsel %vm922, %v909, %v912
    %v931 = vsel %vm925, %v918, 920167782
    %v932 = vsel %vm924, %v915, %v931
    %v933 = vsel %vm923, %v930, %v932
    %v934 = vsel %vm922, %v912, %v915
    %v935 = vsel %vm925, %v921, 1326507024
    %v936 = vsel %vm924, %v918, %v935
    %v937 = vsel %vm923, %v934, %v936
    %v938 = vshll.u32 %v898, 8
    %v939 = vmul.u32.u64.compose %v938, %v937
    %v940 = vextract.low.u32 %v939
    %v941 = vextract.high.u32 %v939
    %v942 = vmul.u32.u64.compose %v938, %v933
    %v943 = vextract.low.u32 %v942
    %v944 = vextract.high.u32 %v942
    %v945 = vmul.u32 %v938, %v929
    %v946 = vadd.s32 %v941, %v943
    %vm947 = vc.u32 %v941, %v943
    %v948 = vadd.s32 %v944, 1
    %v949 = vsel %vm947, %v948, %v944
    %v950 = vadd.s32 %v945, %v949
    %v951 = vadd.s32 %v950, 536870912
    %v952 = vshrl.u32 %v951, 30
    %v953 = vshll.u32 %v952, 30
    %v954 = vsub.s32 %v950, %v953
    %vm955 = vcmp.lt.s32.totalorder %v954, 0
    %v956 = vsub.s32 0, %v954
    %v957 = vsel %vm955, %v956, %v954
    %v958 = vclz %v957
    %v959 = vsub.s32 %v958, 2
    %vm960 = vcmp.gt.s32.totalorder 0, %v959
    %v961 = vsel %vm960, 0, %v959
    %v962 = vsub.s32 32, %v961
    %v963 = vshll.u32 %v954, %v961
    %v964 = vshrl.u32 %v946, %v962
    %v965 = vor.u32 %v963, %v964
    %v966 = vsub.s32 4294967266, %v961
    %v967 = vadd.s32 %v966, 127
    %v968 = vshll.u32 %v967, 23
    %v969 = vor.u32 4788187, %v968
    %v970 = vand.u32 2147483647, %v969
    %v972 = vcvt.s32.f32 %v965
    %v973 = vmul.f32 %v972, %v970
    %v974 = vxor.u32 %v973, 2147483648
    %v975 = vsel %vm892, %v974, %v973
    %v976 = vsub.s32 4, %v952
    %v977 = vsel %vm892, %v976, %v952
    %v978 = vsel %vm891, %v137, %v975
    %v979 = vsel %vm891, 0, %v977
    %v980 = vcosq.f32.pop %v978
    %v981 = vsinq.f32.pop %v978
    %vm982 = vweird.f32 %v137
    %v983 = vadd.s32 %v979, 3
    %v984 = vand.u32 %v983, 3
    %vm985 = vcmp.lt.s32.totalorder %v984, 2
    %vm986 = vcmp.eq.s32.totalorder %v984, 0
    %v987 = vxor.u32 %v981, 2147483648
    %v988 = vsel %vm986, %v980, %v987
    %vm989 = vcmp.eq.s32.totalorder %v984, 2
    %v990 = vxor.u32 %v980, 2147483648
    %v991 = vsel %vm989, %v990, %v981
    %v992 = vsel %vm985, %v988, %v991
    %v993 = vsel %vm982, nan, %v992
    %v994 = vand.u32 2147483647, %v138
    %vm995 = vcmp.le.f32.partialorder %v994, 0.7853982
    %vm996 = vcmp.lt.s32.totalorder %v138, 0
    %v997 = vand.u32 %v138, 2139095040
    %v998 = vshrl.u32 %v997, 23
    %v999 = vsub.s32 %v998, 127
    %v1000 = vand.u32 2147483647, %v138
    %v1001 = vand.u32 %v1000, 8388607
    %v1002 = vor.u32 %v1001, 8388608
    %v1003 = vsub.s32 0, %v1002
    %v1004 = vadd.s32 %v999, 1
    %vm1005 = vcmp.gt.s32.totalorder %v1004, 0
    %v1006 = vsel %vm1005, %v1004, 0
    %v1007 = vshrl.u32 %v1006, 5
    %v1008 = vand.u32 %v1006, 31
    %v1009 = vsub.s32 32, %v1008
    %v1010 = vshrl.u32 683565275, %v1009
    %v1011 = vshll.u32 683565275, %v1008
    %v1012 = vshrl.u32 2475754826, %v1009
    %v1013 = vor.u32 %v1011, %v1012
    %v1014 = vshll.u32 2475754826, %v1008
    %v1015 = vshrl.u32 2131351028, %v1009
    %v1016 = vor.u32 %v1014, %v1015
    %v1017 = vshll.u32 2131351028, %v1008
    %v1018 = vshrl.u32 2102212464, %v1009
    %v1019 = vor.u32 %v1017, %v1018
    %v1020 = vshll.u32 2102212464, %v1008
    %v1021 = vshrl.u32 920167782, %v1009
    %v1022 = vor.u32 %v1020, %v1021
    %v1023 = vshll.u32 920167782, %v1008
    %v1024 = vshrl.u32 1326507024, %v1009
    %v1025 = vor.u32 %v1023, %v1024
    %vm1026 = vcmp.lt.s32.totalorder %v1007, 1
    %vm1027 = vcmp.lt.s32.totalorder %v1007, 2
    %vm1028 = vcmp.lt.s32.totalorder %v1007, 3
    %vm1029 = vcmp.lt.s32.totalorder %v1007, 4
    %v1030 = vsel %vm1026, %v1010, %v1013
    %v1031 = vsel %vm1029, %v1019, 2102212464
    %v1032 = vsel %vm1028, %v1016, %v1031
    %v1033 = vsel %vm1027, %v1030, %v1032
    %v1034 = vsel %vm1026, %v1013, %v1016
    %v1035 = vsel %vm1029, %v1022, 920167782
    %v1036 = vsel %vm1028, %v1019, %v1035
    %v1037 = vsel %vm1027, %v1034, %v1036
    %v1038 = vsel %vm1026, %v1016, %v1019
    %v1039 = vsel %vm1029, %v1025, 1326507024
    %v1040 = vsel %vm1028, %v1022, %v1039
    %v1041 = vsel %vm1027, %v1038, %v1040
    %v1042 = vshll.u32 %v1002, 8
    %v1043 = vmul.u32.u64.compose %v1042, %v1041
    %v1044 = vextract.low.u32 %v1043
    %v1045 = vextract.high.u32 %v1043
    %v1046 = vmul.u32.u64.compose %v1042, %v1037
    %v1047 = vextract.low.u32 %v1046
    %v1048 = vextract.high.u32 %v1046
    %v1049 = vmul.u32 %v1042, %v1033
    %v1050 = vadd.s32 %v1045, %v1047
    %vm1051 = vc.u32 %v1045, %v1047
    %v1052 = vadd.s32 %v1048, 1
    %v1053 = vsel %vm1051, %v1052, %v1048
    %v1054 = vadd.s32 %v1049, %v1053
    %v1055 = vadd.s32 %v1054, 536870912
    %v1056 = vshrl.u32 %v1055, 30
    %v1057 = vshll.u32 %v1056, 30
    %v1058 = vsub.s32 %v1054, %v1057
    %vm1059 = vcmp.lt.s32.totalorder %v1058, 0
    %v1060 = vsub.s32 0, %v1058
    %v1061 = vsel %vm1059, %v1060, %v1058
    %v1062 = vclz %v1061
    %v1063 = vsub.s32 %v1062, 2
    %vm1064 = vcmp.gt.s32.totalorder 0, %v1063
    %v1065 = vsel %vm1064, 0, %v1063
    %v1066 = vsub.s32 32, %v1065
    %v1067 = vshll.u32 %v1058, %v1065
    %v1068 = vshrl.u32 %v1050, %v1066
    %v1069 = vor.u32 %v1067, %v1068
    %v1070 = vsub.s32 4294967266, %v1065
    %v1071 = vadd.s32 %v1070, 127
    %v1072 = vshll.u32 %v1071, 23
    %v1073 = vor.u32 4788187, %v1072
    %v1074 = vand.u32 2147483647, %v1073
    %v1076 = vcvt.s32.f32 %v1069
    %v1077 = vmul.f32 %v1076, %v1074
    %v1078 = vxor.u32 %v1077, 2147483648
    %v1079 = vsel %vm996, %v1078, %v1077
    %v1080 = vsub.s32 4, %v1056
    %v1081 = vsel %vm996, %v1080, %v1056
    %v1082 = vsel %vm995, %v138, %v1079
    %v1083 = vsel %vm995, 0, %v1081
    %v1084 = vcosq.f32.pop %v1082
    %v1085 = vsinq.f32.pop %v1082
    %vm1086 = vweird.f32 %v138
    %v1087 = vadd.s32 %v1083, 3
    %v1088 = vand.u32 %v1087, 3
    %vm1089 = vcmp.lt.s32.totalorder %v1088, 2
    %vm1090 = vcmp.eq.s32.totalorder %v1088, 0
    %v1091 = vxor.u32 %v1085, 2147483648
    %v1092 = vsel %vm1090, %v1084, %v1091
    %vm1093 = vcmp.eq.s32.totalorder %v1088, 2
    %v1094 = vxor.u32 %v1084, 2147483648
    %v1095 = vsel %vm1093, %v1094, %v1085
    %v1096 = vsel %vm1089, %v1092, %v1095
    %v1097 = vsel %vm1086, nan, %v1096
    %v1098 = vand.u32 2147483647, %v139
    %vm1099 = vcmp.le.f32.partialorder %v1098, 0.7853982
    %vm1100 = vcmp.lt.s32.totalorder %v139, 0
    %v1101 = vand.u32 %v139, 2139095040
    %v1102 = vshrl.u32 %v1101, 23
    %v1103 = vsub.s32 %v1102, 127
    %v1104 = vand.u32 2147483647, %v139
    %v1105 = vand.u32 %v1104, 8388607
    %v1106 = vor.u32 %v1105, 8388608
    %v1107 = vsub.s32 0, %v1106
    %v1108 = vadd.s32 %v1103, 1
    %vm1109 = vcmp.gt.s32.totalorder %v1108, 0
    %v1110 = vsel %vm1109, %v1108, 0
    %v1111 = vshrl.u32 %v1110, 5
    %v1112 = vand.u32 %v1110, 31
    %v1113 = vsub.s32 32, %v1112
    %v1114 = vshrl.u32 683565275, %v1113
    %v1115 = vshll.u32 683565275, %v1112
    %v1116 = vshrl.u32 2475754826, %v1113
    %v1117 = vor.u32 %v1115, %v1116
    %v1118 = vshll.u32 2475754826, %v1112
    %v1119 = vshrl.u32 2131351028, %v1113
    %v1120 = vor.u32 %v1118, %v1119
    %v1121 = vshll.u32 2131351028, %v1112
    %v1122 = vshrl.u32 2102212464, %v1113
    %v1123 = vor.u32 %v1121, %v1122
    %v1124 = vshll.u32 2102212464, %v1112
    %v1125 = vshrl.u32 920167782, %v1113
    %v1126 = vor.u32 %v1124, %v1125
    %v1127 = vshll.u32 920167782, %v1112
    %v1128 = vshrl.u32 1326507024, %v1113
    %v1129 = vor.u32 %v1127, %v1128
    %vm1130 = vcmp.lt.s32.totalorder %v1111, 1
    %vm1131 = vcmp.lt.s32.totalorder %v1111, 2
    %vm1132 = vcmp.lt.s32.totalorder %v1111, 3
    %vm1133 = vcmp.lt.s32.totalorder %v1111, 4
    %v1134 = vsel %vm1130, %v1114, %v1117
    %v1135 = vsel %vm1133, %v1123, 2102212464
    %v1136 = vsel %vm1132, %v1120, %v1135
    %v1137 = vsel %vm1131, %v1134, %v1136
    %v1138 = vsel %vm1130, %v1117, %v1120
    %v1139 = vsel %vm1133, %v1126, 920167782
    %v1140 = vsel %vm1132, %v1123, %v1139
    %v1141 = vsel %vm1131, %v1138, %v1140
    %v1142 = vsel %vm1130, %v1120, %v1123
    %v1143 = vsel %vm1133, %v1129, 1326507024
    %v1144 = vsel %vm1132, %v1126, %v1143
    %v1145 = vsel %vm1131, %v1142, %v1144
    %v1146 = vshll.u32 %v1106, 8
    %v1147 = vmul.u32.u64.compose %v1146, %v1145
    %v1148 = vextract.low.u32 %v1147
    %v1149 = vextract.high.u32 %v1147
    %v1150 = vmul.u32.u64.compose %v1146, %v1141
    %v1151 = vextract.low.u32 %v1150
    %v1152 = vextract.high.u32 %v1150
    %v1153 = vmul.u32 %v1146, %v1137
    %v1154 = vadd.s32 %v1149, %v1151
    %vm1155 = vc.u32 %v1149, %v1151
    %v1156 = vadd.s32 %v1152, 1
    %v1157 = vsel %vm1155, %v1156, %v1152
    %v1158 = vadd.s32 %v1153, %v1157
    %v1159 = vadd.s32 %v1158, 536870912
    %v1160 = vshrl.u32 %v1159, 30
    %v1161 = vshll.u32 %v1160, 30
    %v1162 = vsub.s32 %v1158, %v1161
    %vm1163 = vcmp.lt.s32.totalorder %v1162, 0
    %v1164 = vsub.s32 0, %v1162
    %v1165 = vsel %vm1163, %v1164, %v1162
    %v1166 = vclz %v1165
    %v1167 = vsub.s32 %v1166, 2
    %vm1168 = vcmp.gt.s32.totalorder 0, %v1167
    %v1169 = vsel %vm1168, 0, %v1167
    %v1170 = vsub.s32 32, %v1169
    %v1171 = vshll.u32 %v1162, %v1169
    %v1172 = vshrl.u32 %v1154, %v1170
    %v1173 = vor.u32 %v1171, %v1172
    %v1174 = vsub.s32 4294967266, %v1169
    %v1175 = vadd.s32 %v1174, 127
    %v1176 = vshll.u32 %v1175, 23
    %v1177 = vor.u32 4788187, %v1176
    %v1178 = vand.u32 2147483647, %v1177
    %v1180 = vcvt.s32.f32 %v1173
    %v1181 = vmul.f32 %v1180, %v1178
    %v1182 = vxor.u32 %v1181, 2147483648
    %v1183 = vsel %vm1100, %v1182, %v1181
    %v1184 = vsub.s32 4, %v1160
    %v1185 = vsel %vm1100, %v1184, %v1160
    %v1186 = vsel %vm1099, %v139, %v1183
    %v1187 = vsel %vm1099, 0, %v1185
    %v1188 = vcosq.f32.pop %v1186
    %v1189 = vsinq.f32.pop %v1186
    %vm1190 = vweird.f32 %v139
    %v1191 = vadd.s32 %v1187, 3
    %v1192 = vand.u32 %v1191, 3
    %vm1193 = vcmp.lt.s32.totalorder %v1192, 2
    %vm1194 = vcmp.eq.s32.totalorder %v1192, 0
    %v1195 = vxor.u32 %v1189, 2147483648
    %v1196 = vsel %vm1194, %v1188, %v1195
    %vm1197 = vcmp.eq.s32.totalorder %v1192, 2
    %v1198 = vxor.u32 %v1188, 2147483648
    %v1199 = vsel %vm1197, %v1198, %v1189
    %v1200 = vsel %vm1193, %v1196, %v1199
    %v1201 = vsel %vm1190, nan, %v1200
    %v1202 = vand.u32 2147483647, %v140
    %vm1203 = vcmp.le.f32.partialorder %v1202, 0.7853982
    %vm1204 = vcmp.lt.s32.totalorder %v140, 0
    %v1205 = vand.u32 %v140, 2139095040
    %v1206 = vshrl.u32 %v1205, 23
    %v1207 = vsub.s32 %v1206, 127
    %v1208 = vand.u32 2147483647, %v140
    %v1209 = vand.u32 %v1208, 8388607
    %v1210 = vor.u32 %v1209, 8388608
    %v1211 = vsub.s32 0, %v1210
    %v1212 = vadd.s32 %v1207, 1
    %vm1213 = vcmp.gt.s32.totalorder %v1212, 0
    %v1214 = vsel %vm1213, %v1212, 0
    %v1215 = vshrl.u32 %v1214, 5
    %v1216 = vand.u32 %v1214, 31
    %v1217 = vsub.s32 32, %v1216
    %v1218 = vshrl.u32 683565275, %v1217
    %v1219 = vshll.u32 683565275, %v1216
    %v1220 = vshrl.u32 2475754826, %v1217
    %v1221 = vor.u32 %v1219, %v1220
    %v1222 = vshll.u32 2475754826, %v1216
    %v1223 = vshrl.u32 2131351028, %v1217
    %v1224 = vor.u32 %v1222, %v1223
    %v1225 = vshll.u32 2131351028, %v1216
    %v1226 = vshrl.u32 2102212464, %v1217
    %v1227 = vor.u32 %v1225, %v1226
    %v1228 = vshll.u32 2102212464, %v1216
    %v1229 = vshrl.u32 920167782, %v1217
    %v1230 = vor.u32 %v1228, %v1229
    %v1231 = vshll.u32 920167782, %v1216
    %v1232 = vshrl.u32 1326507024, %v1217
    %v1233 = vor.u32 %v1231, %v1232
    %vm1234 = vcmp.lt.s32.totalorder %v1215, 1
    %vm1235 = vcmp.lt.s32.totalorder %v1215, 2
    %vm1236 = vcmp.lt.s32.totalorder %v1215, 3
    %vm1237 = vcmp.lt.s32.totalorder %v1215, 4
    %v1238 = vsel %vm1234, %v1218, %v1221
    %v1239 = vsel %vm1237, %v1227, 2102212464
    %v1240 = vsel %vm1236, %v1224, %v1239
    %v1241 = vsel %vm1235, %v1238, %v1240
    %v1242 = vsel %vm1234, %v1221, %v1224
    %v1243 = vsel %vm1237, %v1230, 920167782
    %v1244 = vsel %vm1236, %v1227, %v1243
    %v1245 = vsel %vm1235, %v1242, %v1244
    %v1246 = vsel %vm1234, %v1224, %v1227
    %v1247 = vsel %vm1237, %v1233, 1326507024
    %v1248 = vsel %vm1236, %v1230, %v1247
    %v1249 = vsel %vm1235, %v1246, %v1248
    %v1250 = vshll.u32 %v1210, 8
    %v1251 = vmul.u32.u64.compose %v1250, %v1249
    %v1252 = vextract.low.u32 %v1251
    %v1253 = vextract.high.u32 %v1251
    %v1254 = vmul.u32.u64.compose %v1250, %v1245
    %v1255 = vextract.low.u32 %v1254
    %v1256 = vextract.high.u32 %v1254
    %v1257 = vmul.u32 %v1250, %v1241
    %v1258 = vadd.s32 %v1253, %v1255
    %vm1259 = vc.u32 %v1253, %v1255
    %v1260 = vadd.s32 %v1256, 1
    %v1261 = vsel %vm1259, %v1260, %v1256
    %v1262 = vadd.s32 %v1257, %v1261
    %v1263 = vadd.s32 %v1262, 536870912
    %v1264 = vshrl.u32 %v1263, 30
    %v1265 = vshll.u32 %v1264, 30
    %v1266 = vsub.s32 %v1262, %v1265
    %vm1267 = vcmp.lt.s32.totalorder %v1266, 0
    %v1268 = vsub.s32 0, %v1266
    %v1269 = vsel %vm1267, %v1268, %v1266
    %v1270 = vclz %v1269
    %v1271 = vsub.s32 %v1270, 2
    %vm1272 = vcmp.gt.s32.totalorder 0, %v1271
    %v1273 = vsel %vm1272, 0, %v1271
    %v1274 = vsub.s32 32, %v1273
    %v1275 = vshll.u32 %v1266, %v1273
    %v1276 = vshrl.u32 %v1258, %v1274
    %v1277 = vor.u32 %v1275, %v1276
    %v1278 = vsub.s32 4294967266, %v1273
    %v1279 = vadd.s32 %v1278, 127
    %v1280 = vshll.u32 %v1279, 23
    %v1281 = vor.u32 4788187, %v1280
    %v1282 = vand.u32 2147483647, %v1281
    %v1284 = vcvt.s32.f32 %v1277
    %v1285 = vmul.f32 %v1284, %v1282
    %v1286 = vxor.u32 %v1285, 2147483648
    %v1287 = vsel %vm1204, %v1286, %v1285
    %v1288 = vsub.s32 4, %v1264
    %v1289 = vsel %vm1204, %v1288, %v1264
    %v1290 = vsel %vm1203, %v140, %v1287
    %v1291 = vsel %vm1203, 0, %v1289
    %v1292 = vcosq.f32.pop %v1290
    %v1293 = vsinq.f32.pop %v1290
    %vm1294 = vweird.f32 %v140
    %v1295 = vadd.s32 %v1291, 3
    %v1296 = vand.u32 %v1295, 3
    %vm1297 = vcmp.lt.s32.totalorder %v1296, 2
    %vm1298 = vcmp.eq.s32.totalorder %v1296, 0
    %v1299 = vxor.u32 %v1293, 2147483648
    %v1300 = vsel %vm1298, %v1292, %v1299
    %vm1301 = vcmp.eq.s32.totalorder %v1296, 2
    %v1302 = vxor.u32 %v1292, 2147483648
    %v1303 = vsel %vm1301, %v1302, %v1293
    %v1304 = vsel %vm1297, %v1300, %v1303
    %v1305 = vsel %vm1294, nan, %v1304
    %v1306 = vand.u32 2147483647, %v141
    %vm1307 = vcmp.le.f32.partialorder %v1306, 0.7853982
    %vm1308 = vcmp.lt.s32.totalorder %v141, 0
    %v1309 = vand.u32 %v141, 2139095040
    %v1310 = vshrl.u32 %v1309, 23
    %v1311 = vsub.s32 %v1310, 127
    %v1312 = vand.u32 2147483647, %v141
    %v1313 = vand.u32 %v1312, 8388607
    %v1314 = vor.u32 %v1313, 8388608
    %v1315 = vsub.s32 0, %v1314
    %v1316 = vadd.s32 %v1311, 1
    %vm1317 = vcmp.gt.s32.totalorder %v1316, 0
    %v1318 = vsel %vm1317, %v1316, 0
    %v1319 = vshrl.u32 %v1318, 5
    %v1320 = vand.u32 %v1318, 31
    %v1321 = vsub.s32 32, %v1320
    %v1322 = vshrl.u32 683565275, %v1321
    %v1323 = vshll.u32 683565275, %v1320
    %v1324 = vshrl.u32 2475754826, %v1321
    %v1325 = vor.u32 %v1323, %v1324
    %v1326 = vshll.u32 2475754826, %v1320
    %v1327 = vshrl.u32 2131351028, %v1321
    %v1328 = vor.u32 %v1326, %v1327
    %v1329 = vshll.u32 2131351028, %v1320
    %v1330 = vshrl.u32 2102212464, %v1321
    %v1331 = vor.u32 %v1329, %v1330
    %v1332 = vshll.u32 2102212464, %v1320
    %v1333 = vshrl.u32 920167782, %v1321
    %v1334 = vor.u32 %v1332, %v1333
    %v1335 = vshll.u32 920167782, %v1320
    %v1336 = vshrl.u32 1326507024, %v1321
    %v1337 = vor.u32 %v1335, %v1336
    %vm1338 = vcmp.lt.s32.totalorder %v1319, 1
    %vm1339 = vcmp.lt.s32.totalorder %v1319, 2
    %vm1340 = vcmp.lt.s32.totalorder %v1319, 3
    %vm1341 = vcmp.lt.s32.totalorder %v1319, 4
    %v1342 = vsel %vm1338, %v1322, %v1325
    %v1343 = vsel %vm1341, %v1331, 2102212464
    %v1344 = vsel %vm1340, %v1328, %v1343
    %v1345 = vsel %vm1339, %v1342, %v1344
    %v1346 = vsel %vm1338, %v1325, %v1328
    %v1347 = vsel %vm1341, %v1334, 920167782
    %v1348 = vsel %vm1340, %v1331, %v1347
    %v1349 = vsel %vm1339, %v1346, %v1348
    %v1350 = vsel %vm1338, %v1328, %v1331
    %v1351 = vsel %vm1341, %v1337, 1326507024
    %v1352 = vsel %vm1340, %v1334, %v1351
    %v1353 = vsel %vm1339, %v1350, %v1352
    %v1354 = vshll.u32 %v1314, 8
    %v1355 = vmul.u32.u64.compose %v1354, %v1353
    %v1356 = vextract.low.u32 %v1355
    %v1357 = vextract.high.u32 %v1355
    %v1358 = vmul.u32.u64.compose %v1354, %v1349
    %v1359 = vextract.low.u32 %v1358
    %v1360 = vextract.high.u32 %v1358
    %v1361 = vmul.u32 %v1354, %v1345
    %v1362 = vadd.s32 %v1357, %v1359
    %vm1363 = vc.u32 %v1357, %v1359
    %v1364 = vadd.s32 %v1360, 1
    %v1365 = vsel %vm1363, %v1364, %v1360
    %v1366 = vadd.s32 %v1361, %v1365
    %v1367 = vadd.s32 %v1366, 536870912
    %v1368 = vshrl.u32 %v1367, 30
    %v1369 = vshll.u32 %v1368, 30
    %v1370 = vsub.s32 %v1366, %v1369
    %vm1371 = vcmp.lt.s32.totalorder %v1370, 0
    %v1372 = vsub.s32 0, %v1370
    %v1373 = vsel %vm1371, %v1372, %v1370
    %v1374 = vclz %v1373
    %v1375 = vsub.s32 %v1374, 2
    %vm1376 = vcmp.gt.s32.totalorder 0, %v1375
    %v1377 = vsel %vm1376, 0, %v1375
    %v1378 = vsub.s32 32, %v1377
    %v1379 = vshll.u32 %v1370, %v1377
    %v1380 = vshrl.u32 %v1362, %v1378
    %v1381 = vor.u32 %v1379, %v1380
    %v1382 = vsub.s32 4294967266, %v1377
    %v1383 = vadd.s32 %v1382, 127
    %v1384 = vshll.u32 %v1383, 23
    %v1385 = vor.u32 4788187, %v1384
    %v1386 = vand.u32 2147483647, %v1385
    %v1388 = vcvt.s32.f32 %v1381
    %v1389 = vmul.f32 %v1388, %v1386
    %v1390 = vxor.u32 %v1389, 2147483648
    %v1391 = vsel %vm1308, %v1390, %v1389
    %v1392 = vsub.s32 4, %v1368
    %v1393 = vsel %vm1308, %v1392, %v1368
    %v1394 = vsel %vm1307, %v141, %v1391
    %v1395 = vsel %vm1307, 0, %v1393
    %v1396 = vcosq.f32.pop %v1394
    %v1397 = vsinq.f32.pop %v1394
    %vm1398 = vweird.f32 %v141
    %v1399 = vadd.s32 %v1395, 3
    %v1400 = vand.u32 %v1399, 3
    %vm1401 = vcmp.lt.s32.totalorder %v1400, 2
    %vm1402 = vcmp.eq.s32.totalorder %v1400, 0
    %v1403 = vxor.u32 %v1397, 2147483648
    %v1404 = vsel %vm1402, %v1396, %v1403
    %vm1405 = vcmp.eq.s32.totalorder %v1400, 2
    %v1406 = vxor.u32 %v1396, 2147483648
    %v1407 = vsel %vm1405, %v1406, %v1397
    %v1408 = vsel %vm1401, %v1404, %v1407
    %v1409 = vsel %vm1398, nan, %v1408
    %v1410 = vand.u32 2147483647, %v142
    %vm1411 = vcmp.le.f32.partialorder %v1410, 0.7853982
    %vm1412 = vcmp.lt.s32.totalorder %v142, 0
    %v1413 = vand.u32 %v142, 2139095040
    %v1414 = vshrl.u32 %v1413, 23
    %v1415 = vsub.s32 %v1414, 127
    %v1416 = vand.u32 2147483647, %v142
    %v1417 = vand.u32 %v1416, 8388607
    %v1418 = vor.u32 %v1417, 8388608
    %v1419 = vsub.s32 0, %v1418
    %v1420 = vadd.s32 %v1415, 1
    %vm1421 = vcmp.gt.s32.totalorder %v1420, 0
    %v1422 = vsel %vm1421, %v1420, 0
    %v1423 = vshrl.u32 %v1422, 5
    %v1424 = vand.u32 %v1422, 31
    %v1425 = vsub.s32 32, %v1424
    %v1426 = vshrl.u32 683565275, %v1425
    %v1427 = vshll.u32 683565275, %v1424
    %v1428 = vshrl.u32 2475754826, %v1425
    %v1429 = vor.u32 %v1427, %v1428
    %v1430 = vshll.u32 2475754826, %v1424
    %v1431 = vshrl.u32 2131351028, %v1425
    %v1432 = vor.u32 %v1430, %v1431
    %v1433 = vshll.u32 2131351028, %v1424
    %v1434 = vshrl.u32 2102212464, %v1425
    %v1435 = vor.u32 %v1433, %v1434
    %v1436 = vshll.u32 2102212464, %v1424
    %v1437 = vshrl.u32 920167782, %v1425
    %v1438 = vor.u32 %v1436, %v1437
    %v1439 = vshll.u32 920167782, %v1424
    %v1440 = vshrl.u32 1326507024, %v1425
    %v1441 = vor.u32 %v1439, %v1440
    %vm1442 = vcmp.lt.s32.totalorder %v1423, 1
    %vm1443 = vcmp.lt.s32.totalorder %v1423, 2
    %vm1444 = vcmp.lt.s32.totalorder %v1423, 3
    %vm1445 = vcmp.lt.s32.totalorder %v1423, 4
    %v1446 = vsel %vm1442, %v1426, %v1429
    %v1447 = vsel %vm1445, %v1435, 2102212464
    %v1448 = vsel %vm1444, %v1432, %v1447
    %v1449 = vsel %vm1443, %v1446, %v1448
    %v1450 = vsel %vm1442, %v1429, %v1432
    %v1451 = vsel %vm1445, %v1438, 920167782
    %v1452 = vsel %vm1444, %v1435, %v1451
    %v1453 = vsel %vm1443, %v1450, %v1452
    %v1454 = vsel %vm1442, %v1432, %v1435
    %v1455 = vsel %vm1445, %v1441, 1326507024
    %v1456 = vsel %vm1444, %v1438, %v1455
    %v1457 = vsel %vm1443, %v1454, %v1456
    %v1458 = vshll.u32 %v1418, 8
    %v1459 = vmul.u32.u64.compose %v1458, %v1457
    %v1460 = vextract.low.u32 %v1459
    %v1461 = vextract.high.u32 %v1459
    %v1462 = vmul.u32.u64.compose %v1458, %v1453
    %v1463 = vextract.low.u32 %v1462
    %v1464 = vextract.high.u32 %v1462
    %v1465 = vmul.u32 %v1458, %v1449
    %v1466 = vadd.s32 %v1461, %v1463
    %vm1467 = vc.u32 %v1461, %v1463
    %v1468 = vadd.s32 %v1464, 1
    %v1469 = vsel %vm1467, %v1468, %v1464
    %v1470 = vadd.s32 %v1465, %v1469
    %v1471 = vadd.s32 %v1470, 536870912
    %v1472 = vshrl.u32 %v1471, 30
    %v1473 = vshll.u32 %v1472, 30
    %v1474 = vsub.s32 %v1470, %v1473
    %vm1475 = vcmp.lt.s32.totalorder %v1474, 0
    %v1476 = vsub.s32 0, %v1474
    %v1477 = vsel %vm1475, %v1476, %v1474
    %v1478 = vclz %v1477
    %v1479 = vsub.s32 %v1478, 2
    %vm1480 = vcmp.gt.s32.totalorder 0, %v1479
    %v1481 = vsel %vm1480, 0, %v1479
    %v1482 = vsub.s32 32, %v1481
    %v1483 = vshll.u32 %v1474, %v1481
    %v1484 = vshrl.u32 %v1466, %v1482
    %v1485 = vor.u32 %v1483, %v1484
    %v1486 = vsub.s32 4294967266, %v1481
    %v1487 = vadd.s32 %v1486, 127
    %v1488 = vshll.u32 %v1487, 23
    %v1489 = vor.u32 4788187, %v1488
    %v1490 = vand.u32 2147483647, %v1489
    %v1492 = vcvt.s32.f32 %v1485
    %v1493 = vmul.f32 %v1492, %v1490
    %v1494 = vxor.u32 %v1493, 2147483648
    %v1495 = vsel %vm1412, %v1494, %v1493
    %v1496 = vsub.s32 4, %v1472
    %v1497 = vsel %vm1412, %v1496, %v1472
    %v1498 = vsel %vm1411, %v142, %v1495
    %v1499 = vsel %vm1411, 0, %v1497
    %v1500 = vcosq.f32.pop %v1498
    %v1501 = vsinq.f32.pop %v1498
    %vm1502 = vweird.f32 %v142
    %v1503 = vadd.s32 %v1499, 3
    %v1504 = vand.u32 %v1503, 3
    %vm1505 = vcmp.lt.s32.totalorder %v1504, 2
    %vm1506 = vcmp.eq.s32.totalorder %v1504, 0
    %v1507 = vxor.u32 %v1501, 2147483648
    %v1508 = vsel %vm1506, %v1500, %v1507
    %vm1509 = vcmp.eq.s32.totalorder %v1504, 2
    %v1510 = vxor.u32 %v1500, 2147483648
    %v1511 = vsel %vm1509, %v1510, %v1501
    %v1512 = vsel %vm1505, %v1508, %v1511
    %v1513 = vsel %vm1502, nan, %v1512
    %v1514 = vand.u32 2147483647, %v143
    %vm1515 = vcmp.le.f32.partialorder %v1514, 0.7853982
    %vm1516 = vcmp.lt.s32.totalorder %v143, 0
    %v1517 = vand.u32 %v143, 2139095040
    %v1518 = vshrl.u32 %v1517, 23
    %v1519 = vsub.s32 %v1518, 127
    %v1520 = vand.u32 2147483647, %v143
    %v1521 = vand.u32 %v1520, 8388607
    %v1522 = vor.u32 %v1521, 8388608
    %v1523 = vsub.s32 0, %v1522
    %v1524 = vadd.s32 %v1519, 1
    %vm1525 = vcmp.gt.s32.totalorder %v1524, 0
    %v1526 = vsel %vm1525, %v1524, 0
    %v1527 = vshrl.u32 %v1526, 5
    %v1528 = vand.u32 %v1526, 31
    %v1529 = vsub.s32 32, %v1528
    %v1530 = vshrl.u32 683565275, %v1529
    %v1531 = vshll.u32 683565275, %v1528
    %v1532 = vshrl.u32 2475754826, %v1529
    %v1533 = vor.u32 %v1531, %v1532
    %v1534 = vshll.u32 2475754826, %v1528
    %v1535 = vshrl.u32 2131351028, %v1529
    %v1536 = vor.u32 %v1534, %v1535
    %v1537 = vshll.u32 2131351028, %v1528
    %v1538 = vshrl.u32 2102212464, %v1529
    %v1539 = vor.u32 %v1537, %v1538
    %v1540 = vshll.u32 2102212464, %v1528
    %v1541 = vshrl.u32 920167782, %v1529
    %v1542 = vor.u32 %v1540, %v1541
    %v1543 = vshll.u32 920167782, %v1528
    %v1544 = vshrl.u32 1326507024, %v1529
    %v1545 = vor.u32 %v1543, %v1544
    %vm1546 = vcmp.lt.s32.totalorder %v1527, 1
    %vm1547 = vcmp.lt.s32.totalorder %v1527, 2
    %vm1548 = vcmp.lt.s32.totalorder %v1527, 3
    %vm1549 = vcmp.lt.s32.totalorder %v1527, 4
    %v1550 = vsel %vm1546, %v1530, %v1533
    %v1551 = vsel %vm1549, %v1539, 2102212464
    %v1552 = vsel %vm1548, %v1536, %v1551
    %v1553 = vsel %vm1547, %v1550, %v1552
    %v1554 = vsel %vm1546, %v1533, %v1536
    %v1555 = vsel %vm1549, %v1542, 920167782
    %v1556 = vsel %vm1548, %v1539, %v1555
    %v1557 = vsel %vm1547, %v1554, %v1556
    %v1558 = vsel %vm1546, %v1536, %v1539
    %v1559 = vsel %vm1549, %v1545, 1326507024
    %v1560 = vsel %vm1548, %v1542, %v1559
    %v1561 = vsel %vm1547, %v1558, %v1560
    %v1562 = vshll.u32 %v1522, 8
    %v1563 = vmul.u32.u64.compose %v1562, %v1561
    %v1564 = vextract.low.u32 %v1563
    %v1565 = vextract.high.u32 %v1563
    %v1566 = vmul.u32.u64.compose %v1562, %v1557
    %v1567 = vextract.low.u32 %v1566
    %v1568 = vextract.high.u32 %v1566
    %v1569 = vmul.u32 %v1562, %v1553
    %v1570 = vadd.s32 %v1565, %v1567
    %vm1571 = vc.u32 %v1565, %v1567
    %v1572 = vadd.s32 %v1568, 1
    %v1573 = vsel %vm1571, %v1572, %v1568
    %v1574 = vadd.s32 %v1569, %v1573
    %v1575 = vadd.s32 %v1574, 536870912
    %v1576 = vshrl.u32 %v1575, 30
    %v1577 = vshll.u32 %v1576, 30
    %v1578 = vsub.s32 %v1574, %v1577
    %vm1579 = vcmp.lt.s32.totalorder %v1578, 0
    %v1580 = vsub.s32 0, %v1578
    %v1581 = vsel %vm1579, %v1580, %v1578
    %v1582 = vclz %v1581
    %v1583 = vsub.s32 %v1582, 2
    %vm1584 = vcmp.gt.s32.totalorder 0, %v1583
    %v1585 = vsel %vm1584, 0, %v1583
    %v1586 = vsub.s32 32, %v1585
    %v1587 = vshll.u32 %v1578, %v1585
    %v1588 = vshrl.u32 %v1570, %v1586
    %v1589 = vor.u32 %v1587, %v1588
    %v1590 = vsub.s32 4294967266, %v1585
    %v1591 = vadd.s32 %v1590, 127
    %v1592 = vshll.u32 %v1591, 23
    %v1593 = vor.u32 4788187, %v1592
    %v1594 = vand.u32 2147483647, %v1593
    %v1596 = vcvt.s32.f32 %v1589
    %v1597 = vmul.f32 %v1596, %v1594
    %v1598 = vxor.u32 %v1597, 2147483648
    %v1599 = vsel %vm1516, %v1598, %v1597
    %v1600 = vsub.s32 4, %v1576
    %v1601 = vsel %vm1516, %v1600, %v1576
    %v1602 = vsel %vm1515, %v143, %v1599
    %v1603 = vsel %vm1515, 0, %v1601
    %v1604 = vcosq.f32.pop %v1602
    %v1605 = vsinq.f32.pop %v1602
    %vm1606 = vweird.f32 %v143
    %v1607 = vadd.s32 %v1603, 3
    %v1608 = vand.u32 %v1607, 3
    %vm1609 = vcmp.lt.s32.totalorder %v1608, 2
    %vm1610 = vcmp.eq.s32.totalorder %v1608, 0
    %v1611 = vxor.u32 %v1605, 2147483648
    %v1612 = vsel %vm1610, %v1604, %v1611
    %vm1613 = vcmp.eq.s32.totalorder %v1608, 2
    %v1614 = vxor.u32 %v1604, 2147483648
    %v1615 = vsel %vm1613, %v1614, %v1605
    %v1616 = vsel %vm1609, %v1612, %v1615
    %v1617 = vsel %vm1606, nan, %v1616
    %v1618 = vand.u32 2147483647, %v144
    %vm1619 = vcmp.le.f32.partialorder %v1618, 0.7853982
    %vm1620 = vcmp.lt.s32.totalorder %v144, 0
    %v1621 = vand.u32 %v144, 2139095040
    %v1622 = vshrl.u32 %v1621, 23
    %v1623 = vsub.s32 %v1622, 127
    %v1624 = vand.u32 2147483647, %v144
    %v1625 = vand.u32 %v1624, 8388607
    %v1626 = vor.u32 %v1625, 8388608
    %v1627 = vsub.s32 0, %v1626
    %v1628 = vadd.s32 %v1623, 1
    %vm1629 = vcmp.gt.s32.totalorder %v1628, 0
    %v1630 = vsel %vm1629, %v1628, 0
    %v1631 = vshrl.u32 %v1630, 5
    %v1632 = vand.u32 %v1630, 31
    %v1633 = vsub.s32 32, %v1632
    %v1634 = vshrl.u32 683565275, %v1633
    %v1635 = vshll.u32 683565275, %v1632
    %v1636 = vshrl.u32 2475754826, %v1633
    %v1637 = vor.u32 %v1635, %v1636
    %v1638 = vshll.u32 2475754826, %v1632
    %v1639 = vshrl.u32 2131351028, %v1633
    %v1640 = vor.u32 %v1638, %v1639
    %v1641 = vshll.u32 2131351028, %v1632
    %v1642 = vshrl.u32 2102212464, %v1633
    %v1643 = vor.u32 %v1641, %v1642
    %v1644 = vshll.u32 2102212464, %v1632
    %v1645 = vshrl.u32 920167782, %v1633
    %v1646 = vor.u32 %v1644, %v1645
    %v1647 = vshll.u32 920167782, %v1632
    %v1648 = vshrl.u32 1326507024, %v1633
    %v1649 = vor.u32 %v1647, %v1648
    %vm1650 = vcmp.lt.s32.totalorder %v1631, 1
    %vm1651 = vcmp.lt.s32.totalorder %v1631, 2
    %vm1652 = vcmp.lt.s32.totalorder %v1631, 3
    %vm1653 = vcmp.lt.s32.totalorder %v1631, 4
    %v1654 = vsel %vm1650, %v1634, %v1637
    %v1655 = vsel %vm1653, %v1643, 2102212464
    %v1656 = vsel %vm1652, %v1640, %v1655
    %v1657 = vsel %vm1651, %v1654, %v1656
    %v1658 = vsel %vm1650, %v1637, %v1640
    %v1659 = vsel %vm1653, %v1646, 920167782
    %v1660 = vsel %vm1652, %v1643, %v1659
    %v1661 = vsel %vm1651, %v1658, %v1660
    %v1662 = vsel %vm1650, %v1640, %v1643
    %v1663 = vsel %vm1653, %v1649, 1326507024
    %v1664 = vsel %vm1652, %v1646, %v1663
    %v1665 = vsel %vm1651, %v1662, %v1664
    %v1666 = vshll.u32 %v1626, 8
    %v1667 = vmul.u32.u64.compose %v1666, %v1665
    %v1668 = vextract.low.u32 %v1667
    %v1669 = vextract.high.u32 %v1667
    %v1670 = vmul.u32.u64.compose %v1666, %v1661
    %v1671 = vextract.low.u32 %v1670
    %v1672 = vextract.high.u32 %v1670
    %v1673 = vmul.u32 %v1666, %v1657
    %v1674 = vadd.s32 %v1669, %v1671
    %vm1675 = vc.u32 %v1669, %v1671
    %v1676 = vadd.s32 %v1672, 1
    %v1677 = vsel %vm1675, %v1676, %v1672
    %v1678 = vadd.s32 %v1673, %v1677
    %v1679 = vadd.s32 %v1678, 536870912
    %v1680 = vshrl.u32 %v1679, 30
    %v1681 = vshll.u32 %v1680, 30
    %v1682 = vsub.s32 %v1678, %v1681
    %vm1683 = vcmp.lt.s32.totalorder %v1682, 0
    %v1684 = vsub.s32 0, %v1682
    %v1685 = vsel %vm1683, %v1684, %v1682
    %v1686 = vclz %v1685
    %v1687 = vsub.s32 %v1686, 2
    %vm1688 = vcmp.gt.s32.totalorder 0, %v1687
    %v1689 = vsel %vm1688, 0, %v1687
    %v1690 = vsub.s32 32, %v1689
    %v1691 = vshll.u32 %v1682, %v1689
    %v1692 = vshrl.u32 %v1674, %v1690
    %v1693 = vor.u32 %v1691, %v1692
    %v1694 = vsub.s32 4294967266, %v1689
    %v1695 = vadd.s32 %v1694, 127
    %v1696 = vshll.u32 %v1695, 23
    %v1697 = vor.u32 4788187, %v1696
    %v1698 = vand.u32 2147483647, %v1697
    %v1700 = vcvt.s32.f32 %v1693
    %v1701 = vmul.f32 %v1700, %v1698
    %v1702 = vxor.u32 %v1701, 2147483648
    %v1703 = vsel %vm1620, %v1702, %v1701
    %v1704 = vsub.s32 4, %v1680
    %v1705 = vsel %vm1620, %v1704, %v1680
    %v1706 = vsel %vm1619, %v144, %v1703
    %v1707 = vsel %vm1619, 0, %v1705
    %v1708 = vcosq.f32.pop %v1706
    %v1709 = vsinq.f32.pop %v1706
    %vm1710 = vweird.f32 %v144
    %v1711 = vadd.s32 %v1707, 3
    %v1712 = vand.u32 %v1711, 3
    %vm1713 = vcmp.lt.s32.totalorder %v1712, 2
    %vm1714 = vcmp.eq.s32.totalorder %v1712, 0
    %v1715 = vxor.u32 %v1709, 2147483648
    %v1716 = vsel %vm1714, %v1708, %v1715
    %vm1717 = vcmp.eq.s32.totalorder %v1712, 2
    %v1718 = vxor.u32 %v1708, 2147483648
    %v1719 = vsel %vm1717, %v1718, %v1709
    %v1720 = vsel %vm1713, %v1716, %v1719
    %v1721 = vsel %vm1710, nan, %v1720
    %v1722 = vand.u32 2147483647, %v145
    %vm1723 = vcmp.le.f32.partialorder %v1722, 0.7853982
    %vm1724 = vcmp.lt.s32.totalorder %v145, 0
    %v1725 = vand.u32 %v145, 2139095040
    %v1726 = vshrl.u32 %v1725, 23
    %v1727 = vsub.s32 %v1726, 127
    %v1728 = vand.u32 2147483647, %v145
    %v1729 = vand.u32 %v1728, 8388607
    %v1730 = vor.u32 %v1729, 8388608
    %v1731 = vsub.s32 0, %v1730
    %v1732 = vadd.s32 %v1727, 1
    %vm1733 = vcmp.gt.s32.totalorder %v1732, 0
    %v1734 = vsel %vm1733, %v1732, 0
    %v1735 = vshrl.u32 %v1734, 5
    %v1736 = vand.u32 %v1734, 31
    %v1737 = vsub.s32 32, %v1736
    %v1738 = vshrl.u32 683565275, %v1737
    %v1739 = vshll.u32 683565275, %v1736
    %v1740 = vshrl.u32 2475754826, %v1737
    %v1741 = vor.u32 %v1739, %v1740
    %v1742 = vshll.u32 2475754826, %v1736
    %v1743 = vshrl.u32 2131351028, %v1737
    %v1744 = vor.u32 %v1742, %v1743
    %v1745 = vshll.u32 2131351028, %v1736
    %v1746 = vshrl.u32 2102212464, %v1737
    %v1747 = vor.u32 %v1745, %v1746
    %v1748 = vshll.u32 2102212464, %v1736
    %v1749 = vshrl.u32 920167782, %v1737
    %v1750 = vor.u32 %v1748, %v1749
    %v1751 = vshll.u32 920167782, %v1736
    %v1752 = vshrl.u32 1326507024, %v1737
    %v1753 = vor.u32 %v1751, %v1752
    %vm1754 = vcmp.lt.s32.totalorder %v1735, 1
    %vm1755 = vcmp.lt.s32.totalorder %v1735, 2
    %vm1756 = vcmp.lt.s32.totalorder %v1735, 3
    %vm1757 = vcmp.lt.s32.totalorder %v1735, 4
    %v1758 = vsel %vm1754, %v1738, %v1741
    %v1759 = vsel %vm1757, %v1747, 2102212464
    %v1760 = vsel %vm1756, %v1744, %v1759
    %v1761 = vsel %vm1755, %v1758, %v1760
    %v1762 = vsel %vm1754, %v1741, %v1744
    %v1763 = vsel %vm1757, %v1750, 920167782
    %v1764 = vsel %vm1756, %v1747, %v1763
    %v1765 = vsel %vm1755, %v1762, %v1764
    %v1766 = vsel %vm1754, %v1744, %v1747
    %v1767 = vsel %vm1757, %v1753, 1326507024
    %v1768 = vsel %vm1756, %v1750, %v1767
    %v1769 = vsel %vm1755, %v1766, %v1768
    %v1770 = vshll.u32 %v1730, 8
    %v1771 = vmul.u32.u64.compose %v1770, %v1769
    %v1772 = vextract.low.u32 %v1771
    %v1773 = vextract.high.u32 %v1771
    %v1774 = vmul.u32.u64.compose %v1770, %v1765
    %v1775 = vextract.low.u32 %v1774
    %v1776 = vextract.high.u32 %v1774
    %v1777 = vmul.u32 %v1770, %v1761
    %v1778 = vadd.s32 %v1773, %v1775
    %vm1779 = vc.u32 %v1773, %v1775
    %v1780 = vadd.s32 %v1776, 1
    %v1781 = vsel %vm1779, %v1780, %v1776
    %v1782 = vadd.s32 %v1777, %v1781
    %v1783 = vadd.s32 %v1782, 536870912
    %v1784 = vshrl.u32 %v1783, 30
    %v1785 = vshll.u32 %v1784, 30
    %v1786 = vsub.s32 %v1782, %v1785
    %vm1787 = vcmp.lt.s32.totalorder %v1786, 0
    %v1788 = vsub.s32 0, %v1786
    %v1789 = vsel %vm1787, %v1788, %v1786
    %v1790 = vclz %v1789
    %v1791 = vsub.s32 %v1790, 2
    %vm1792 = vcmp.gt.s32.totalorder 0, %v1791
    %v1793 = vsel %vm1792, 0, %v1791
    %v1794 = vsub.s32 32, %v1793
    %v1795 = vshll.u32 %v1786, %v1793
    %v1796 = vshrl.u32 %v1778, %v1794
    %v1797 = vor.u32 %v1795, %v1796
    %v1798 = vsub.s32 4294967266, %v1793
    %v1799 = vadd.s32 %v1798, 127
    %v1800 = vshll.u32 %v1799, 23
    %v1801 = vor.u32 4788187, %v1800
    %v1802 = vand.u32 2147483647, %v1801
    %v1804 = vcvt.s32.f32 %v1797
    %v1805 = vmul.f32 %v1804, %v1802
    %v1806 = vxor.u32 %v1805, 2147483648
    %v1807 = vsel %vm1724, %v1806, %v1805
    %v1808 = vsub.s32 4, %v1784
    %v1809 = vsel %vm1724, %v1808, %v1784
    %v1810 = vsel %vm1723, %v145, %v1807
    %v1811 = vsel %vm1723, 0, %v1809
    %v1812 = vcosq.f32.pop %v1810
    %v1813 = vsinq.f32.pop %v1810
    %vm1814 = vweird.f32 %v145
    %v1815 = vadd.s32 %v1811, 3
    %v1816 = vand.u32 %v1815, 3
    %vm1817 = vcmp.lt.s32.totalorder %v1816, 2
    %vm1818 = vcmp.eq.s32.totalorder %v1816, 0
    %v1819 = vxor.u32 %v1813, 2147483648
    %v1820 = vsel %vm1818, %v1812, %v1819
    %vm1821 = vcmp.eq.s32.totalorder %v1816, 2
    %v1822 = vxor.u32 %v1812, 2147483648
    %v1823 = vsel %vm1821, %v1822, %v1813
    %v1824 = vsel %vm1817, %v1820, %v1823
    %v1825 = vsel %vm1814, nan, %v1824
    %v1826 = vand.u32 2147483647, %v146
    %vm1827 = vcmp.le.f32.partialorder %v1826, 0.7853982
    %vm1828 = vcmp.lt.s32.totalorder %v146, 0
    %v1829 = vand.u32 %v146, 2139095040
    %v1830 = vshrl.u32 %v1829, 23
    %v1831 = vsub.s32 %v1830, 127
    %v1832 = vand.u32 2147483647, %v146
    %v1833 = vand.u32 %v1832, 8388607
    %v1834 = vor.u32 %v1833, 8388608
    %v1835 = vsub.s32 0, %v1834
    %v1836 = vadd.s32 %v1831, 1
    %vm1837 = vcmp.gt.s32.totalorder %v1836, 0
    %v1838 = vsel %vm1837, %v1836, 0
    %v1839 = vshrl.u32 %v1838, 5
    %v1840 = vand.u32 %v1838, 31
    %v1841 = vsub.s32 32, %v1840
    %v1842 = vshrl.u32 683565275, %v1841
    %v1843 = vshll.u32 683565275, %v1840
    %v1844 = vshrl.u32 2475754826, %v1841
    %v1845 = vor.u32 %v1843, %v1844
    %v1846 = vshll.u32 2475754826, %v1840
    %v1847 = vshrl.u32 2131351028, %v1841
    %v1848 = vor.u32 %v1846, %v1847
    %v1849 = vshll.u32 2131351028, %v1840
    %v1850 = vshrl.u32 2102212464, %v1841
    %v1851 = vor.u32 %v1849, %v1850
    %v1852 = vshll.u32 2102212464, %v1840
    %v1853 = vshrl.u32 920167782, %v1841
    %v1854 = vor.u32 %v1852, %v1853
    %v1855 = vshll.u32 920167782, %v1840
    %v1856 = vshrl.u32 1326507024, %v1841
    %v1857 = vor.u32 %v1855, %v1856
    %vm1858 = vcmp.lt.s32.totalorder %v1839, 1
    %vm1859 = vcmp.lt.s32.totalorder %v1839, 2
    %vm1860 = vcmp.lt.s32.totalorder %v1839, 3
    %vm1861 = vcmp.lt.s32.totalorder %v1839, 4
    %v1862 = vsel %vm1858, %v1842, %v1845
    %v1863 = vsel %vm1861, %v1851, 2102212464
    %v1864 = vsel %vm1860, %v1848, %v1863
    %v1865 = vsel %vm1859, %v1862, %v1864
    %v1866 = vsel %vm1858, %v1845, %v1848
    %v1867 = vsel %vm1861, %v1854, 920167782
    %v1868 = vsel %vm1860, %v1851, %v1867
    %v1869 = vsel %vm1859, %v1866, %v1868
    %v1870 = vsel %vm1858, %v1848, %v1851
    %v1871 = vsel %vm1861, %v1857, 1326507024
    %v1872 = vsel %vm1860, %v1854, %v1871
    %v1873 = vsel %vm1859, %v1870, %v1872
    %v1874 = vshll.u32 %v1834, 8
    %v1875 = vmul.u32.u64.compose %v1874, %v1873
    %v1876 = vextract.low.u32 %v1875
    %v1877 = vextract.high.u32 %v1875
    %v1878 = vmul.u32.u64.compose %v1874, %v1869
    %v1879 = vextract.low.u32 %v1878
    %v1880 = vextract.high.u32 %v1878
    %v1881 = vmul.u32 %v1874, %v1865
    %v1882 = vadd.s32 %v1877, %v1879
    %vm1883 = vc.u32 %v1877, %v1879
    %v1884 = vadd.s32 %v1880, 1
    %v1885 = vsel %vm1883, %v1884, %v1880
    %v1886 = vadd.s32 %v1881, %v1885
    %v1887 = vadd.s32 %v1886, 536870912
    %v1888 = vshrl.u32 %v1887, 30
    %v1889 = vshll.u32 %v1888, 30
    %v1890 = vsub.s32 %v1886, %v1889
    %vm1891 = vcmp.lt.s32.totalorder %v1890, 0
    %v1892 = vsub.s32 0, %v1890
    %v1893 = vsel %vm1891, %v1892, %v1890
    %v1894 = vclz %v1893
    %v1895 = vsub.s32 %v1894, 2
    %vm1896 = vcmp.gt.s32.totalorder 0, %v1895
    %v1897 = vsel %vm1896, 0, %v1895
    %v1898 = vsub.s32 32, %v1897
    %v1899 = vshll.u32 %v1890, %v1897
    %v1900 = vshrl.u32 %v1882, %v1898
    %v1901 = vor.u32 %v1899, %v1900
    %v1902 = vsub.s32 4294967266, %v1897
    %v1903 = vadd.s32 %v1902, 127
    %v1904 = vshll.u32 %v1903, 23
    %v1905 = vor.u32 4788187, %v1904
    %v1906 = vand.u32 2147483647, %v1905
    %v1908 = vcvt.s32.f32 %v1901
    %v1909 = vmul.f32 %v1908, %v1906
    %v1910 = vxor.u32 %v1909, 2147483648
    %v1911 = vsel %vm1828, %v1910, %v1909
    %v1912 = vsub.s32 4, %v1888
    %v1913 = vsel %vm1828, %v1912, %v1888
    %v1914 = vsel %vm1827, %v146, %v1911
    %v1915 = vsel %vm1827, 0, %v1913
    %v1916 = vcosq.f32.pop %v1914
    %v1917 = vsinq.f32.pop %v1914
    %vm1918 = vweird.f32 %v146
    %v1919 = vadd.s32 %v1915, 3
    %v1920 = vand.u32 %v1919, 3
    %vm1921 = vcmp.lt.s32.totalorder %v1920, 2
    %vm1922 = vcmp.eq.s32.totalorder %v1920, 0
    %v1923 = vxor.u32 %v1917, 2147483648
    %v1924 = vsel %vm1922, %v1916, %v1923
    %vm1925 = vcmp.eq.s32.totalorder %v1920, 2
    %v1926 = vxor.u32 %v1916, 2147483648
    %v1927 = vsel %vm1925, %v1926, %v1917
    %v1928 = vsel %vm1921, %v1924, %v1927
    %v1929 = vsel %vm1918, nan, %v1928
    %v1930 = vand.u32 2147483647, %v147
    %vm1931 = vcmp.le.f32.partialorder %v1930, 0.7853982
    %vm1932 = vcmp.lt.s32.totalorder %v147, 0
    %v1933 = vand.u32 %v147, 2139095040
    %v1934 = vshrl.u32 %v1933, 23
    %v1935 = vsub.s32 %v1934, 127
    %v1936 = vand.u32 2147483647, %v147
    %v1937 = vand.u32 %v1936, 8388607
    %v1938 = vor.u32 %v1937, 8388608
    %v1939 = vsub.s32 0, %v1938
    %v1940 = vadd.s32 %v1935, 1
    %vm1941 = vcmp.gt.s32.totalorder %v1940, 0
    %v1942 = vsel %vm1941, %v1940, 0
    %v1943 = vshrl.u32 %v1942, 5
    %v1944 = vand.u32 %v1942, 31
    %v1945 = vsub.s32 32, %v1944
    %v1946 = vshrl.u32 683565275, %v1945
    %v1947 = vshll.u32 683565275, %v1944
    %v1948 = vshrl.u32 2475754826, %v1945
    %v1949 = vor.u32 %v1947, %v1948
    %v1950 = vshll.u32 2475754826, %v1944
    %v1951 = vshrl.u32 2131351028, %v1945
    %v1952 = vor.u32 %v1950, %v1951
    %v1953 = vshll.u32 2131351028, %v1944
    %v1954 = vshrl.u32 2102212464, %v1945
    %v1955 = vor.u32 %v1953, %v1954
    %v1956 = vshll.u32 2102212464, %v1944
    %v1957 = vshrl.u32 920167782, %v1945
    %v1958 = vor.u32 %v1956, %v1957
    %v1959 = vshll.u32 920167782, %v1944
    %v1960 = vshrl.u32 1326507024, %v1945
    %v1961 = vor.u32 %v1959, %v1960
    %vm1962 = vcmp.lt.s32.totalorder %v1943, 1
    %vm1963 = vcmp.lt.s32.totalorder %v1943, 2
    %vm1964 = vcmp.lt.s32.totalorder %v1943, 3
    %vm1965 = vcmp.lt.s32.totalorder %v1943, 4
    %v1966 = vsel %vm1962, %v1946, %v1949
    %v1967 = vsel %vm1965, %v1955, 2102212464
    %v1968 = vsel %vm1964, %v1952, %v1967
    %v1969 = vsel %vm1963, %v1966, %v1968
    %v1970 = vsel %vm1962, %v1949, %v1952
    %v1971 = vsel %vm1965, %v1958, 920167782
    %v1972 = vsel %vm1964, %v1955, %v1971
    %v1973 = vsel %vm1963, %v1970, %v1972
    %v1974 = vsel %vm1962, %v1952, %v1955
    %v1975 = vsel %vm1965, %v1961, 1326507024
    %v1976 = vsel %vm1964, %v1958, %v1975
    %v1977 = vsel %vm1963, %v1974, %v1976
    %v1978 = vshll.u32 %v1938, 8
    %v1979 = vmul.u32.u64.compose %v1978, %v1977
    %v1980 = vextract.low.u32 %v1979
    %v1981 = vextract.high.u32 %v1979
    %v1982 = vmul.u32.u64.compose %v1978, %v1973
    %v1983 = vextract.low.u32 %v1982
    %v1984 = vextract.high.u32 %v1982
    %v1985 = vmul.u32 %v1978, %v1969
    %v1986 = vadd.s32 %v1981, %v1983
    %vm1987 = vc.u32 %v1981, %v1983
    %v1988 = vadd.s32 %v1984, 1
    %v1989 = vsel %vm1987, %v1988, %v1984
    %v1990 = vadd.s32 %v1985, %v1989
    %v1991 = vadd.s32 %v1990, 536870912
    %v1992 = vshrl.u32 %v1991, 30
    %v1993 = vshll.u32 %v1992, 30
    %v1994 = vsub.s32 %v1990, %v1993
    %vm1995 = vcmp.lt.s32.totalorder %v1994, 0
    %v1996 = vsub.s32 0, %v1994
    %v1997 = vsel %vm1995, %v1996, %v1994
    %v1998 = vclz %v1997
    %v1999 = vsub.s32 %v1998, 2
    %vm2000 = vcmp.gt.s32.totalorder 0, %v1999
    %v2001 = vsel %vm2000, 0, %v1999
    %v2002 = vsub.s32 32, %v2001
    %v2003 = vshll.u32 %v1994, %v2001
    %v2004 = vshrl.u32 %v1986, %v2002
    %v2005 = vor.u32 %v2003, %v2004
    %v2006 = vsub.s32 4294967266, %v2001
    %v2007 = vadd.s32 %v2006, 127
    %v2008 = vshll.u32 %v2007, 23
    %v2009 = vor.u32 4788187, %v2008
    %v2010 = vand.u32 2147483647, %v2009
    %v2012 = vcvt.s32.f32 %v2005
    %v2013 = vmul.f32 %v2012, %v2010
    %v2014 = vxor.u32 %v2013, 2147483648
    %v2015 = vsel %vm1932, %v2014, %v2013
    %v2016 = vsub.s32 4, %v1992
    %v2017 = vsel %vm1932, %v2016, %v1992
    %v2018 = vsel %vm1931, %v147, %v2015
    %v2019 = vsel %vm1931, 0, %v2017
    %v2020 = vcosq.f32.pop %v2018
    %v2021 = vsinq.f32.pop %v2018
    %vm2022 = vweird.f32 %v147
    %v2023 = vadd.s32 %v2019, 3
    %v2024 = vand.u32 %v2023, 3
    %vm2025 = vcmp.lt.s32.totalorder %v2024, 2
    %vm2026 = vcmp.eq.s32.totalorder %v2024, 0
    %v2027 = vxor.u32 %v2021, 2147483648
    %v2028 = vsel %vm2026, %v2020, %v2027
    %vm2029 = vcmp.eq.s32.totalorder %v2024, 2
    %v2030 = vxor.u32 %v2020, 2147483648
    %v2031 = vsel %vm2029, %v2030, %v2021
    %v2032 = vsel %vm2025, %v2028, %v2031
    %v2033 = vsel %vm2022, nan, %v2032
    %v2034 = vand.u32 2147483647, %v148
    %vm2035 = vcmp.le.f32.partialorder %v2034, 0.7853982
    %vm2036 = vcmp.lt.s32.totalorder %v148, 0
    %v2037 = vand.u32 %v148, 2139095040
    %v2038 = vshrl.u32 %v2037, 23
    %v2039 = vsub.s32 %v2038, 127
    %v2040 = vand.u32 2147483647, %v148
    %v2041 = vand.u32 %v2040, 8388607
    %v2042 = vor.u32 %v2041, 8388608
    %v2043 = vsub.s32 0, %v2042
    %v2044 = vadd.s32 %v2039, 1
    %vm2045 = vcmp.gt.s32.totalorder %v2044, 0
    %v2046 = vsel %vm2045, %v2044, 0
    %v2047 = vshrl.u32 %v2046, 5
    %v2048 = vand.u32 %v2046, 31
    %v2049 = vsub.s32 32, %v2048
    %v2050 = vshrl.u32 683565275, %v2049
    %v2051 = vshll.u32 683565275, %v2048
    %v2052 = vshrl.u32 2475754826, %v2049
    %v2053 = vor.u32 %v2051, %v2052
    %v2054 = vshll.u32 2475754826, %v2048
    %v2055 = vshrl.u32 2131351028, %v2049
    %v2056 = vor.u32 %v2054, %v2055
    %v2057 = vshll.u32 2131351028, %v2048
    %v2058 = vshrl.u32 2102212464, %v2049
    %v2059 = vor.u32 %v2057, %v2058
    %v2060 = vshll.u32 2102212464, %v2048
    %v2061 = vshrl.u32 920167782, %v2049
    %v2062 = vor.u32 %v2060, %v2061
    %v2063 = vshll.u32 920167782, %v2048
    %v2064 = vshrl.u32 1326507024, %v2049
    %v2065 = vor.u32 %v2063, %v2064
    %vm2066 = vcmp.lt.s32.totalorder %v2047, 1
    %vm2067 = vcmp.lt.s32.totalorder %v2047, 2
    %vm2068 = vcmp.lt.s32.totalorder %v2047, 3
    %vm2069 = vcmp.lt.s32.totalorder %v2047, 4
    %v2070 = vsel %vm2066, %v2050, %v2053
    %v2071 = vsel %vm2069, %v2059, 2102212464
    %v2072 = vsel %vm2068, %v2056, %v2071
    %v2073 = vsel %vm2067, %v2070, %v2072
    %v2074 = vsel %vm2066, %v2053, %v2056
    %v2075 = vsel %vm2069, %v2062, 920167782
    %v2076 = vsel %vm2068, %v2059, %v2075
    %v2077 = vsel %vm2067, %v2074, %v2076
    %v2078 = vsel %vm2066, %v2056, %v2059
    %v2079 = vsel %vm2069, %v2065, 1326507024
    %v2080 = vsel %vm2068, %v2062, %v2079
    %v2081 = vsel %vm2067, %v2078, %v2080
    %v2082 = vshll.u32 %v2042, 8
    %v2083 = vmul.u32.u64.compose %v2082, %v2081
    %v2084 = vextract.low.u32 %v2083
    %v2085 = vextract.high.u32 %v2083
    %v2086 = vmul.u32.u64.compose %v2082, %v2077
    %v2087 = vextract.low.u32 %v2086
    %v2088 = vextract.high.u32 %v2086
    %v2089 = vmul.u32 %v2082, %v2073
    %v2090 = vadd.s32 %v2085, %v2087
    %vm2091 = vc.u32 %v2085, %v2087
    %v2092 = vadd.s32 %v2088, 1
    %v2093 = vsel %vm2091, %v2092, %v2088
    %v2094 = vadd.s32 %v2089, %v2093
    %v2095 = vadd.s32 %v2094, 536870912
    %v2096 = vshrl.u32 %v2095, 30
    %v2097 = vshll.u32 %v2096, 30
    %v2098 = vsub.s32 %v2094, %v2097
    %vm2099 = vcmp.lt.s32.totalorder %v2098, 0
    %v2100 = vsub.s32 0, %v2098
    %v2101 = vsel %vm2099, %v2100, %v2098
    %v2102 = vclz %v2101
    %v2103 = vsub.s32 %v2102, 2
    %vm2104 = vcmp.gt.s32.totalorder 0, %v2103
    %v2105 = vsel %vm2104, 0, %v2103
    %v2106 = vsub.s32 32, %v2105
    %v2107 = vshll.u32 %v2098, %v2105
    %v2108 = vshrl.u32 %v2090, %v2106
    %v2109 = vor.u32 %v2107, %v2108
    %v2110 = vsub.s32 4294967266, %v2105
    %v2111 = vadd.s32 %v2110, 127
    %v2112 = vshll.u32 %v2111, 23
    %v2113 = vor.u32 4788187, %v2112
    %v2114 = vand.u32 2147483647, %v2113
    %v2116 = vcvt.s32.f32 %v2109
    %v2117 = vmul.f32 %v2116, %v2114
    %v2118 = vxor.u32 %v2117, 2147483648
    %v2119 = vsel %vm2036, %v2118, %v2117
    %v2120 = vsub.s32 4, %v2096
    %v2121 = vsel %vm2036, %v2120, %v2096
    %v2122 = vsel %vm2035, %v148, %v2119
    %v2123 = vsel %vm2035, 0, %v2121
    %v2124 = vcosq.f32.pop %v2122
    %v2125 = vsinq.f32.pop %v2122
    %vm2126 = vweird.f32 %v148
    %v2127 = vadd.s32 %v2123, 3
    %v2128 = vand.u32 %v2127, 3
    %vm2129 = vcmp.lt.s32.totalorder %v2128, 2
    %vm2130 = vcmp.eq.s32.totalorder %v2128, 0
    %v2131 = vxor.u32 %v2125, 2147483648
    %v2132 = vsel %vm2130, %v2124, %v2131
    %vm2133 = vcmp.eq.s32.totalorder %v2128, 2
    %v2134 = vxor.u32 %v2124, 2147483648
    %v2135 = vsel %vm2133, %v2134, %v2125
    %v2136 = vsel %vm2129, %v2132, %v2135
    %v2137 = vsel %vm2126, nan, %v2136
    %v2138 = vand.u32 2147483647, %v149
    %vm2139 = vcmp.le.f32.partialorder %v2138, 0.7853982
    %vm2140 = vcmp.lt.s32.totalorder %v149, 0
    %v2141 = vand.u32 %v149, 2139095040
    %v2142 = vshrl.u32 %v2141, 23
    %v2143 = vsub.s32 %v2142, 127
    %v2144 = vand.u32 2147483647, %v149
    %v2145 = vand.u32 %v2144, 8388607
    %v2146 = vor.u32 %v2145, 8388608
    %v2147 = vsub.s32 0, %v2146
    %v2148 = vadd.s32 %v2143, 1
    %vm2149 = vcmp.gt.s32.totalorder %v2148, 0
    %v2150 = vsel %vm2149, %v2148, 0
    %v2151 = vshrl.u32 %v2150, 5
    %v2152 = vand.u32 %v2150, 31
    %v2153 = vsub.s32 32, %v2152
    %v2154 = vshrl.u32 683565275, %v2153
    %v2155 = vshll.u32 683565275, %v2152
    %v2156 = vshrl.u32 2475754826, %v2153
    %v2157 = vor.u32 %v2155, %v2156
    %v2158 = vshll.u32 2475754826, %v2152
    %v2159 = vshrl.u32 2131351028, %v2153
    %v2160 = vor.u32 %v2158, %v2159
    %v2161 = vshll.u32 2131351028, %v2152
    %v2162 = vshrl.u32 2102212464, %v2153
    %v2163 = vor.u32 %v2161, %v2162
    %v2164 = vshll.u32 2102212464, %v2152
    %v2165 = vshrl.u32 920167782, %v2153
    %v2166 = vor.u32 %v2164, %v2165
    %v2167 = vshll.u32 920167782, %v2152
    %v2168 = vshrl.u32 1326507024, %v2153
    %v2169 = vor.u32 %v2167, %v2168
    %vm2170 = vcmp.lt.s32.totalorder %v2151, 1
    %vm2171 = vcmp.lt.s32.totalorder %v2151, 2
    %vm2172 = vcmp.lt.s32.totalorder %v2151, 3
    %vm2173 = vcmp.lt.s32.totalorder %v2151, 4
    %v2174 = vsel %vm2170, %v2154, %v2157
    %v2175 = vsel %vm2173, %v2163, 2102212464
    %v2176 = vsel %vm2172, %v2160, %v2175
    %v2177 = vsel %vm2171, %v2174, %v2176
    %v2178 = vsel %vm2170, %v2157, %v2160
    %v2179 = vsel %vm2173, %v2166, 920167782
    %v2180 = vsel %vm2172, %v2163, %v2179
    %v2181 = vsel %vm2171, %v2178, %v2180
    %v2182 = vsel %vm2170, %v2160, %v2163
    %v2183 = vsel %vm2173, %v2169, 1326507024
    %v2184 = vsel %vm2172, %v2166, %v2183
    %v2185 = vsel %vm2171, %v2182, %v2184
    %v2186 = vshll.u32 %v2146, 8
    %v2187 = vmul.u32.u64.compose %v2186, %v2185
    %v2188 = vextract.low.u32 %v2187
    %v2189 = vextract.high.u32 %v2187
    %v2190 = vmul.u32.u64.compose %v2186, %v2181
    %v2191 = vextract.low.u32 %v2190
    %v2192 = vextract.high.u32 %v2190
    %v2193 = vmul.u32 %v2186, %v2177
    %v2194 = vadd.s32 %v2189, %v2191
    %vm2195 = vc.u32 %v2189, %v2191
    %v2196 = vadd.s32 %v2192, 1
    %v2197 = vsel %vm2195, %v2196, %v2192
    %v2198 = vadd.s32 %v2193, %v2197
    %v2199 = vadd.s32 %v2198, 536870912
    %v2200 = vshrl.u32 %v2199, 30
    %v2201 = vshll.u32 %v2200, 30
    %v2202 = vsub.s32 %v2198, %v2201
    %vm2203 = vcmp.lt.s32.totalorder %v2202, 0
    %v2204 = vsub.s32 0, %v2202
    %v2205 = vsel %vm2203, %v2204, %v2202
    %v2206 = vclz %v2205
    %v2207 = vsub.s32 %v2206, 2
    %vm2208 = vcmp.gt.s32.totalorder 0, %v2207
    %v2209 = vsel %vm2208, 0, %v2207
    %v2210 = vsub.s32 32, %v2209
    %v2211 = vshll.u32 %v2202, %v2209
    %v2212 = vshrl.u32 %v2194, %v2210
    %v2213 = vor.u32 %v2211, %v2212
    %v2214 = vsub.s32 4294967266, %v2209
    %v2215 = vadd.s32 %v2214, 127
    %v2216 = vshll.u32 %v2215, 23
    %v2217 = vor.u32 4788187, %v2216
    %v2218 = vand.u32 2147483647, %v2217
    %v2220 = vcvt.s32.f32 %v2213
    %v2221 = vmul.f32 %v2220, %v2218
    %v2222 = vxor.u32 %v2221, 2147483648
    %v2223 = vsel %vm2140, %v2222, %v2221
    %v2224 = vsub.s32 4, %v2200
    %v2225 = vsel %vm2140, %v2224, %v2200
    %v2226 = vsel %vm2139, %v149, %v2223
    %v2227 = vsel %vm2139, 0, %v2225
    %v2228 = vcosq.f32.pop %v2226
    %v2229 = vsinq.f32.pop %v2226
    %vm2230 = vweird.f32 %v149
    %v2231 = vadd.s32 %v2227, 3
    %v2232 = vand.u32 %v2231, 3
    %vm2233 = vcmp.lt.s32.totalorder %v2232, 2
    %vm2234 = vcmp.eq.s32.totalorder %v2232, 0
    %v2235 = vxor.u32 %v2229, 2147483648
    %v2236 = vsel %vm2234, %v2228, %v2235
    %vm2237 = vcmp.eq.s32.totalorder %v2232, 2
    %v2238 = vxor.u32 %v2228, 2147483648
    %v2239 = vsel %vm2237, %v2238, %v2229
    %v2240 = vsel %vm2233, %v2236, %v2239
    %v2241 = vsel %vm2230, nan, %v2240
    %v2242 = vand.u32 2147483647, %v150
    %vm2243 = vcmp.le.f32.partialorder %v2242, 0.7853982
    %vm2244 = vcmp.lt.s32.totalorder %v150, 0
    %v2245 = vand.u32 %v150, 2139095040
    %v2246 = vshrl.u32 %v2245, 23
    %v2247 = vsub.s32 %v2246, 127
    %v2248 = vand.u32 2147483647, %v150
    %v2249 = vand.u32 %v2248, 8388607
    %v2250 = vor.u32 %v2249, 8388608
    %v2251 = vsub.s32 0, %v2250
    %v2252 = vadd.s32 %v2247, 1
    %vm2253 = vcmp.gt.s32.totalorder %v2252, 0
    %v2254 = vsel %vm2253, %v2252, 0
    %v2255 = vshrl.u32 %v2254, 5
    %v2256 = vand.u32 %v2254, 31
    %v2257 = vsub.s32 32, %v2256
    %v2258 = vshrl.u32 683565275, %v2257
    %v2259 = vshll.u32 683565275, %v2256
    %v2260 = vshrl.u32 2475754826, %v2257
    %v2261 = vor.u32 %v2259, %v2260
    %v2262 = vshll.u32 2475754826, %v2256
    %v2263 = vshrl.u32 2131351028, %v2257
    %v2264 = vor.u32 %v2262, %v2263
    %v2265 = vshll.u32 2131351028, %v2256
    %v2266 = vshrl.u32 2102212464, %v2257
    %v2267 = vor.u32 %v2265, %v2266
    %v2268 = vshll.u32 2102212464, %v2256
    %v2269 = vshrl.u32 920167782, %v2257
    %v2270 = vor.u32 %v2268, %v2269
    %v2271 = vshll.u32 920167782, %v2256
    %v2272 = vshrl.u32 1326507024, %v2257
    %v2273 = vor.u32 %v2271, %v2272
    %vm2274 = vcmp.lt.s32.totalorder %v2255, 1
    %vm2275 = vcmp.lt.s32.totalorder %v2255, 2
    %vm2276 = vcmp.lt.s32.totalorder %v2255, 3
    %vm2277 = vcmp.lt.s32.totalorder %v2255, 4
    %v2278 = vsel %vm2274, %v2258, %v2261
    %v2279 = vsel %vm2277, %v2267, 2102212464
    %v2280 = vsel %vm2276, %v2264, %v2279
    %v2281 = vsel %vm2275, %v2278, %v2280
    %v2282 = vsel %vm2274, %v2261, %v2264
    %v2283 = vsel %vm2277, %v2270, 920167782
    %v2284 = vsel %vm2276, %v2267, %v2283
    %v2285 = vsel %vm2275, %v2282, %v2284
    %v2286 = vsel %vm2274, %v2264, %v2267
    %v2287 = vsel %vm2277, %v2273, 1326507024
    %v2288 = vsel %vm2276, %v2270, %v2287
    %v2289 = vsel %vm2275, %v2286, %v2288
    %v2290 = vshll.u32 %v2250, 8
    %v2291 = vmul.u32.u64.compose %v2290, %v2289
    %v2292 = vextract.low.u32 %v2291
    %v2293 = vextract.high.u32 %v2291
    %v2294 = vmul.u32.u64.compose %v2290, %v2285
    %v2295 = vextract.low.u32 %v2294
    %v2296 = vextract.high.u32 %v2294
    %v2297 = vmul.u32 %v2290, %v2281
    %v2298 = vadd.s32 %v2293, %v2295
    %vm2299 = vc.u32 %v2293, %v2295
    %v2300 = vadd.s32 %v2296, 1
    %v2301 = vsel %vm2299, %v2300, %v2296
    %v2302 = vadd.s32 %v2297, %v2301
    %v2303 = vadd.s32 %v2302, 536870912
    %v2304 = vshrl.u32 %v2303, 30
    %v2305 = vshll.u32 %v2304, 30
    %v2306 = vsub.s32 %v2302, %v2305
    %vm2307 = vcmp.lt.s32.totalorder %v2306, 0
    %v2308 = vsub.s32 0, %v2306
    %v2309 = vsel %vm2307, %v2308, %v2306
    %v2310 = vclz %v2309
    %v2311 = vsub.s32 %v2310, 2
    %vm2312 = vcmp.gt.s32.totalorder 0, %v2311
    %v2313 = vsel %vm2312, 0, %v2311
    %v2314 = vsub.s32 32, %v2313
    %v2315 = vshll.u32 %v2306, %v2313
    %v2316 = vshrl.u32 %v2298, %v2314
    %v2317 = vor.u32 %v2315, %v2316
    %v2318 = vsub.s32 4294967266, %v2313
    %v2319 = vadd.s32 %v2318, 127
    %v2320 = vshll.u32 %v2319, 23
    %v2321 = vor.u32 4788187, %v2320
    %v2322 = vand.u32 2147483647, %v2321
    %v2324 = vcvt.s32.f32 %v2317
    %v2325 = vmul.f32 %v2324, %v2322
    %v2326 = vxor.u32 %v2325, 2147483648
    %v2327 = vsel %vm2244, %v2326, %v2325
    %v2328 = vsub.s32 4, %v2304
    %v2329 = vsel %vm2244, %v2328, %v2304
    %v2330 = vsel %vm2243, %v150, %v2327
    %v2331 = vsel %vm2243, 0, %v2329
    %v2332 = vcosq.f32.pop %v2330
    %v2333 = vsinq.f32.pop %v2330
    %vm2334 = vweird.f32 %v150
    %v2335 = vadd.s32 %v2331, 3
    %v2336 = vand.u32 %v2335, 3
    %vm2337 = vcmp.lt.s32.totalorder %v2336, 2
    %vm2338 = vcmp.eq.s32.totalorder %v2336, 0
    %v2339 = vxor.u32 %v2333, 2147483648
    %v2340 = vsel %vm2338, %v2332, %v2339
    %vm2341 = vcmp.eq.s32.totalorder %v2336, 2
    %v2342 = vxor.u32 %v2332, 2147483648
    %v2343 = vsel %vm2341, %v2342, %v2333
    %v2344 = vsel %vm2337, %v2340, %v2343
    %v2345 = vsel %vm2334, nan, %v2344
    %v2346 = vand.u32 2147483647, %v151
    %vm2347 = vcmp.le.f32.partialorder %v2346, 0.7853982
    %vm2348 = vcmp.lt.s32.totalorder %v151, 0
    %v2349 = vand.u32 %v151, 2139095040
    %v2350 = vshrl.u32 %v2349, 23
    %v2351 = vsub.s32 %v2350, 127
    %v2352 = vand.u32 2147483647, %v151
    %v2353 = vand.u32 %v2352, 8388607
    %v2354 = vor.u32 %v2353, 8388608
    %v2355 = vsub.s32 0, %v2354
    %v2356 = vadd.s32 %v2351, 1
    %vm2357 = vcmp.gt.s32.totalorder %v2356, 0
    %v2358 = vsel %vm2357, %v2356, 0
    %v2359 = vshrl.u32 %v2358, 5
    %v2360 = vand.u32 %v2358, 31
    %v2361 = vsub.s32 32, %v2360
    %v2362 = vshrl.u32 683565275, %v2361
    %v2363 = vshll.u32 683565275, %v2360
    %v2364 = vshrl.u32 2475754826, %v2361
    %v2365 = vor.u32 %v2363, %v2364
    %v2366 = vshll.u32 2475754826, %v2360
    %v2367 = vshrl.u32 2131351028, %v2361
    %v2368 = vor.u32 %v2366, %v2367
    %v2369 = vshll.u32 2131351028, %v2360
    %v2370 = vshrl.u32 2102212464, %v2361
    %v2371 = vor.u32 %v2369, %v2370
    %v2372 = vshll.u32 2102212464, %v2360
    %v2373 = vshrl.u32 920167782, %v2361
    %v2374 = vor.u32 %v2372, %v2373
    %v2375 = vshll.u32 920167782, %v2360
    %v2376 = vshrl.u32 1326507024, %v2361
    %v2377 = vor.u32 %v2375, %v2376
    %vm2378 = vcmp.lt.s32.totalorder %v2359, 1
    %vm2379 = vcmp.lt.s32.totalorder %v2359, 2
    %vm2380 = vcmp.lt.s32.totalorder %v2359, 3
    %vm2381 = vcmp.lt.s32.totalorder %v2359, 4
    %v2382 = vsel %vm2378, %v2362, %v2365
    %v2383 = vsel %vm2381, %v2371, 2102212464
    %v2384 = vsel %vm2380, %v2368, %v2383
    %v2385 = vsel %vm2379, %v2382, %v2384
    %v2386 = vsel %vm2378, %v2365, %v2368
    %v2387 = vsel %vm2381, %v2374, 920167782
    %v2388 = vsel %vm2380, %v2371, %v2387
    %v2389 = vsel %vm2379, %v2386, %v2388
    %v2390 = vsel %vm2378, %v2368, %v2371
    %v2391 = vsel %vm2381, %v2377, 1326507024
    %v2392 = vsel %vm2380, %v2374, %v2391
    %v2393 = vsel %vm2379, %v2390, %v2392
    %v2394 = vshll.u32 %v2354, 8
    %v2395 = vmul.u32.u64.compose %v2394, %v2393
    %v2396 = vextract.low.u32 %v2395
    %v2397 = vextract.high.u32 %v2395
    %v2398 = vmul.u32.u64.compose %v2394, %v2389
    %v2399 = vextract.low.u32 %v2398
    %v2400 = vextract.high.u32 %v2398
    %v2401 = vmul.u32 %v2394, %v2385
    %v2402 = vadd.s32 %v2397, %v2399
    %vm2403 = vc.u32 %v2397, %v2399
    %v2404 = vadd.s32 %v2400, 1
    %v2405 = vsel %vm2403, %v2404, %v2400
    %v2406 = vadd.s32 %v2401, %v2405
    %v2407 = vadd.s32 %v2406, 536870912
    %v2408 = vshrl.u32 %v2407, 30
    %v2409 = vshll.u32 %v2408, 30
    %v2410 = vsub.s32 %v2406, %v2409
    %vm2411 = vcmp.lt.s32.totalorder %v2410, 0
    %v2412 = vsub.s32 0, %v2410
    %v2413 = vsel %vm2411, %v2412, %v2410
    %v2414 = vclz %v2413
    %v2415 = vsub.s32 %v2414, 2
    %vm2416 = vcmp.gt.s32.totalorder 0, %v2415
    %v2417 = vsel %vm2416, 0, %v2415
    %v2418 = vsub.s32 32, %v2417
    %v2419 = vshll.u32 %v2410, %v2417
    %v2420 = vshrl.u32 %v2402, %v2418
    %v2421 = vor.u32 %v2419, %v2420
    %v2422 = vsub.s32 4294967266, %v2417
    %v2423 = vadd.s32 %v2422, 127
    %v2424 = vshll.u32 %v2423, 23
    %v2425 = vor.u32 4788187, %v2424
    %v2426 = vand.u32 2147483647, %v2425
    %v2428 = vcvt.s32.f32 %v2421
    %v2429 = vmul.f32 %v2428, %v2426
    %v2430 = vxor.u32 %v2429, 2147483648
    %v2431 = vsel %vm2348, %v2430, %v2429
    %v2432 = vsub.s32 4, %v2408
    %v2433 = vsel %vm2348, %v2432, %v2408
    %v2434 = vsel %vm2347, %v151, %v2431
    %v2435 = vsel %vm2347, 0, %v2433
    %v2436 = vcosq.f32.pop %v2434
    %v2437 = vsinq.f32.pop %v2434
    %vm2438 = vweird.f32 %v151
    %v2439 = vadd.s32 %v2435, 3
    %v2440 = vand.u32 %v2439, 3
    %vm2441 = vcmp.lt.s32.totalorder %v2440, 2
    %vm2442 = vcmp.eq.s32.totalorder %v2440, 0
    %v2443 = vxor.u32 %v2437, 2147483648
    %v2444 = vsel %vm2442, %v2436, %v2443
    %vm2445 = vcmp.eq.s32.totalorder %v2440, 2
    %v2446 = vxor.u32 %v2436, 2147483648
    %v2447 = vsel %vm2445, %v2446, %v2437
    %v2448 = vsel %vm2441, %v2444, %v2447
    %v2449 = vsel %vm2438, nan, %v2448
    %v2450 = vand.u32 2147483647, %v152
    %vm2451 = vcmp.le.f32.partialorder %v2450, 0.7853982
    %vm2452 = vcmp.lt.s32.totalorder %v152, 0
    %v2453 = vand.u32 %v152, 2139095040
    %v2454 = vshrl.u32 %v2453, 23
    %v2455 = vsub.s32 %v2454, 127
    %v2456 = vand.u32 2147483647, %v152
    %v2457 = vand.u32 %v2456, 8388607
    %v2458 = vor.u32 %v2457, 8388608
    %v2459 = vsub.s32 0, %v2458
    %v2460 = vadd.s32 %v2455, 1
    %vm2461 = vcmp.gt.s32.totalorder %v2460, 0
    %v2462 = vsel %vm2461, %v2460, 0
    %v2463 = vshrl.u32 %v2462, 5
    %v2464 = vand.u32 %v2462, 31
    %v2465 = vsub.s32 32, %v2464
    %v2466 = vshrl.u32 683565275, %v2465
    %v2467 = vshll.u32 683565275, %v2464
    %v2468 = vshrl.u32 2475754826, %v2465
    %v2469 = vor.u32 %v2467, %v2468
    %v2470 = vshll.u32 2475754826, %v2464
    %v2471 = vshrl.u32 2131351028, %v2465
    %v2472 = vor.u32 %v2470, %v2471
    %v2473 = vshll.u32 2131351028, %v2464
    %v2474 = vshrl.u32 2102212464, %v2465
    %v2475 = vor.u32 %v2473, %v2474
    %v2476 = vshll.u32 2102212464, %v2464
    %v2477 = vshrl.u32 920167782, %v2465
    %v2478 = vor.u32 %v2476, %v2477
    %v2479 = vshll.u32 920167782, %v2464
    %v2480 = vshrl.u32 1326507024, %v2465
    %v2481 = vor.u32 %v2479, %v2480
    %vm2482 = vcmp.lt.s32.totalorder %v2463, 1
    %vm2483 = vcmp.lt.s32.totalorder %v2463, 2
    %vm2484 = vcmp.lt.s32.totalorder %v2463, 3
    %vm2485 = vcmp.lt.s32.totalorder %v2463, 4
    %v2486 = vsel %vm2482, %v2466, %v2469
    %v2487 = vsel %vm2485, %v2475, 2102212464
    %v2488 = vsel %vm2484, %v2472, %v2487
    %v2489 = vsel %vm2483, %v2486, %v2488
    %v2490 = vsel %vm2482, %v2469, %v2472
    %v2491 = vsel %vm2485, %v2478, 920167782
    %v2492 = vsel %vm2484, %v2475, %v2491
    %v2493 = vsel %vm2483, %v2490, %v2492
    %v2494 = vsel %vm2482, %v2472, %v2475
    %v2495 = vsel %vm2485, %v2481, 1326507024
    %v2496 = vsel %vm2484, %v2478, %v2495
    %v2497 = vsel %vm2483, %v2494, %v2496
    %v2498 = vshll.u32 %v2458, 8
    %v2499 = vmul.u32.u64.compose %v2498, %v2497
    %v2500 = vextract.low.u32 %v2499
    %v2501 = vextract.high.u32 %v2499
    %v2502 = vmul.u32.u64.compose %v2498, %v2493
    %v2503 = vextract.low.u32 %v2502
    %v2504 = vextract.high.u32 %v2502
    %v2505 = vmul.u32 %v2498, %v2489
    %v2506 = vadd.s32 %v2501, %v2503
    %vm2507 = vc.u32 %v2501, %v2503
    %v2508 = vadd.s32 %v2504, 1
    %v2509 = vsel %vm2507, %v2508, %v2504
    %v2510 = vadd.s32 %v2505, %v2509
    %v2511 = vadd.s32 %v2510, 536870912
    %v2512 = vshrl.u32 %v2511, 30
    %v2513 = vshll.u32 %v2512, 30
    %v2514 = vsub.s32 %v2510, %v2513
    %vm2515 = vcmp.lt.s32.totalorder %v2514, 0
    %v2516 = vsub.s32 0, %v2514
    %v2517 = vsel %vm2515, %v2516, %v2514
    %v2518 = vclz %v2517
    %v2519 = vsub.s32 %v2518, 2
    %vm2520 = vcmp.gt.s32.totalorder 0, %v2519
    %v2521 = vsel %vm2520, 0, %v2519
    %v2522 = vsub.s32 32, %v2521
    %v2523 = vshll.u32 %v2514, %v2521
    %v2524 = vshrl.u32 %v2506, %v2522
    %v2525 = vor.u32 %v2523, %v2524
    %v2526 = vsub.s32 4294967266, %v2521
    %v2527 = vadd.s32 %v2526, 127
    %v2528 = vshll.u32 %v2527, 23
    %v2529 = vor.u32 4788187, %v2528
    %v2530 = vand.u32 2147483647, %v2529
    %v2532 = vcvt.s32.f32 %v2525
    %v2533 = vmul.f32 %v2532, %v2530
    %v2534 = vxor.u32 %v2533, 2147483648
    %v2535 = vsel %vm2452, %v2534, %v2533
    %v2536 = vsub.s32 4, %v2512
    %v2537 = vsel %vm2452, %v2536, %v2512
    %v2538 = vsel %vm2451, %v152, %v2535
    %v2539 = vsel %vm2451, 0, %v2537
    %v2540 = vcosq.f32.pop %v2538
    %v2541 = vsinq.f32.pop %v2538
    %vm2542 = vweird.f32 %v152
    %v2543 = vadd.s32 %v2539, 3
    %v2544 = vand.u32 %v2543, 3
    %vm2545 = vcmp.lt.s32.totalorder %v2544, 2
    %vm2546 = vcmp.eq.s32.totalorder %v2544, 0
    %v2547 = vxor.u32 %v2541, 2147483648
    %v2548 = vsel %vm2546, %v2540, %v2547
    %vm2549 = vcmp.eq.s32.totalorder %v2544, 2
    %v2550 = vxor.u32 %v2540, 2147483648
    %v2551 = vsel %vm2549, %v2550, %v2541
    %v2552 = vsel %vm2545, %v2548, %v2551
    %v2553 = vsel %vm2542, nan, %v2552
    %v2554 = vand.u32 2147483647, %v153
    %vm2555 = vcmp.le.f32.partialorder %v2554, 0.7853982
    %vm2556 = vcmp.lt.s32.totalorder %v153, 0
    %v2557 = vand.u32 %v153, 2139095040
    %v2558 = vshrl.u32 %v2557, 23
    %v2559 = vsub.s32 %v2558, 127
    %v2560 = vand.u32 2147483647, %v153
    %v2561 = vand.u32 %v2560, 8388607
    %v2562 = vor.u32 %v2561, 8388608
    %v2563 = vsub.s32 0, %v2562
    %v2564 = vadd.s32 %v2559, 1
    %vm2565 = vcmp.gt.s32.totalorder %v2564, 0
    %v2566 = vsel %vm2565, %v2564, 0
    %v2567 = vshrl.u32 %v2566, 5
    %v2568 = vand.u32 %v2566, 31
    %v2569 = vsub.s32 32, %v2568
    %v2570 = vshrl.u32 683565275, %v2569
    %v2571 = vshll.u32 683565275, %v2568
    %v2572 = vshrl.u32 2475754826, %v2569
    %v2573 = vor.u32 %v2571, %v2572
    %v2574 = vshll.u32 2475754826, %v2568
    %v2575 = vshrl.u32 2131351028, %v2569
    %v2576 = vor.u32 %v2574, %v2575
    %v2577 = vshll.u32 2131351028, %v2568
    %v2578 = vshrl.u32 2102212464, %v2569
    %v2579 = vor.u32 %v2577, %v2578
    %v2580 = vshll.u32 2102212464, %v2568
    %v2581 = vshrl.u32 920167782, %v2569
    %v2582 = vor.u32 %v2580, %v2581
    %v2583 = vshll.u32 920167782, %v2568
    %v2584 = vshrl.u32 1326507024, %v2569
    %v2585 = vor.u32 %v2583, %v2584
    %vm2586 = vcmp.lt.s32.totalorder %v2567, 1
    %vm2587 = vcmp.lt.s32.totalorder %v2567, 2
    %vm2588 = vcmp.lt.s32.totalorder %v2567, 3
    %vm2589 = vcmp.lt.s32.totalorder %v2567, 4
    %v2590 = vsel %vm2586, %v2570, %v2573
    %v2591 = vsel %vm2589, %v2579, 2102212464
    %v2592 = vsel %vm2588, %v2576, %v2591
    %v2593 = vsel %vm2587, %v2590, %v2592
    %v2594 = vsel %vm2586, %v2573, %v2576
    %v2595 = vsel %vm2589, %v2582, 920167782
    %v2596 = vsel %vm2588, %v2579, %v2595
    %v2597 = vsel %vm2587, %v2594, %v2596
    %v2598 = vsel %vm2586, %v2576, %v2579
    %v2599 = vsel %vm2589, %v2585, 1326507024
    %v2600 = vsel %vm2588, %v2582, %v2599
    %v2601 = vsel %vm2587, %v2598, %v2600
    %v2602 = vshll.u32 %v2562, 8
    %v2603 = vmul.u32.u64.compose %v2602, %v2601
    %v2604 = vextract.low.u32 %v2603
    %v2605 = vextract.high.u32 %v2603
    %v2606 = vmul.u32.u64.compose %v2602, %v2597
    %v2607 = vextract.low.u32 %v2606
    %v2608 = vextract.high.u32 %v2606
    %v2609 = vmul.u32 %v2602, %v2593
    %v2610 = vadd.s32 %v2605, %v2607
    %vm2611 = vc.u32 %v2605, %v2607
    %v2612 = vadd.s32 %v2608, 1
    %v2613 = vsel %vm2611, %v2612, %v2608
    %v2614 = vadd.s32 %v2609, %v2613
    %v2615 = vadd.s32 %v2614, 536870912
    %v2616 = vshrl.u32 %v2615, 30
    %v2617 = vshll.u32 %v2616, 30
    %v2618 = vsub.s32 %v2614, %v2617
    %vm2619 = vcmp.lt.s32.totalorder %v2618, 0
    %v2620 = vsub.s32 0, %v2618
    %v2621 = vsel %vm2619, %v2620, %v2618
    %v2622 = vclz %v2621
    %v2623 = vsub.s32 %v2622, 2
    %vm2624 = vcmp.gt.s32.totalorder 0, %v2623
    %v2625 = vsel %vm2624, 0, %v2623
    %v2626 = vsub.s32 32, %v2625
    %v2627 = vshll.u32 %v2618, %v2625
    %v2628 = vshrl.u32 %v2610, %v2626
    %v2629 = vor.u32 %v2627, %v2628
    %v2630 = vsub.s32 4294967266, %v2625
    %v2631 = vadd.s32 %v2630, 127
    %v2632 = vshll.u32 %v2631, 23
    %v2633 = vor.u32 4788187, %v2632
    %v2634 = vand.u32 2147483647, %v2633
    %v2636 = vcvt.s32.f32 %v2629
    %v2637 = vmul.f32 %v2636, %v2634
    %v2638 = vxor.u32 %v2637, 2147483648
    %v2639 = vsel %vm2556, %v2638, %v2637
    %v2640 = vsub.s32 4, %v2616
    %v2641 = vsel %vm2556, %v2640, %v2616
    %v2642 = vsel %vm2555, %v153, %v2639
    %v2643 = vsel %vm2555, 0, %v2641
    %v2644 = vcosq.f32.pop %v2642
    %v2645 = vsinq.f32.pop %v2642
    %vm2646 = vweird.f32 %v153
    %v2647 = vadd.s32 %v2643, 3
    %v2648 = vand.u32 %v2647, 3
    %vm2649 = vcmp.lt.s32.totalorder %v2648, 2
    %vm2650 = vcmp.eq.s32.totalorder %v2648, 0
    %v2651 = vxor.u32 %v2645, 2147483648
    %v2652 = vsel %vm2650, %v2644, %v2651
    %vm2653 = vcmp.eq.s32.totalorder %v2648, 2
    %v2654 = vxor.u32 %v2644, 2147483648
    %v2655 = vsel %vm2653, %v2654, %v2645
    %v2656 = vsel %vm2649, %v2652, %v2655
    %v2657 = vsel %vm2646, nan, %v2656
    %v2658 = vand.u32 2147483647, %v154
    %vm2659 = vcmp.le.f32.partialorder %v2658, 0.7853982
    %vm2660 = vcmp.lt.s32.totalorder %v154, 0
    %v2661 = vand.u32 %v154, 2139095040
    %v2662 = vshrl.u32 %v2661, 23
    %v2663 = vsub.s32 %v2662, 127
    %v2664 = vand.u32 2147483647, %v154
    %v2665 = vand.u32 %v2664, 8388607
    %v2666 = vor.u32 %v2665, 8388608
    %v2667 = vsub.s32 0, %v2666
    %v2668 = vadd.s32 %v2663, 1
    %vm2669 = vcmp.gt.s32.totalorder %v2668, 0
    %v2670 = vsel %vm2669, %v2668, 0
    %v2671 = vshrl.u32 %v2670, 5
    %v2672 = vand.u32 %v2670, 31
    %v2673 = vsub.s32 32, %v2672
    %v2674 = vshrl.u32 683565275, %v2673
    %v2675 = vshll.u32 683565275, %v2672
    %v2676 = vshrl.u32 2475754826, %v2673
    %v2677 = vor.u32 %v2675, %v2676
    %v2678 = vshll.u32 2475754826, %v2672
    %v2679 = vshrl.u32 2131351028, %v2673
    %v2680 = vor.u32 %v2678, %v2679
    %v2681 = vshll.u32 2131351028, %v2672
    %v2682 = vshrl.u32 2102212464, %v2673
    %v2683 = vor.u32 %v2681, %v2682
    %v2684 = vshll.u32 2102212464, %v2672
    %v2685 = vshrl.u32 920167782, %v2673
    %v2686 = vor.u32 %v2684, %v2685
    %v2687 = vshll.u32 920167782, %v2672
    %v2688 = vshrl.u32 1326507024, %v2673
    %v2689 = vor.u32 %v2687, %v2688
    %vm2690 = vcmp.lt.s32.totalorder %v2671, 1
    %vm2691 = vcmp.lt.s32.totalorder %v2671, 2
    %vm2692 = vcmp.lt.s32.totalorder %v2671, 3
    %vm2693 = vcmp.lt.s32.totalorder %v2671, 4
    %v2694 = vsel %vm2690, %v2674, %v2677
    %v2695 = vsel %vm2693, %v2683, 2102212464
    %v2696 = vsel %vm2692, %v2680, %v2695
    %v2697 = vsel %vm2691, %v2694, %v2696
    %v2698 = vsel %vm2690, %v2677, %v2680
    %v2699 = vsel %vm2693, %v2686, 920167782
    %v2700 = vsel %vm2692, %v2683, %v2699
    %v2701 = vsel %vm2691, %v2698, %v2700
    %v2702 = vsel %vm2690, %v2680, %v2683
    %v2703 = vsel %vm2693, %v2689, 1326507024
    %v2704 = vsel %vm2692, %v2686, %v2703
    %v2705 = vsel %vm2691, %v2702, %v2704
    %v2706 = vshll.u32 %v2666, 8
    %v2707 = vmul.u32.u64.compose %v2706, %v2705
    %v2708 = vextract.low.u32 %v2707
    %v2709 = vextract.high.u32 %v2707
    %v2710 = vmul.u32.u64.compose %v2706, %v2701
    %v2711 = vextract.low.u32 %v2710
    %v2712 = vextract.high.u32 %v2710
    %v2713 = vmul.u32 %v2706, %v2697
    %v2714 = vadd.s32 %v2709, %v2711
    %vm2715 = vc.u32 %v2709, %v2711
    %v2716 = vadd.s32 %v2712, 1
    %v2717 = vsel %vm2715, %v2716, %v2712
    %v2718 = vadd.s32 %v2713, %v2717
    %v2719 = vadd.s32 %v2718, 536870912
    %v2720 = vshrl.u32 %v2719, 30
    %v2721 = vshll.u32 %v2720, 30
    %v2722 = vsub.s32 %v2718, %v2721
    %vm2723 = vcmp.lt.s32.totalorder %v2722, 0
    %v2724 = vsub.s32 0, %v2722
    %v2725 = vsel %vm2723, %v2724, %v2722
    %v2726 = vclz %v2725
    %v2727 = vsub.s32 %v2726, 2
    %vm2728 = vcmp.gt.s32.totalorder 0, %v2727
    %v2729 = vsel %vm2728, 0, %v2727
    %v2730 = vsub.s32 32, %v2729
    %v2731 = vshll.u32 %v2722, %v2729
    %v2732 = vshrl.u32 %v2714, %v2730
    %v2733 = vor.u32 %v2731, %v2732
    %v2734 = vsub.s32 4294967266, %v2729
    %v2735 = vadd.s32 %v2734, 127
    %v2736 = vshll.u32 %v2735, 23
    %v2737 = vor.u32 4788187, %v2736
    %v2738 = vand.u32 2147483647, %v2737
    %v2740 = vcvt.s32.f32 %v2733
    %v2741 = vmul.f32 %v2740, %v2738
    %v2742 = vxor.u32 %v2741, 2147483648
    %v2743 = vsel %vm2660, %v2742, %v2741
    %v2744 = vsub.s32 4, %v2720
    %v2745 = vsel %vm2660, %v2744, %v2720
    %v2746 = vsel %vm2659, %v154, %v2743
    %v2747 = vsel %vm2659, 0, %v2745
    %v2748 = vcosq.f32.pop %v2746
    %v2749 = vsinq.f32.pop %v2746
    %vm2750 = vweird.f32 %v154
    %v2751 = vadd.s32 %v2747, 3
    %v2752 = vand.u32 %v2751, 3
    %vm2753 = vcmp.lt.s32.totalorder %v2752, 2
    %vm2754 = vcmp.eq.s32.totalorder %v2752, 0
    %v2755 = vxor.u32 %v2749, 2147483648
    %v2756 = vsel %vm2754, %v2748, %v2755
    %vm2757 = vcmp.eq.s32.totalorder %v2752, 2
    %v2758 = vxor.u32 %v2748, 2147483648
    %v2759 = vsel %vm2757, %v2758, %v2749
    %v2760 = vsel %vm2753, %v2756, %v2759
    %v2761 = vsel %vm2750, nan, %v2760
    %v2762 = vand.u32 2147483647, %v155
    %vm2763 = vcmp.le.f32.partialorder %v2762, 0.7853982
    %vm2764 = vcmp.lt.s32.totalorder %v155, 0
    %v2765 = vand.u32 %v155, 2139095040
    %v2766 = vshrl.u32 %v2765, 23
    %v2767 = vsub.s32 %v2766, 127
    %v2768 = vand.u32 2147483647, %v155
    %v2769 = vand.u32 %v2768, 8388607
    %v2770 = vor.u32 %v2769, 8388608
    %v2771 = vsub.s32 0, %v2770
    %v2772 = vadd.s32 %v2767, 1
    %vm2773 = vcmp.gt.s32.totalorder %v2772, 0
    %v2774 = vsel %vm2773, %v2772, 0
    %v2775 = vshrl.u32 %v2774, 5
    %v2776 = vand.u32 %v2774, 31
    %v2777 = vsub.s32 32, %v2776
    %v2778 = vshrl.u32 683565275, %v2777
    %v2779 = vshll.u32 683565275, %v2776
    %v2780 = vshrl.u32 2475754826, %v2777
    %v2781 = vor.u32 %v2779, %v2780
    %v2782 = vshll.u32 2475754826, %v2776
    %v2783 = vshrl.u32 2131351028, %v2777
    %v2784 = vor.u32 %v2782, %v2783
    %v2785 = vshll.u32 2131351028, %v2776
    %v2786 = vshrl.u32 2102212464, %v2777
    %v2787 = vor.u32 %v2785, %v2786
    %v2788 = vshll.u32 2102212464, %v2776
    %v2789 = vshrl.u32 920167782, %v2777
    %v2790 = vor.u32 %v2788, %v2789
    %v2791 = vshll.u32 920167782, %v2776
    %v2792 = vshrl.u32 1326507024, %v2777
    %v2793 = vor.u32 %v2791, %v2792
    %vm2794 = vcmp.lt.s32.totalorder %v2775, 1
    %vm2795 = vcmp.lt.s32.totalorder %v2775, 2
    %vm2796 = vcmp.lt.s32.totalorder %v2775, 3
    %vm2797 = vcmp.lt.s32.totalorder %v2775, 4
    %v2798 = vsel %vm2794, %v2778, %v2781
    %v2799 = vsel %vm2797, %v2787, 2102212464
    %v2800 = vsel %vm2796, %v2784, %v2799
    %v2801 = vsel %vm2795, %v2798, %v2800
    %v2802 = vsel %vm2794, %v2781, %v2784
    %v2803 = vsel %vm2797, %v2790, 920167782
    %v2804 = vsel %vm2796, %v2787, %v2803
    %v2805 = vsel %vm2795, %v2802, %v2804
    %v2806 = vsel %vm2794, %v2784, %v2787
    %v2807 = vsel %vm2797, %v2793, 1326507024
    %v2808 = vsel %vm2796, %v2790, %v2807
    %v2809 = vsel %vm2795, %v2806, %v2808
    %v2810 = vshll.u32 %v2770, 8
    %v2811 = vmul.u32.u64.compose %v2810, %v2809
    %v2812 = vextract.low.u32 %v2811
    %v2813 = vextract.high.u32 %v2811
    %v2814 = vmul.u32.u64.compose %v2810, %v2805
    %v2815 = vextract.low.u32 %v2814
    %v2816 = vextract.high.u32 %v2814
    %v2817 = vmul.u32 %v2810, %v2801
    %v2818 = vadd.s32 %v2813, %v2815
    %vm2819 = vc.u32 %v2813, %v2815
    %v2820 = vadd.s32 %v2816, 1
    %v2821 = vsel %vm2819, %v2820, %v2816
    %v2822 = vadd.s32 %v2817, %v2821
    %v2823 = vadd.s32 %v2822, 536870912
    %v2824 = vshrl.u32 %v2823, 30
    %v2825 = vshll.u32 %v2824, 30
    %v2826 = vsub.s32 %v2822, %v2825
    %vm2827 = vcmp.lt.s32.totalorder %v2826, 0
    %v2828 = vsub.s32 0, %v2826
    %v2829 = vsel %vm2827, %v2828, %v2826
    %v2830 = vclz %v2829
    %v2831 = vsub.s32 %v2830, 2
    %vm2832 = vcmp.gt.s32.totalorder 0, %v2831
    %v2833 = vsel %vm2832, 0, %v2831
    %v2834 = vsub.s32 32, %v2833
    %v2835 = vshll.u32 %v2826, %v2833
    %v2836 = vshrl.u32 %v2818, %v2834
    %v2837 = vor.u32 %v2835, %v2836
    %v2838 = vsub.s32 4294967266, %v2833
    %v2839 = vadd.s32 %v2838, 127
    %v2840 = vshll.u32 %v2839, 23
    %v2841 = vor.u32 4788187, %v2840
    %v2842 = vand.u32 2147483647, %v2841
    %v2844 = vcvt.s32.f32 %v2837
    %v2845 = vmul.f32 %v2844, %v2842
    %v2846 = vxor.u32 %v2845, 2147483648
    %v2847 = vsel %vm2764, %v2846, %v2845
    %v2848 = vsub.s32 4, %v2824
    %v2849 = vsel %vm2764, %v2848, %v2824
    %v2850 = vsel %vm2763, %v155, %v2847
    %v2851 = vsel %vm2763, 0, %v2849
    %v2852 = vcosq.f32.pop %v2850
    %v2853 = vsinq.f32.pop %v2850
    %vm2854 = vweird.f32 %v155
    %v2855 = vadd.s32 %v2851, 3
    %v2856 = vand.u32 %v2855, 3
    %vm2857 = vcmp.lt.s32.totalorder %v2856, 2
    %vm2858 = vcmp.eq.s32.totalorder %v2856, 0
    %v2859 = vxor.u32 %v2853, 2147483648
    %v2860 = vsel %vm2858, %v2852, %v2859
    %vm2861 = vcmp.eq.s32.totalorder %v2856, 2
    %v2862 = vxor.u32 %v2852, 2147483648
    %v2863 = vsel %vm2861, %v2862, %v2853
    %v2864 = vsel %vm2857, %v2860, %v2863
    %v2865 = vsel %vm2854, nan, %v2864
    %v2866 = vand.u32 2147483647, %v156
    %vm2867 = vcmp.le.f32.partialorder %v2866, 0.7853982
    %vm2868 = vcmp.lt.s32.totalorder %v156, 0
    %v2869 = vand.u32 %v156, 2139095040
    %v2870 = vshrl.u32 %v2869, 23
    %v2871 = vsub.s32 %v2870, 127
    %v2872 = vand.u32 2147483647, %v156
    %v2873 = vand.u32 %v2872, 8388607
    %v2874 = vor.u32 %v2873, 8388608
    %v2875 = vsub.s32 0, %v2874
    %v2876 = vadd.s32 %v2871, 1
    %vm2877 = vcmp.gt.s32.totalorder %v2876, 0
    %v2878 = vsel %vm2877, %v2876, 0
    %v2879 = vshrl.u32 %v2878, 5
    %v2880 = vand.u32 %v2878, 31
    %v2881 = vsub.s32 32, %v2880
    %v2882 = vshrl.u32 683565275, %v2881
    %v2883 = vshll.u32 683565275, %v2880
    %v2884 = vshrl.u32 2475754826, %v2881
    %v2885 = vor.u32 %v2883, %v2884
    %v2886 = vshll.u32 2475754826, %v2880
    %v2887 = vshrl.u32 2131351028, %v2881
    %v2888 = vor.u32 %v2886, %v2887
    %v2889 = vshll.u32 2131351028, %v2880
    %v2890 = vshrl.u32 2102212464, %v2881
    %v2891 = vor.u32 %v2889, %v2890
    %v2892 = vshll.u32 2102212464, %v2880
    %v2893 = vshrl.u32 920167782, %v2881
    %v2894 = vor.u32 %v2892, %v2893
    %v2895 = vshll.u32 920167782, %v2880
    %v2896 = vshrl.u32 1326507024, %v2881
    %v2897 = vor.u32 %v2895, %v2896
    %vm2898 = vcmp.lt.s32.totalorder %v2879, 1
    %vm2899 = vcmp.lt.s32.totalorder %v2879, 2
    %vm2900 = vcmp.lt.s32.totalorder %v2879, 3
    %vm2901 = vcmp.lt.s32.totalorder %v2879, 4
    %v2902 = vsel %vm2898, %v2882, %v2885
    %v2903 = vsel %vm2901, %v2891, 2102212464
    %v2904 = vsel %vm2900, %v2888, %v2903
    %v2905 = vsel %vm2899, %v2902, %v2904
    %v2906 = vsel %vm2898, %v2885, %v2888
    %v2907 = vsel %vm2901, %v2894, 920167782
    %v2908 = vsel %vm2900, %v2891, %v2907
    %v2909 = vsel %vm2899, %v2906, %v2908
    %v2910 = vsel %vm2898, %v2888, %v2891
    %v2911 = vsel %vm2901, %v2897, 1326507024
    %v2912 = vsel %vm2900, %v2894, %v2911
    %v2913 = vsel %vm2899, %v2910, %v2912
    %v2914 = vshll.u32 %v2874, 8
    %v2915 = vmul.u32.u64.compose %v2914, %v2913
    %v2916 = vextract.low.u32 %v2915
    %v2917 = vextract.high.u32 %v2915
    %v2918 = vmul.u32.u64.compose %v2914, %v2909
    %v2919 = vextract.low.u32 %v2918
    %v2920 = vextract.high.u32 %v2918
    %v2921 = vmul.u32 %v2914, %v2905
    %v2922 = vadd.s32 %v2917, %v2919
    %vm2923 = vc.u32 %v2917, %v2919
    %v2924 = vadd.s32 %v2920, 1
    %v2925 = vsel %vm2923, %v2924, %v2920
    %v2926 = vadd.s32 %v2921, %v2925
    %v2927 = vadd.s32 %v2926, 536870912
    %v2928 = vshrl.u32 %v2927, 30
    %v2929 = vshll.u32 %v2928, 30
    %v2930 = vsub.s32 %v2926, %v2929
    %vm2931 = vcmp.lt.s32.totalorder %v2930, 0
    %v2932 = vsub.s32 0, %v2930
    %v2933 = vsel %vm2931, %v2932, %v2930
    %v2934 = vclz %v2933
    %v2935 = vsub.s32 %v2934, 2
    %vm2936 = vcmp.gt.s32.totalorder 0, %v2935
    %v2937 = vsel %vm2936, 0, %v2935
    %v2938 = vsub.s32 32, %v2937
    %v2939 = vshll.u32 %v2930, %v2937
    %v2940 = vshrl.u32 %v2922, %v2938
    %v2941 = vor.u32 %v2939, %v2940
    %v2942 = vsub.s32 4294967266, %v2937
    %v2943 = vadd.s32 %v2942, 127
    %v2944 = vshll.u32 %v2943, 23
    %v2945 = vor.u32 4788187, %v2944
    %v2946 = vand.u32 2147483647, %v2945
    %v2948 = vcvt.s32.f32 %v2941
    %v2949 = vmul.f32 %v2948, %v2946
    %v2950 = vxor.u32 %v2949, 2147483648
    %v2951 = vsel %vm2868, %v2950, %v2949
    %v2952 = vsub.s32 4, %v2928
    %v2953 = vsel %vm2868, %v2952, %v2928
    %v2954 = vsel %vm2867, %v156, %v2951
    %v2955 = vsel %vm2867, 0, %v2953
    %v2956 = vcosq.f32.pop %v2954
    %v2957 = vsinq.f32.pop %v2954
    %vm2958 = vweird.f32 %v156
    %v2959 = vadd.s32 %v2955, 3
    %v2960 = vand.u32 %v2959, 3
    %vm2961 = vcmp.lt.s32.totalorder %v2960, 2
    %vm2962 = vcmp.eq.s32.totalorder %v2960, 0
    %v2963 = vxor.u32 %v2957, 2147483648
    %v2964 = vsel %vm2962, %v2956, %v2963
    %vm2965 = vcmp.eq.s32.totalorder %v2960, 2
    %v2966 = vxor.u32 %v2956, 2147483648
    %v2967 = vsel %vm2965, %v2966, %v2957
    %v2968 = vsel %vm2961, %v2964, %v2967
    %v2969 = vsel %vm2958, nan, %v2968
    %v2970 = vand.u32 2147483647, %v157
    %vm2971 = vcmp.le.f32.partialorder %v2970, 0.7853982
    %vm2972 = vcmp.lt.s32.totalorder %v157, 0
    %v2973 = vand.u32 %v157, 2139095040
    %v2974 = vshrl.u32 %v2973, 23
    %v2975 = vsub.s32 %v2974, 127
    %v2976 = vand.u32 2147483647, %v157
    %v2977 = vand.u32 %v2976, 8388607
    %v2978 = vor.u32 %v2977, 8388608
    %v2979 = vsub.s32 0, %v2978
    %v2980 = vadd.s32 %v2975, 1
    %vm2981 = vcmp.gt.s32.totalorder %v2980, 0
    %v2982 = vsel %vm2981, %v2980, 0
    %v2983 = vshrl.u32 %v2982, 5
    %v2984 = vand.u32 %v2982, 31
    %v2985 = vsub.s32 32, %v2984
    %v2986 = vshrl.u32 683565275, %v2985
    %v2987 = vshll.u32 683565275, %v2984
    %v2988 = vshrl.u32 2475754826, %v2985
    %v2989 = vor.u32 %v2987, %v2988
    %v2990 = vshll.u32 2475754826, %v2984
    %v2991 = vshrl.u32 2131351028, %v2985
    %v2992 = vor.u32 %v2990, %v2991
    %v2993 = vshll.u32 2131351028, %v2984
    %v2994 = vshrl.u32 2102212464, %v2985
    %v2995 = vor.u32 %v2993, %v2994
    %v2996 = vshll.u32 2102212464, %v2984
    %v2997 = vshrl.u32 920167782, %v2985
    %v2998 = vor.u32 %v2996, %v2997
    %v2999 = vshll.u32 920167782, %v2984
    %v3000 = vshrl.u32 1326507024, %v2985
    %v3001 = vor.u32 %v2999, %v3000
    %vm3002 = vcmp.lt.s32.totalorder %v2983, 1
    %vm3003 = vcmp.lt.s32.totalorder %v2983, 2
    %vm3004 = vcmp.lt.s32.totalorder %v2983, 3
    %vm3005 = vcmp.lt.s32.totalorder %v2983, 4
    %v3006 = vsel %vm3002, %v2986, %v2989
    %v3007 = vsel %vm3005, %v2995, 2102212464
    %v3008 = vsel %vm3004, %v2992, %v3007
    %v3009 = vsel %vm3003, %v3006, %v3008
    %v3010 = vsel %vm3002, %v2989, %v2992
    %v3011 = vsel %vm3005, %v2998, 920167782
    %v3012 = vsel %vm3004, %v2995, %v3011
    %v3013 = vsel %vm3003, %v3010, %v3012
    %v3014 = vsel %vm3002, %v2992, %v2995
    %v3015 = vsel %vm3005, %v3001, 1326507024
    %v3016 = vsel %vm3004, %v2998, %v3015
    %v3017 = vsel %vm3003, %v3014, %v3016
    %v3018 = vshll.u32 %v2978, 8
    %v3019 = vmul.u32.u64.compose %v3018, %v3017
    %v3020 = vextract.low.u32 %v3019
    %v3021 = vextract.high.u32 %v3019
    %v3022 = vmul.u32.u64.compose %v3018, %v3013
    %v3023 = vextract.low.u32 %v3022
    %v3024 = vextract.high.u32 %v3022
    %v3025 = vmul.u32 %v3018, %v3009
    %v3026 = vadd.s32 %v3021, %v3023
    %vm3027 = vc.u32 %v3021, %v3023
    %v3028 = vadd.s32 %v3024, 1
    %v3029 = vsel %vm3027, %v3028, %v3024
    %v3030 = vadd.s32 %v3025, %v3029
    %v3031 = vadd.s32 %v3030, 536870912
    %v3032 = vshrl.u32 %v3031, 30
    %v3033 = vshll.u32 %v3032, 30
    %v3034 = vsub.s32 %v3030, %v3033
    %vm3035 = vcmp.lt.s32.totalorder %v3034, 0
    %v3036 = vsub.s32 0, %v3034
    %v3037 = vsel %vm3035, %v3036, %v3034
    %v3038 = vclz %v3037
    %v3039 = vsub.s32 %v3038, 2
    %vm3040 = vcmp.gt.s32.totalorder 0, %v3039
    %v3041 = vsel %vm3040, 0, %v3039
    %v3042 = vsub.s32 32, %v3041
    %v3043 = vshll.u32 %v3034, %v3041
    %v3044 = vshrl.u32 %v3026, %v3042
    %v3045 = vor.u32 %v3043, %v3044
    %v3046 = vsub.s32 4294967266, %v3041
    %v3047 = vadd.s32 %v3046, 127
    %v3048 = vshll.u32 %v3047, 23
    %v3049 = vor.u32 4788187, %v3048
    %v3050 = vand.u32 2147483647, %v3049
    %v3052 = vcvt.s32.f32 %v3045
    %v3053 = vmul.f32 %v3052, %v3050
    %v3054 = vxor.u32 %v3053, 2147483648
    %v3055 = vsel %vm2972, %v3054, %v3053
    %v3056 = vsub.s32 4, %v3032
    %v3057 = vsel %vm2972, %v3056, %v3032
    %v3058 = vsel %vm2971, %v157, %v3055
    %v3059 = vsel %vm2971, 0, %v3057
    %v3060 = vcosq.f32.pop %v3058
    %v3061 = vsinq.f32.pop %v3058
    %vm3062 = vweird.f32 %v157
    %v3063 = vadd.s32 %v3059, 3
    %v3064 = vand.u32 %v3063, 3
    %vm3065 = vcmp.lt.s32.totalorder %v3064, 2
    %vm3066 = vcmp.eq.s32.totalorder %v3064, 0
    %v3067 = vxor.u32 %v3061, 2147483648
    %v3068 = vsel %vm3066, %v3060, %v3067
    %vm3069 = vcmp.eq.s32.totalorder %v3064, 2
    %v3070 = vxor.u32 %v3060, 2147483648
    %v3071 = vsel %vm3069, %v3070, %v3061
    %v3072 = vsel %vm3065, %v3068, %v3071
    %v3073 = vsel %vm3062, nan, %v3072
    %v3074 = vand.u32 2147483647, %v158
    %vm3075 = vcmp.le.f32.partialorder %v3074, 0.7853982
    %vm3076 = vcmp.lt.s32.totalorder %v158, 0
    %v3077 = vand.u32 %v158, 2139095040
    %v3078 = vshrl.u32 %v3077, 23
    %v3079 = vsub.s32 %v3078, 127
    %v3080 = vand.u32 2147483647, %v158
    %v3081 = vand.u32 %v3080, 8388607
    %v3082 = vor.u32 %v3081, 8388608
    %v3083 = vsub.s32 0, %v3082
    %v3084 = vadd.s32 %v3079, 1
    %vm3085 = vcmp.gt.s32.totalorder %v3084, 0
    %v3086 = vsel %vm3085, %v3084, 0
    %v3087 = vshrl.u32 %v3086, 5
    %v3088 = vand.u32 %v3086, 31
    %v3089 = vsub.s32 32, %v3088
    %v3090 = vshrl.u32 683565275, %v3089
    %v3091 = vshll.u32 683565275, %v3088
    %v3092 = vshrl.u32 2475754826, %v3089
    %v3093 = vor.u32 %v3091, %v3092
    %v3094 = vshll.u32 2475754826, %v3088
    %v3095 = vshrl.u32 2131351028, %v3089
    %v3096 = vor.u32 %v3094, %v3095
    %v3097 = vshll.u32 2131351028, %v3088
    %v3098 = vshrl.u32 2102212464, %v3089
    %v3099 = vor.u32 %v3097, %v3098
    %v3100 = vshll.u32 2102212464, %v3088
    %v3101 = vshrl.u32 920167782, %v3089
    %v3102 = vor.u32 %v3100, %v3101
    %v3103 = vshll.u32 920167782, %v3088
    %v3104 = vshrl.u32 1326507024, %v3089
    %v3105 = vor.u32 %v3103, %v3104
    %vm3106 = vcmp.lt.s32.totalorder %v3087, 1
    %vm3107 = vcmp.lt.s32.totalorder %v3087, 2
    %vm3108 = vcmp.lt.s32.totalorder %v3087, 3
    %vm3109 = vcmp.lt.s32.totalorder %v3087, 4
    %v3110 = vsel %vm3106, %v3090, %v3093
    %v3111 = vsel %vm3109, %v3099, 2102212464
    %v3112 = vsel %vm3108, %v3096, %v3111
    %v3113 = vsel %vm3107, %v3110, %v3112
    %v3114 = vsel %vm3106, %v3093, %v3096
    %v3115 = vsel %vm3109, %v3102, 920167782
    %v3116 = vsel %vm3108, %v3099, %v3115
    %v3117 = vsel %vm3107, %v3114, %v3116
    %v3118 = vsel %vm3106, %v3096, %v3099
    %v3119 = vsel %vm3109, %v3105, 1326507024
    %v3120 = vsel %vm3108, %v3102, %v3119
    %v3121 = vsel %vm3107, %v3118, %v3120
    %v3122 = vshll.u32 %v3082, 8
    %v3123 = vmul.u32.u64.compose %v3122, %v3121
    %v3124 = vextract.low.u32 %v3123
    %v3125 = vextract.high.u32 %v3123
    %v3126 = vmul.u32.u64.compose %v3122, %v3117
    %v3127 = vextract.low.u32 %v3126
    %v3128 = vextract.high.u32 %v3126
    %v3129 = vmul.u32 %v3122, %v3113
    %v3130 = vadd.s32 %v3125, %v3127
    %vm3131 = vc.u32 %v3125, %v3127
    %v3132 = vadd.s32 %v3128, 1
    %v3133 = vsel %vm3131, %v3132, %v3128
    %v3134 = vadd.s32 %v3129, %v3133
    %v3135 = vadd.s32 %v3134, 536870912
    %v3136 = vshrl.u32 %v3135, 30
    %v3137 = vshll.u32 %v3136, 30
    %v3138 = vsub.s32 %v3134, %v3137
    %vm3139 = vcmp.lt.s32.totalorder %v3138, 0
    %v3140 = vsub.s32 0, %v3138
    %v3141 = vsel %vm3139, %v3140, %v3138
    %v3142 = vclz %v3141
    %v3143 = vsub.s32 %v3142, 2
    %vm3144 = vcmp.gt.s32.totalorder 0, %v3143
    %v3145 = vsel %vm3144, 0, %v3143
    %v3146 = vsub.s32 32, %v3145
    %v3147 = vshll.u32 %v3138, %v3145
    %v3148 = vshrl.u32 %v3130, %v3146
    %v3149 = vor.u32 %v3147, %v3148
    %v3150 = vsub.s32 4294967266, %v3145
    %v3151 = vadd.s32 %v3150, 127
    %v3152 = vshll.u32 %v3151, 23
    %v3153 = vor.u32 4788187, %v3152
    %v3154 = vand.u32 2147483647, %v3153
    %v3156 = vcvt.s32.f32 %v3149
    %v3157 = vmul.f32 %v3156, %v3154
    %v3158 = vxor.u32 %v3157, 2147483648
    %v3159 = vsel %vm3076, %v3158, %v3157
    %v3160 = vsub.s32 4, %v3136
    %v3161 = vsel %vm3076, %v3160, %v3136
    %v3162 = vsel %vm3075, %v158, %v3159
    %v3163 = vsel %vm3075, 0, %v3161
    %v3164 = vcosq.f32.pop %v3162
    %v3165 = vsinq.f32.pop %v3162
    %vm3166 = vweird.f32 %v158
    %v3167 = vadd.s32 %v3163, 3
    %v3168 = vand.u32 %v3167, 3
    %vm3169 = vcmp.lt.s32.totalorder %v3168, 2
    %vm3170 = vcmp.eq.s32.totalorder %v3168, 0
    %v3171 = vxor.u32 %v3165, 2147483648
    %v3172 = vsel %vm3170, %v3164, %v3171
    %vm3173 = vcmp.eq.s32.totalorder %v3168, 2
    %v3174 = vxor.u32 %v3164, 2147483648
    %v3175 = vsel %vm3173, %v3174, %v3165
    %v3176 = vsel %vm3169, %v3172, %v3175
    %v3177 = vsel %vm3166, nan, %v3176
    %v3178 = vand.u32 2147483647, %v159
    %vm3179 = vcmp.le.f32.partialorder %v3178, 0.7853982
    %vm3180 = vcmp.lt.s32.totalorder %v159, 0
    %v3181 = vand.u32 %v159, 2139095040
    %v3182 = vshrl.u32 %v3181, 23
    %v3183 = vsub.s32 %v3182, 127
    %v3184 = vand.u32 2147483647, %v159
    %v3185 = vand.u32 %v3184, 8388607
    %v3186 = vor.u32 %v3185, 8388608
    %v3187 = vsub.s32 0, %v3186
    %v3188 = vadd.s32 %v3183, 1
    %vm3189 = vcmp.gt.s32.totalorder %v3188, 0
    %v3190 = vsel %vm3189, %v3188, 0
    %v3191 = vshrl.u32 %v3190, 5
    %v3192 = vand.u32 %v3190, 31
    %v3193 = vsub.s32 32, %v3192
    %v3194 = vshrl.u32 683565275, %v3193
    %v3195 = vshll.u32 683565275, %v3192
    %v3196 = vshrl.u32 2475754826, %v3193
    %v3197 = vor.u32 %v3195, %v3196
    %v3198 = vshll.u32 2475754826, %v3192
    %v3199 = vshrl.u32 2131351028, %v3193
    %v3200 = vor.u32 %v3198, %v3199
    %v3201 = vshll.u32 2131351028, %v3192
    %v3202 = vshrl.u32 2102212464, %v3193
    %v3203 = vor.u32 %v3201, %v3202
    %v3204 = vshll.u32 2102212464, %v3192
    %v3205 = vshrl.u32 920167782, %v3193
    %v3206 = vor.u32 %v3204, %v3205
    %v3207 = vshll.u32 920167782, %v3192
    %v3208 = vshrl.u32 1326507024, %v3193
    %v3209 = vor.u32 %v3207, %v3208
    %vm3210 = vcmp.lt.s32.totalorder %v3191, 1
    %vm3211 = vcmp.lt.s32.totalorder %v3191, 2
    %vm3212 = vcmp.lt.s32.totalorder %v3191, 3
    %vm3213 = vcmp.lt.s32.totalorder %v3191, 4
    %v3214 = vsel %vm3210, %v3194, %v3197
    %v3215 = vsel %vm3213, %v3203, 2102212464
    %v3216 = vsel %vm3212, %v3200, %v3215
    %v3217 = vsel %vm3211, %v3214, %v3216
    %v3218 = vsel %vm3210, %v3197, %v3200
    %v3219 = vsel %vm3213, %v3206, 920167782
    %v3220 = vsel %vm3212, %v3203, %v3219
    %v3221 = vsel %vm3211, %v3218, %v3220
    %v3222 = vsel %vm3210, %v3200, %v3203
    %v3223 = vsel %vm3213, %v3209, 1326507024
    %v3224 = vsel %vm3212, %v3206, %v3223
    %v3225 = vsel %vm3211, %v3222, %v3224
    %v3226 = vshll.u32 %v3186, 8
    %v3227 = vmul.u32.u64.compose %v3226, %v3225
    %v3228 = vextract.low.u32 %v3227
    %v3229 = vextract.high.u32 %v3227
    %v3230 = vmul.u32.u64.compose %v3226, %v3221
    %v3231 = vextract.low.u32 %v3230
    %v3232 = vextract.high.u32 %v3230
    %v3233 = vmul.u32 %v3226, %v3217
    %v3234 = vadd.s32 %v3229, %v3231
    %vm3235 = vc.u32 %v3229, %v3231
    %v3236 = vadd.s32 %v3232, 1
    %v3237 = vsel %vm3235, %v3236, %v3232
    %v3238 = vadd.s32 %v3233, %v3237
    %v3239 = vadd.s32 %v3238, 536870912
    %v3240 = vshrl.u32 %v3239, 30
    %v3241 = vshll.u32 %v3240, 30
    %v3242 = vsub.s32 %v3238, %v3241
    %vm3243 = vcmp.lt.s32.totalorder %v3242, 0
    %v3244 = vsub.s32 0, %v3242
    %v3245 = vsel %vm3243, %v3244, %v3242
    %v3246 = vclz %v3245
    %v3247 = vsub.s32 %v3246, 2
    %vm3248 = vcmp.gt.s32.totalorder 0, %v3247
    %v3249 = vsel %vm3248, 0, %v3247
    %v3250 = vsub.s32 32, %v3249
    %v3251 = vshll.u32 %v3242, %v3249
    %v3252 = vshrl.u32 %v3234, %v3250
    %v3253 = vor.u32 %v3251, %v3252
    %v3254 = vsub.s32 4294967266, %v3249
    %v3255 = vadd.s32 %v3254, 127
    %v3256 = vshll.u32 %v3255, 23
    %v3257 = vor.u32 4788187, %v3256
    %v3258 = vand.u32 2147483647, %v3257
    %v3260 = vcvt.s32.f32 %v3253
    %v3261 = vmul.f32 %v3260, %v3258
    %v3262 = vxor.u32 %v3261, 2147483648
    %v3263 = vsel %vm3180, %v3262, %v3261
    %v3264 = vsub.s32 4, %v3240
    %v3265 = vsel %vm3180, %v3264, %v3240
    %v3266 = vsel %vm3179, %v159, %v3263
    %v3267 = vsel %vm3179, 0, %v3265
    %v3268 = vcosq.f32.pop %v3266
    %v3269 = vsinq.f32.pop %v3266
    %vm3270 = vweird.f32 %v159
    %v3271 = vadd.s32 %v3267, 3
    %v3272 = vand.u32 %v3271, 3
    %vm3273 = vcmp.lt.s32.totalorder %v3272, 2
    %vm3274 = vcmp.eq.s32.totalorder %v3272, 0
    %v3275 = vxor.u32 %v3269, 2147483648
    %v3276 = vsel %vm3274, %v3268, %v3275
    %vm3277 = vcmp.eq.s32.totalorder %v3272, 2
    %v3278 = vxor.u32 %v3268, 2147483648
    %v3279 = vsel %vm3277, %v3278, %v3269
    %v3280 = vsel %vm3273, %v3276, %v3279
    %v3281 = vsel %vm3270, nan, %v3280
    %v3282 = vand.u32 2147483647, %v160
    %vm3283 = vcmp.le.f32.partialorder %v3282, 0.7853982
    %vm3284 = vcmp.lt.s32.totalorder %v160, 0
    %v3285 = vand.u32 %v160, 2139095040
    %v3286 = vshrl.u32 %v3285, 23
    %v3287 = vsub.s32 %v3286, 127
    %v3288 = vand.u32 2147483647, %v160
    %v3289 = vand.u32 %v3288, 8388607
    %v3290 = vor.u32 %v3289, 8388608
    %v3291 = vsub.s32 0, %v3290
    %v3292 = vadd.s32 %v3287, 1
    %vm3293 = vcmp.gt.s32.totalorder %v3292, 0
    %v3294 = vsel %vm3293, %v3292, 0
    %v3295 = vshrl.u32 %v3294, 5
    %v3296 = vand.u32 %v3294, 31
    %v3297 = vsub.s32 32, %v3296
    %v3298 = vshrl.u32 683565275, %v3297
    %v3299 = vshll.u32 683565275, %v3296
    %v3300 = vshrl.u32 2475754826, %v3297
    %v3301 = vor.u32 %v3299, %v3300
    %v3302 = vshll.u32 2475754826, %v3296
    %v3303 = vshrl.u32 2131351028, %v3297
    %v3304 = vor.u32 %v3302, %v3303
    %v3305 = vshll.u32 2131351028, %v3296
    %v3306 = vshrl.u32 2102212464, %v3297
    %v3307 = vor.u32 %v3305, %v3306
    %v3308 = vshll.u32 2102212464, %v3296
    %v3309 = vshrl.u32 920167782, %v3297
    %v3310 = vor.u32 %v3308, %v3309
    %v3311 = vshll.u32 920167782, %v3296
    %v3312 = vshrl.u32 1326507024, %v3297
    %v3313 = vor.u32 %v3311, %v3312
    %vm3314 = vcmp.lt.s32.totalorder %v3295, 1
    %vm3315 = vcmp.lt.s32.totalorder %v3295, 2
    %vm3316 = vcmp.lt.s32.totalorder %v3295, 3
    %vm3317 = vcmp.lt.s32.totalorder %v3295, 4
    %v3318 = vsel %vm3314, %v3298, %v3301
    %v3319 = vsel %vm3317, %v3307, 2102212464
    %v3320 = vsel %vm3316, %v3304, %v3319
    %v3321 = vsel %vm3315, %v3318, %v3320
    %v3322 = vsel %vm3314, %v3301, %v3304
    %v3323 = vsel %vm3317, %v3310, 920167782
    %v3324 = vsel %vm3316, %v3307, %v3323
    %v3325 = vsel %vm3315, %v3322, %v3324
    %v3326 = vsel %vm3314, %v3304, %v3307
    %v3327 = vsel %vm3317, %v3313, 1326507024
    %v3328 = vsel %vm3316, %v3310, %v3327
    %v3329 = vsel %vm3315, %v3326, %v3328
    %v3330 = vshll.u32 %v3290, 8
    %v3331 = vmul.u32.u64.compose %v3330, %v3329
    %v3332 = vextract.low.u32 %v3331
    %v3333 = vextract.high.u32 %v3331
    %v3334 = vmul.u32.u64.compose %v3330, %v3325
    %v3335 = vextract.low.u32 %v3334
    %v3336 = vextract.high.u32 %v3334
    %v3337 = vmul.u32 %v3330, %v3321
    %v3338 = vadd.s32 %v3333, %v3335
    %vm3339 = vc.u32 %v3333, %v3335
    %v3340 = vadd.s32 %v3336, 1
    %v3341 = vsel %vm3339, %v3340, %v3336
    %v3342 = vadd.s32 %v3337, %v3341
    %v3343 = vadd.s32 %v3342, 536870912
    %v3344 = vshrl.u32 %v3343, 30
    %v3345 = vshll.u32 %v3344, 30
    %v3346 = vsub.s32 %v3342, %v3345
    %vm3347 = vcmp.lt.s32.totalorder %v3346, 0
    %v3348 = vsub.s32 0, %v3346
    %v3349 = vsel %vm3347, %v3348, %v3346
    %v3350 = vclz %v3349
    %v3351 = vsub.s32 %v3350, 2
    %vm3352 = vcmp.gt.s32.totalorder 0, %v3351
    %v3353 = vsel %vm3352, 0, %v3351
    %v3354 = vsub.s32 32, %v3353
    %v3355 = vshll.u32 %v3346, %v3353
    %v3356 = vshrl.u32 %v3338, %v3354
    %v3357 = vor.u32 %v3355, %v3356
    %v3358 = vsub.s32 4294967266, %v3353
    %v3359 = vadd.s32 %v3358, 127
    %v3360 = vshll.u32 %v3359, 23
    %v3361 = vor.u32 4788187, %v3360
    %v3362 = vand.u32 2147483647, %v3361
    %v3364 = vcvt.s32.f32 %v3357
    %v3365 = vmul.f32 %v3364, %v3362
    %v3366 = vxor.u32 %v3365, 2147483648
    %v3367 = vsel %vm3284, %v3366, %v3365
    %v3368 = vsub.s32 4, %v3344
    %v3369 = vsel %vm3284, %v3368, %v3344
    %v3370 = vsel %vm3283, %v160, %v3367
    %v3371 = vsel %vm3283, 0, %v3369
    %v3372 = vcosq.f32.pop %v3370
    %v3373 = vsinq.f32.pop %v3370
    %vm3374 = vweird.f32 %v160
    %v3375 = vadd.s32 %v3371, 3
    %v3376 = vand.u32 %v3375, 3
    %vm3377 = vcmp.lt.s32.totalorder %v3376, 2
    %vm3378 = vcmp.eq.s32.totalorder %v3376, 0
    %v3379 = vxor.u32 %v3373, 2147483648
    %v3380 = vsel %vm3378, %v3372, %v3379
    %vm3381 = vcmp.eq.s32.totalorder %v3376, 2
    %v3382 = vxor.u32 %v3372, 2147483648
    %v3383 = vsel %vm3381, %v3382, %v3373
    %v3384 = vsel %vm3377, %v3380, %v3383
    %v3385 = vsel %vm3374, nan, %v3384
    %v3386 = vand.u32 2147483647, %v161
    %vm3387 = vcmp.le.f32.partialorder %v3386, 0.7853982
    %vm3388 = vcmp.lt.s32.totalorder %v161, 0
    %v3389 = vand.u32 %v161, 2139095040
    %v3390 = vshrl.u32 %v3389, 23
    %v3391 = vsub.s32 %v3390, 127
    %v3392 = vand.u32 2147483647, %v161
    %v3393 = vand.u32 %v3392, 8388607
    %v3394 = vor.u32 %v3393, 8388608
    %v3395 = vsub.s32 0, %v3394
    %v3396 = vadd.s32 %v3391, 1
    %vm3397 = vcmp.gt.s32.totalorder %v3396, 0
    %v3398 = vsel %vm3397, %v3396, 0
    %v3399 = vshrl.u32 %v3398, 5
    %v3400 = vand.u32 %v3398, 31
    %v3401 = vsub.s32 32, %v3400
    %v3402 = vshrl.u32 683565275, %v3401
    %v3403 = vshll.u32 683565275, %v3400
    %v3404 = vshrl.u32 2475754826, %v3401
    %v3405 = vor.u32 %v3403, %v3404
    %v3406 = vshll.u32 2475754826, %v3400
    %v3407 = vshrl.u32 2131351028, %v3401
    %v3408 = vor.u32 %v3406, %v3407
    %v3409 = vshll.u32 2131351028, %v3400
    %v3410 = vshrl.u32 2102212464, %v3401
    %v3411 = vor.u32 %v3409, %v3410
    %v3412 = vshll.u32 2102212464, %v3400
    %v3413 = vshrl.u32 920167782, %v3401
    %v3414 = vor.u32 %v3412, %v3413
    %v3415 = vshll.u32 920167782, %v3400
    %v3416 = vshrl.u32 1326507024, %v3401
    %v3417 = vor.u32 %v3415, %v3416
    %vm3418 = vcmp.lt.s32.totalorder %v3399, 1
    %vm3419 = vcmp.lt.s32.totalorder %v3399, 2
    %vm3420 = vcmp.lt.s32.totalorder %v3399, 3
    %vm3421 = vcmp.lt.s32.totalorder %v3399, 4
    %v3422 = vsel %vm3418, %v3402, %v3405
    %v3423 = vsel %vm3421, %v3411, 2102212464
    %v3424 = vsel %vm3420, %v3408, %v3423
    %v3425 = vsel %vm3419, %v3422, %v3424
    %v3426 = vsel %vm3418, %v3405, %v3408
    %v3427 = vsel %vm3421, %v3414, 920167782
    %v3428 = vsel %vm3420, %v3411, %v3427
    %v3429 = vsel %vm3419, %v3426, %v3428
    %v3430 = vsel %vm3418, %v3408, %v3411
    %v3431 = vsel %vm3421, %v3417, 1326507024
    %v3432 = vsel %vm3420, %v3414, %v3431
    %v3433 = vsel %vm3419, %v3430, %v3432
    %v3434 = vshll.u32 %v3394, 8
    %v3435 = vmul.u32.u64.compose %v3434, %v3433
    %v3436 = vextract.low.u32 %v3435
    %v3437 = vextract.high.u32 %v3435
    %v3438 = vmul.u32.u64.compose %v3434, %v3429
    %v3439 = vextract.low.u32 %v3438
    %v3440 = vextract.high.u32 %v3438
    %v3441 = vmul.u32 %v3434, %v3425
    %v3442 = vadd.s32 %v3437, %v3439
    %vm3443 = vc.u32 %v3437, %v3439
    %v3444 = vadd.s32 %v3440, 1
    %v3445 = vsel %vm3443, %v3444, %v3440
    %v3446 = vadd.s32 %v3441, %v3445
    %v3447 = vadd.s32 %v3446, 536870912
    %v3448 = vshrl.u32 %v3447, 30
    %v3449 = vshll.u32 %v3448, 30
    %v3450 = vsub.s32 %v3446, %v3449
    %vm3451 = vcmp.lt.s32.totalorder %v3450, 0
    %v3452 = vsub.s32 0, %v3450
    %v3453 = vsel %vm3451, %v3452, %v3450
    %v3454 = vclz %v3453
    %v3455 = vsub.s32 %v3454, 2
    %vm3456 = vcmp.gt.s32.totalorder 0, %v3455
    %v3457 = vsel %vm3456, 0, %v3455
    %v3458 = vsub.s32 32, %v3457
    %v3459 = vshll.u32 %v3450, %v3457
    %v3460 = vshrl.u32 %v3442, %v3458
    %v3461 = vor.u32 %v3459, %v3460
    %v3462 = vsub.s32 4294967266, %v3457
    %v3463 = vadd.s32 %v3462, 127
    %v3464 = vshll.u32 %v3463, 23
    %v3465 = vor.u32 4788187, %v3464
    %v3466 = vand.u32 2147483647, %v3465
    %v3468 = vcvt.s32.f32 %v3461
    %v3469 = vmul.f32 %v3468, %v3466
    %v3470 = vxor.u32 %v3469, 2147483648
    %v3471 = vsel %vm3388, %v3470, %v3469
    %v3472 = vsub.s32 4, %v3448
    %v3473 = vsel %vm3388, %v3472, %v3448
    %v3474 = vsel %vm3387, %v161, %v3471
    %v3475 = vsel %vm3387, 0, %v3473
    %v3476 = vcosq.f32.pop %v3474
    %v3477 = vsinq.f32.pop %v3474
    %vm3478 = vweird.f32 %v161
    %v3479 = vadd.s32 %v3475, 3
    %v3480 = vand.u32 %v3479, 3
    %vm3481 = vcmp.lt.s32.totalorder %v3480, 2
    %vm3482 = vcmp.eq.s32.totalorder %v3480, 0
    %v3483 = vxor.u32 %v3477, 2147483648
    %v3484 = vsel %vm3482, %v3476, %v3483
    %vm3485 = vcmp.eq.s32.totalorder %v3480, 2
    %v3486 = vxor.u32 %v3476, 2147483648
    %v3487 = vsel %vm3485, %v3486, %v3477
    %v3488 = vsel %vm3481, %v3484, %v3487
    %v3489 = vsel %vm3478, nan, %v3488
    %v3490 = vlaneseq
    %v3491 = vshrl.u32 %v3490, 7
    %v3492 = vsub.s32 0, %v3491
    %v3493 = vrot.slane %v23, %v3492
    %v3494 = vmul.f32 %v3493, %v265
    %v3495 = vmul.f32 %v3493, %v369
    %v3496 = vmul.f32 %v3493, %v473
    %v3497 = vmul.f32 %v3493, %v577
    %v3498 = vmul.f32 %v3493, %v681
    %v3499 = vmul.f32 %v3493, %v785
    %v3500 = vmul.f32 %v3493, %v889
    %v3501 = vmul.f32 %v3493, %v993
    %v3502 = vmul.f32 %v3493, %v1097
    %v3503 = vmul.f32 %v3493, %v1201
    %v3504 = vmul.f32 %v3493, %v1305
    %v3505 = vmul.f32 %v3493, %v1409
    %v3506 = vmul.f32 %v3493, %v1513
    %v3507 = vmul.f32 %v3493, %v1617
    %v3508 = vmul.f32 %v3493, %v1721
    %v3509 = vmul.f32 %v3493, %v1825
    %v3510 = vmul.f32 %v3493, %v1929
    %v3511 = vmul.f32 %v3493, %v2033
    %v3512 = vmul.f32 %v3493, %v2137
    %v3513 = vmul.f32 %v3493, %v2241
    %v3514 = vmul.f32 %v3493, %v2345
    %v3515 = vmul.f32 %v3493, %v2449
    %v3516 = vmul.f32 %v3493, %v2553
    %v3517 = vmul.f32 %v3493, %v2657
    %v3518 = vmul.f32 %v3493, %v2761
    %v3519 = vmul.f32 %v3493, %v2865
    %v3520 = vmul.f32 %v3493, %v2969
    %v3521 = vmul.f32 %v3493, %v3073
    %v3522 = vmul.f32 %v3493, %v3177
    %v3523 = vmul.f32 %v3493, %v3281
    %v3524 = vmul.f32 %v3493, %v3385
    %v3525 = vmul.f32 %v3493, %v3489
    %v3526 = vlaneseq
    %v3527 = vshrl.u32 %v3526, 7
    %v3528 = vsub.s32 0, %v3527
    %v3529 = vrot.slane %v24, %v3528
    %v3530 = vadd.f32 %v3494, %v3529
    %v3531 = vadd.f32 %v3495, %v3529
    %v3532 = vadd.f32 %v3496, %v3529
    %v3533 = vadd.f32 %v3497, %v3529
    %v3534 = vadd.f32 %v3498, %v3529
    %v3535 = vadd.f32 %v3499, %v3529
    %v3536 = vadd.f32 %v3500, %v3529
    %v3537 = vadd.f32 %v3501, %v3529
    %v3538 = vadd.f32 %v3502, %v3529
    %v3539 = vadd.f32 %v3503, %v3529
    %v3540 = vadd.f32 %v3504, %v3529
    %v3541 = vadd.f32 %v3505, %v3529
    %v3542 = vadd.f32 %v3506, %v3529
    %v3543 = vadd.f32 %v3507, %v3529
    %v3544 = vadd.f32 %v3508, %v3529
    %v3545 = vadd.f32 %v3509, %v3529
    %v3546 = vadd.f32 %v3510, %v3529
    %v3547 = vadd.f32 %v3511, %v3529
    %v3548 = vadd.f32 %v3512, %v3529
    %v3549 = vadd.f32 %v3513, %v3529
    %v3550 = vadd.f32 %v3514, %v3529
    %v3551 = vadd.f32 %v3515, %v3529
    %v3552 = vadd.f32 %v3516, %v3529
    %v3553 = vadd.f32 %v3517, %v3529
    %v3554 = vadd.f32 %v3518, %v3529
    %v3555 = vadd.f32 %v3519, %v3529
    %v3556 = vadd.f32 %v3520, %v3529
    %v3557 = vadd.f32 %v3521, %v3529
    %v3558 = vadd.f32 %v3522, %v3529
    %v3559 = vadd.f32 %v3523, %v3529
    %v3560 = vadd.f32 %v3524, %v3529
    %v3561 = vadd.f32 %v3525, %v3529
    %3562 = vst [vmem:[#allocation5] sm:$0xff] %v3530
    %3563 = vst [vmem:[#allocation5 + $0x8] sm:$0xff] %v3531
    %3564 = vst [vmem:[#allocation5 + $0x10] sm:$0xff] %v3532
    %3565 = vst [vmem:[#allocation5 + $0x18] sm:$0xff] %v3533
    %3566 = vst [vmem:[#allocation5 + $0x20] sm:$0xff] %v3534
    %3567 = vst [vmem:[#allocation5 + $0x28] sm:$0xff] %v3535
    %3568 = vst [vmem:[#allocation5 + $0x30] sm:$0xff] %v3536
    %3569 = vst [vmem:[#allocation5 + $0x38] sm:$0xff] %v3537
    %3570 = vst [vmem:[#allocation5 + $0x40] sm:$0xff] %v3538
    %3571 = vst [vmem:[#allocation5 + $0x48] sm:$0xff] %v3539
    %3572 = vst [vmem:[#allocation5 + $0x50] sm:$0xff] %v3540
    %3573 = vst [vmem:[#allocation5 + $0x58] sm:$0xff] %v3541
    %3574 = vst [vmem:[#allocation5 + $0x60] sm:$0xff] %v3542
    %3575 = vst [vmem:[#allocation5 + $0x68] sm:$0xff] %v3543
    %3576 = vst [vmem:[#allocation5 + $0x70] sm:$0xff] %v3544
    %3577 = vst [vmem:[#allocation5 + $0x78] sm:$0xff] %v3545
    %3578 = vst [vmem:[#allocation5 + $0x80] sm:$0xff] %v3546
    %3579 = vst [vmem:[#allocation5 + $0x88] sm:$0xff] %v3547
    %3580 = vst [vmem:[#allocation5 + $0x90] sm:$0xff] %v3548
    %3581 = vst [vmem:[#allocation5 + $0x98] sm:$0xff] %v3549
    %3582 = vst [vmem:[#allocation5 + $0xa0] sm:$0xff] %v3550
    %3583 = vst [vmem:[#allocation5 + $0xa8] sm:$0xff] %v3551
    %3584 = vst [vmem:[#allocation5 + $0xb0] sm:$0xff] %v3552
    %3585 = vst [vmem:[#allocation5 + $0xb8] sm:$0xff] %v3553
    %3586 = vst [vmem:[#allocation5 + $0xc0] sm:$0xff] %v3554
    %3587 = vst [vmem:[#allocation5 + $0xc8] sm:$0xff] %v3555
    %3588 = vst [vmem:[#allocation5 + $0xd0] sm:$0xff] %v3556
    %3589 = vst [vmem:[#allocation5 + $0xd8] sm:$0xff] %v3557
    %3590 = vst [vmem:[#allocation5 + $0xe0] sm:$0xff] %v3558
    %3591 = vst [vmem:[#allocation5 + $0xe8] sm:$0xff] %v3559
    %3592 = vst [vmem:[#allocation5 + $0xf0] sm:$0xff] %v3560
    %3593 = vst [vmem:[#allocation5 + $0xf8] sm:$0xff] %v3561
    // Predicated region
    $region10: #{tpu_custom_call.1} parent=1 // pred_check
      _
    $region11: #{tpu_custom_call.1} parent=1 // pred_check_branch
      %3595 = sbr.rel (0) target = $region13
    $region12: #{tpu_custom_call.1} parent=1 // pred_region
      %s3597 = ssub.s32 4096, 4096
      %3598 = vsyncadd [#allocation4], %s3597
      %s3599 = sshll.u32 [#allocation5], 4
      %s3600 = int_to_ptr.vmem [resolvable:$true] %s3599
      %3605 = dma.vmem_to_hbm [thread:$0]  %s3600, 4096, %s1, [#allocation4], 128, 128, 8
    $region13: #{tpu_custom_call.1} parent=1 // pred_fallthru
      _
    // Predicated region
    $region14: #{tpu_custom_call.1} parent=1 // pred_check
      _
    $region15: #{tpu_custom_call.1} parent=1 // pred_check_branch
      %3607 = sbr.rel (0) target = $region17
    $region16: #{tpu_custom_call.1} parent=1 // pred_region
      %3608 = dma.done [#allocation4], 4096
    $region17: #{tpu_custom_call.1} parent=1 // pred_fallthru
      _
    %3609 = vsyncpa [#allocation3], 1
    %3610 = vsyncpa [#allocation4], 1

</llo_original>
